<compile_context>
chip_gen: v5e
topology: v5e:2x2
jax: 0.10.0
libtpu: 0.0.40
codegen_flags: <defaults>
</compile_context>

<pallas_src>
import math

import jax
import jax.numpy as jnp
import numpy as np
from jax import lax
from jax.experimental import pallas as pl
from jax.experimental.pallas import tpu as pltpu

NUM_HEADS = 8
LN_EPS = 1e-5
NEG_INF = -1e9


def _round_up(x, m):
    return (x + m - 1) // m * m


def _layernorm(t, w, b):
    mu = jnp.mean(t, axis=-1, keepdims=True)
    d = t - mu
    var = jnp.mean(d * d, axis=-1, keepdims=True)
    return d * lax.rsqrt(var + LN_EPS) * w + b


# ----------------------------------------------------------------------------
# Fused Pallas kernel: encoder layer (CLS query only) + aggregator layer +
# mean over K, for one block of NBB batch rows (= NBB*K sequences of length S).
# ----------------------------------------------------------------------------
def make_fused_kernel(K, S, H, pack):
    def kernel(x_rows_ref, x_cls_ref, kb_ref, gh_ref, ge_ref,
               e_wq, e_bq, e_wkv, e_bkv, e_wo, e_bo,
               e_ln1w, e_ln1b, e_w1, e_b1, e_w2, e_b2, e_ln2w, e_ln2b,
               a_wqkv, a_bqkv, a_wo, a_bo,
               a_ln1w, a_ln1b, a_w1, a_b1, a_w2, a_b2, a_ln2w, a_ln2b,
               o_ref):
        nseq = x_cls_ref.shape[0]          # sequences in this block (= NBB*K)
        nbb = nseq // K                    # batch rows in this block
        nr = nseq * S                      # token rows in this block

        # ---------------- encoder layer (post-LN, relu FFN), CLS query -----
        x_rows = x_rows_ref[...]                                 # (nr, H) bf16
        kv = jnp.dot(x_rows, e_wkv[...],
                     preferred_element_type=jnp.float32) + e_bkv[...]
        k3 = kv[:, :H].reshape(nseq, S, H)                       # f32
        v3 = kv[:, H:].reshape(nseq, S, H)

        cls_b = x_cls_ref[...]                                   # (nseq, H) bf16
        q = jnp.dot(cls_b, e_wq[...],
                    preferred_element_type=jnp.float32) + e_bq[...]
        # 1/sqrt(head_dim) is folded into e_wq / e_bq on the host.

        # attention on the VPU + two small "segmented reduce/expand" matmuls
        prod = q[:, None, :] * k3                                # (nseq, S, H)
        sc = jnp.dot(prod.reshape(nr, H).astype(jnp.bfloat16), gh_ref[...],
                     preferred_element_type=jnp.float32)
        sc = sc.reshape(nseq, S, NUM_HEADS) + kb_ref[...]        # per-key bias
        sc = sc - jnp.max(sc, axis=1, keepdims=True)
        p = jnp.exp(sc)
        p = p * pl.reciprocal(jnp.sum(p, axis=1, keepdims=True), approx=True)
        p_exp = jnp.dot(p.reshape(nr, NUM_HEADS).astype(jnp.bfloat16),
                        ge_ref[...], preferred_element_type=jnp.float32)
        ctx = jnp.sum(p_exp.reshape(nseq, S, H) * v3, axis=1)    # (nseq, H)

        attn = jnp.dot(ctx.astype(jnp.bfloat16), e_wo[...],
                       preferred_element_type=jnp.float32) + e_bo[...]
        y = _layernorm(cls_b.astype(jnp.float32) + attn, e_ln1w[...], e_ln1b[...])
        h1 = jnp.maximum(
            jnp.dot(y.astype(jnp.bfloat16), e_w1[...],
                    preferred_element_type=jnp.float32) + e_b1[...], 0.0)
        ff = jnp.dot(h1.astype(jnp.bfloat16), e_w2[...],
                     preferred_element_type=jnp.float32) + e_b2[...]
        pooled = _layernorm(y + ff, e_ln2w[...], e_ln2b[...])    # (nseq, H) f32

        # ---------------- aggregator layer over the K pooled vectors -------
        qkv = jnp.dot(pooled.astype(jnp.bfloat16), a_wqkv[...],
                      preferred_element_type=jnp.float32) + a_bqkv[...]
        qa = qkv[:, :H].reshape(nbb, K, H)          # scale folded into wqkv
        ka = qkv[:, H:2 * H].reshape(nbb, K, H)
        va = qkv[:, 2 * H:].reshape(nbb, K, H)

        prod_a = qa[:, :, None, :] * ka[:, None, :, :]           # (nbb,K,K,H)
        sca = jnp.dot(prod_a.reshape(nbb * K * K, H).astype(jnp.bfloat16),
                      gh_ref[...], preferred_element_type=jnp.float32)
        sca = sca.reshape(nbb, K, K, NUM_HEADS)
        sca = sca - jnp.max(sca, axis=2, keepdims=True)
        pa = jnp.exp(sca)
        pa = pa * pl.reciprocal(jnp.sum(pa, axis=2, keepdims=True), approx=True)
        pa_exp = jnp.dot(pa.reshape(nbb * K * K, NUM_HEADS).astype(jnp.bfloat16),
                         ge_ref[...], preferred_element_type=jnp.float32)
        ctx_a = jnp.sum(pa_exp.reshape(nbb, K, K, H) * va[:, None, :, :],
                        axis=2).reshape(nseq, H)

        attn_a = jnp.dot(ctx_a.astype(jnp.bfloat16), a_wo[...],
                         preferred_element_type=jnp.float32) + a_bo[...]
        ya = _layernorm(pooled + attn_a, a_ln1w[...], a_ln1b[...])
        h1a = jnp.maximum(
            jnp.dot(ya.astype(jnp.bfloat16), a_w1[...],
                    preferred_element_type=jnp.float32) + a_b1[...], 0.0)
        ffa = jnp.dot(h1a.astype(jnp.bfloat16), a_w2[...],
                      preferred_element_type=jnp.float32) + a_b2[...]
        za = _layernorm(ya + ffa, a_ln2w[...], a_ln2b[...])      # (nseq, H)

        # mean over K + lane-dense packed store: `pack` codes per 128-lane row
        za_g = za.reshape(nbb // pack, pack, K, H)
        for g in range(pack):
            o_ref[:, g * H:(g + 1) * H] = jnp.mean(za_g[:, g], axis=1)

    return kernel


# ----------------------------------------------------------------------------
# Host-side helpers
# ----------------------------------------------------------------------------
def prepare_encoder_params(p):
    """PyTorch layout (W^T so kernel does x @ W) -> kernel layout: split fused
    in_proj into Q / KV, fold 1/sqrt(head_dim) into Q, cast matmul weights to
    bf16 (biases / LN stay f32)."""
    wqkv, bqkv, wo, bo, ln1w, ln1b, w1, b1, w2, b2, ln2w, ln2b = p
    H = wo.shape[0]
    scale = 1.0 / math.sqrt(H // NUM_HEADS)
    return ((wqkv[:, :H] * scale).astype(jnp.bfloat16),
            (bqkv[:, :H] * scale).astype(jnp.float32),
            wqkv[:, H:].astype(jnp.bfloat16),
            bqkv[:, H:].astype(jnp.float32),
            wo.astype(jnp.bfloat16), bo.astype(jnp.float32),
            ln1w.astype(jnp.float32), ln1b.astype(jnp.float32),
            w1.astype(jnp.bfloat16), b1.astype(jnp.float32),
            w2.astype(jnp.bfloat16), b2.astype(jnp.float32),
            ln2w.astype(jnp.float32), ln2b.astype(jnp.float32))


def prepare_aggregator_params(p):
    """Keep the fused QKV projection (single (H,3H) matmul in-kernel); fold
    1/sqrt(head_dim) into the Q third."""
    wqkv, bqkv, wo, bo, ln1w, ln1b, w1, b1, w2, b2, ln2w, ln2b = p
    H = wo.shape[0]
    scale = 1.0 / math.sqrt(H // NUM_HEADS)
    colscale = jnp.concatenate([jnp.full((1, H), scale, jnp.float32),
                                jnp.ones((1, 2 * H), jnp.float32)], axis=1)
    return ((wqkv * colscale).astype(jnp.bfloat16),
            (bqkv * colscale).astype(jnp.float32),
            wo.astype(jnp.bfloat16), bo.astype(jnp.float32),
            ln1w.astype(jnp.float32), ln1b.astype(jnp.float32),
            w1.astype(jnp.bfloat16), b1.astype(jnp.float32),
            w2.astype(jnp.bfloat16), b2.astype(jnp.float32),
            ln2w.astype(jnp.float32), ln2b.astype(jnp.float32))


def _head_matrices(H):
    """Block-diagonal 0/1 matrices mapping lanes <-> heads (host constants)."""
    hd = H // NUM_HEADS
    lane = np.arange(H)[:, None]
    head = np.arange(NUM_HEADS)[None, :]
    gather = (lane // hd == head).astype(np.float32)              # (H, 8)
    return jnp.asarray(gather, jnp.bfloat16), jnp.asarray(gather.T, jnp.bfloat16)


def _const_spec(a):
    return pl.BlockSpec(a.shape, lambda n: (0,) * a.ndim)


def _lane_pack(H):
    """How many codes fit per 128-lane output row (must divide 8)."""
    return next((p for p in (8, 4, 2, 1) if p * H <= 128), 1)


def _choose_blocking(B, pack, block_batch):
    """Pick (padded batch Bp, batch rows per grid step NBB).

    NBB is always a multiple of 8; when grid > 1 it is a multiple of 8*pack so
    the packed (NBB//pack, pack*H) output block stays 8-sublane aligned.  For
    larger batches we aim for >= 2 grid steps (v7x has two TensorCores)."""
    multi = 8 * pack
    small = _round_up(B, 8)
    nbb = min(max(multi, (block_batch // multi) * multi),
              _round_up(-(-B // 2), multi))
    bp = _round_up(B, nbb)
    if small <= block_batch and (bp // nbb < 2 or bp > small + small // 4):
        return small, small
    return bp, nbb


def token_sample_adapter_forward(params, samples, pad_token_id, block_batch=64):
    B, K, L = samples.shape
    H = params["emb"].shape[1]
    assert H % NUM_HEADS == 0
    S = 1 + L
    N = B * K

    # --- XLA-side prep: embedding gather, PE, CLS concat, mask -> key bias ---
    seqs = samples.reshape(N, L)
    valid = seqs != pad_token_id
    h = params["emb"][seqs] + sinusoidal_pe(L, H)
    cls = jnp.broadcast_to(params["default_hidden"], (N, 1, H))
    x = jnp.concatenate([cls, h], axis=1).astype(jnp.float32)      # (N, S, H)
    ev = jnp.concatenate([jnp.ones((N, 1), bool), valid], axis=1)  # (N, S)
    # Additive per-key bias for the CLS query (0 allowed / -1e9 masked).  Kept
    # 3-D (key on the sublane axis) so the kernel adds it with a plain lane
    # broadcast and needs no lane->sublane relayout.
    kb = jnp.where(ev, 0.0, NEG_INF).astype(jnp.float32)[:, :, None]

    pack = _lane_pack(H)
    Bp, NBB = _choose_blocking(B, pack, max(block_batch, 8))
    if Bp != B:   # padded rows produce finite garbage, sliced off below
        padn = (Bp - B) * K
        x = jnp.pad(x, ((0, padn), (0, 0), (0, 0)))
        kb = jnp.pad(kb, ((0, padn), (0, 0), (0, 0)))

    # Matmul operands pre-flattened / pre-sliced on the host (all bf16); the
    # kernel never materialises a second copy of the input block.
    x_rows = x.reshape(Bp * K * S, H).astype(jnp.bfloat16)
    x_cls = x[:, 0, :].astype(jnp.bfloat16)

    gh, ge = _head_matrices(H)
    enc_p = prepare_encoder_params(params["enc_layer"])
    agg_p = prepare_aggregator_params(params["agg_layer"])
    consts = (gh, ge) + enc_p + agg_p

    grid = Bp // NBB
    in_specs = [
        pl.BlockSpec((NBB * K * S, H), lambda n: (n, 0)),
        pl.BlockSpec((NBB * K, H), lambda n: (n, 0)),
        pl.BlockSpec((NBB * K, S, 1), lambda n: (n, 0, 0)),
    ] + [_const_spec(a) for a in consts]
    out_spec = pl.BlockSpec((NBB // pack, pack * H), lambda n: (n, 0))

    # --- cost estimate / VMEM budget (explicit: v7x has 64 MiB physical) ---
    nseq_t, nr_t = Bp * K, Bp * K * S
    flops = int(2 * nr_t * H * 2 * H + 2 * nseq_t * H * H
                + 4 * nr_t * H * NUM_HEADS + 4 * nr_t * H
                + 2 * nseq_t * H * H + 4 * nseq_t * H * 4 * H
                + 2 * nseq_t * H * 3 * H
                + 4 * Bp * K * K * H * NUM_HEADS + 4 * Bp * K * K * H
                + 2 * nseq_t * H * H + 4 * nseq_t * H * 4 * H)
    transc = int(nr_t * NUM_HEADS + Bp * K * K * NUM_HEADS + 2 * nseq_t)
    const_bytes = sum(int(np.prod(a.shape)) * a.dtype.itemsize for a in consts)
    nbytes = int(nr_t * H * 2 + nseq_t * H * 2 + nseq_t * S * 4
                 + grid * const_bytes + (Bp // pack) * pack * H * 4)
    vmem_est = (2 * (NBB * K * S * H * 2 + NBB * K * H * 2
                     + NBB * K * 8 * 128 * 4)           # double-buffered inputs
                + 2 * const_bytes
                + NBB * K * S * H * 4 * 6               # f32 encoder temps
                + NBB * K * 4 * H * 4 * 2               # FFN hidden
                + NBB * K * K * H * 4 * 3)              # f32 aggregator temps
    vmem_limit = int(min(48 * 2 ** 20, max(24 * 2 ** 20, 4 * vmem_est)))

    out = pl.pallas_call(
        make_fused_kernel(K=K, S=S, H=H, pack=pack),
        out_shape=jax.ShapeDtypeStruct((Bp // pack, pack * H), jnp.float32),
        grid=(grid,),
        in_specs=in_specs,
        out_specs=out_spec,
        compiler_params=pltpu.CompilerParams(
            dimension_semantics=("parallel",),
            vmem_limit_bytes=vmem_limit),
        cost_estimate=pl.CostEstimate(flops=flops, transcendentals=transc,
                                      bytes_accessed=nbytes),
    )(x_rows, x_cls, kb, *consts)

    return out.reshape(Bp, H)[:B]                       # un-pack lane packing


# ----------------------------------------------------------------------------
# Embedding / PE glue
# ----------------------------------------------------------------------------
def sinusoidal_pe(seq_len, hidden):
    pos = jnp.arange(seq_len, dtype=jnp.float32)[:, None]
    div = jnp.exp(jnp.arange(0, hidden, 2, dtype=jnp.float32)
                  * (-math.log(10000.0) / hidden))
    pe = jnp.zeros((seq_len, hidden), jnp.float32)
    pe = pe.at[:, 0::2].set(jnp.sin(pos * div))
    pe = pe.at[:, 1::2].set(jnp.cos(pos * div))
    return pe[None]


# ----------------------------------------------------------------------------
# Pure-JAX reference (faithful to the PyTorch module, f32 end-to-end)
# ----------------------------------------------------------------------------
def ref_transformer_layer(x, bias, p):
    wqkv, bqkv, wo, bo, ln1w, ln1b, w1, b1, w2, b2, ln2w, ln2b = p
    N, S, H = x.shape
    hd = H // NUM_HEADS
    qkv = x @ wqkv + bqkv
    q, k, v = jnp.split(qkv, 3, axis=-1)

    def split_heads(t):
        return t.reshape(N, S, NUM_HEADS, hd).transpose(0, 2, 1, 3)

    q, k, v = map(split_heads, (q, k, v))
    s = jnp.einsum("nhqd,nhkd->nhqk", q, k) / math.sqrt(hd)
    if bias is not None:
        s = s + bias[:, None]
    pa = jax.nn.softmax(s, axis=-1)
    o = jnp.einsum("nhqk,nhkd->nhqd", pa, v).transpose(0, 2, 1, 3).reshape(N, S, H)
    attn = o @ wo + bo

    def ln(t, w, b):
        mu = t.mean(-1, keepdims=True)
        var = ((t - mu) ** 2).mean(-1, keepdims=True)
        return (t - mu) / jnp.sqrt(var + LN_EPS) * w + b

    y = ln(x + attn, ln1w, ln1b)
    ff = jnp.maximum(y @ w1 + b1, 0.0) @ w2 + b2
    return ln(y + ff, ln2w, ln2b)


def ref_forward(params, samples, pad_token_id):
    B, K, L = samples.shape
    H = params["emb"].shape[1]
    N = B * K
    S = 1 + L
    seqs = samples.reshape(N, L)
    valid = seqs != pad_token_id

    h = params["emb"][seqs] + sinusoidal_pe(L, H)
    cls = jnp.broadcast_to(params["default_hidden"], (N, 1, H))
    x = jnp.concatenate([cls, h], axis=1).astype(jnp.float32)

    # full boolean mask, True = allowed (pad-query rows would be NaN with -inf
    # in PyTorch but are never consumed; -1e9 keeps them finite and is
    # output-equivalent for the consumed CLS row)
    allow = jnp.zeros((N, S, S), dtype=bool)
    allow = allow.at[:, 0, 0].set(True)
    allow = allow.at[:, 0, 1:].set(valid)
    allow = allow.at[:, 1:, 1:].set(valid[:, None, :] & valid[:, :, None])
    bias = jnp.where(allow, 0.0, NEG_INF).astype(jnp.float32)

    enc = ref_transformer_layer(x, bias, params["enc_layer"])
    pooled = enc[:, 0].reshape(B, K, H)
    agg = ref_transformer_layer(pooled, None, params["agg_layer"])
    return agg.mean(axis=1)


# ----------------------------------------------------------------------------
# Deterministic synthetic parameters (shapes follow the PyTorch module)
# ----------------------------------------------------------------------------
def init_layer_params(key, H):
    F = 4 * H
    ks = jax.random.split(key, 8)
    s = 0.05
    return (
        jax.random.normal(ks[0], (H, 3 * H), jnp.float32) * s,   # in_proj W^T
        jax.random.normal(ks[1], (1, 3 * H), jnp.float32) * s,   # in_proj bias
        jax.random.normal(ks[2], (H, H), jnp.float32) * s,       # out_proj W^T
        jax.random.normal(ks[3], (1, H), jnp.float32) * s,       # out_proj bias
        jnp.ones((1, H), jnp.float32),                           # ln1 gamma
        jnp.zeros((1, H), jnp.float32),                          # ln1 beta
        jax.random.normal(ks[4], (H, F), jnp.float32) * s,       # linear1 W^T
        jax.random.normal(ks[5], (1, F), jnp.float32) * s,       # linear1 bias
        jax.random.normal(ks[6], (F, H), jnp.float32) * s,       # linear2 W^T
        jax.random.normal(ks[7], (1, H), jnp.float32) * s,       # linear2 bias
        jnp.ones((1, H), jnp.float32),                           # ln2 gamma
        jnp.zeros((1, H), jnp.float32),                          # ln2 beta
    )


def init_params(key, vocab, H):
    k_emb, k_cls, k_enc, k_agg = jax.random.split(key, 4)
    return {
        "emb": jax.random.normal(k_emb, (vocab, H), jnp.float32),
        "default_hidden": jax.random.normal(k_cls, (1, 1, H), jnp.float32),
        "enc_layer": init_layer_params(k_enc, H),
        "agg_layer": init_layer_params(k_agg, H),
    }


if __name__ == "__main__":
    B, K, L, H, VOCAB = 2, 3, 7, 32, 50
    PAD_TOKEN = 0

    key = jax.random.PRNGKey(0)
    k_param, k_tok = jax.random.split(key)
    params = init_params(k_param, VOCAB, H)
    samples = jax.random.randint(k_tok, (B, K, L), 0, VOCAB, dtype=jnp.int32)

    fwd = jax.jit(token_sample_adapter_forward,
                  static_argnames=("pad_token_id", "block_batch"))
    out = fwd(params, samples, pad_token_id=PAD_TOKEN)
    out = jax.block_until_ready(out)

    ref = ref_forward(params, samples, PAD_TOKEN)
    np.testing.assert_allclose(np.asarray(out), np.asarray(ref),
                               rtol=2e-2, atol=2e-2)
    assert out.shape == (B, H)
    print("KERNEL_OK")
</pallas_src>

<mosaic_0001>
module attributes {stable_mosaic.version = 11 : i64} {
  func.func @kernel(%arg0: i32, %arg1: memref<192x32xbf16, #tpu.memory_space<vmem>>, %arg2: memref<24x32xbf16, #tpu.memory_space<vmem>>, %arg3: memref<24x8x1xf32, #tpu.memory_space<vmem>>, %arg4: memref<32x8xbf16, #tpu.memory_space<vmem>>, %arg5: memref<8x32xbf16, #tpu.memory_space<vmem>>, %arg6: memref<32x32xbf16, #tpu.memory_space<vmem>>, %arg7: memref<1x32xf32, #tpu.memory_space<vmem>>, %arg8: memref<32x64xbf16, #tpu.memory_space<vmem>>, %arg9: memref<1x64xf32, #tpu.memory_space<vmem>>, %arg10: memref<32x32xbf16, #tpu.memory_space<vmem>>, %arg11: memref<1x32xf32, #tpu.memory_space<vmem>>, %arg12: memref<1x32xf32, #tpu.memory_space<vmem>>, %arg13: memref<1x32xf32, #tpu.memory_space<vmem>>, %arg14: memref<32x128xbf16, #tpu.memory_space<vmem>>, %arg15: memref<1x128xf32, #tpu.memory_space<vmem>>, %arg16: memref<128x32xbf16, #tpu.memory_space<vmem>>, %arg17: memref<1x32xf32, #tpu.memory_space<vmem>>, %arg18: memref<1x32xf32, #tpu.memory_space<vmem>>, %arg19: memref<1x32xf32, #tpu.memory_space<vmem>>, %arg20: memref<32x96xbf16, #tpu.memory_space<vmem>>, %arg21: memref<1x96xf32, #tpu.memory_space<vmem>>, %arg22: memref<32x32xbf16, #tpu.memory_space<vmem>>, %arg23: memref<1x32xf32, #tpu.memory_space<vmem>>, %arg24: memref<1x32xf32, #tpu.memory_space<vmem>>, %arg25: memref<1x32xf32, #tpu.memory_space<vmem>>, %arg26: memref<32x128xbf16, #tpu.memory_space<vmem>>, %arg27: memref<1x128xf32, #tpu.memory_space<vmem>>, %arg28: memref<128x32xbf16, #tpu.memory_space<vmem>>, %arg29: memref<1x32xf32, #tpu.memory_space<vmem>>, %arg30: memref<1x32xf32, #tpu.memory_space<vmem>>, %arg31: memref<1x32xf32, #tpu.memory_space<vmem>>, %arg32: memref<2x128xf32, #tpu.memory_space<vmem>>) attributes {dimension_semantics = [#tpu.dimension_semantics<parallel>], iteration_bounds = array<i64: 1>, scalar_prefetch = 0 : i64, scratch_operands = 0 : i64, tpu.core_type = #tpu.core_type<tc>, window_params = [{transform_indices = @transform_0, window_bounds = array<i64: 192, 32>}, {transform_indices = @transform_1, window_bounds = array<i64: 24, 32>}, {transform_indices = @transform_2, window_bounds = array<i64: 24, 8, 1>}, {pipeline_mode = #tpu.pipeline_mode<synchronous>, transform_indices = @transform_3, window_bounds = array<i64: 32, 8>}, {pipeline_mode = #tpu.pipeline_mode<synchronous>, transform_indices = @transform_4, window_bounds = array<i64: 8, 32>}, {pipeline_mode = #tpu.pipeline_mode<synchronous>, transform_indices = @transform_5, window_bounds = array<i64: 32, 32>}, {pipeline_mode = #tpu.pipeline_mode<synchronous>, transform_indices = @transform_6, window_bounds = array<i64: 1, 32>}, {pipeline_mode = #tpu.pipeline_mode<synchronous>, transform_indices = @transform_7, window_bounds = array<i64: 32, 64>}, {pipeline_mode = #tpu.pipeline_mode<synchronous>, transform_indices = @transform_8, window_bounds = array<i64: 1, 64>}, {pipeline_mode = #tpu.pipeline_mode<synchronous>, transform_indices = @transform_9, window_bounds = array<i64: 32, 32>}, {pipeline_mode = #tpu.pipeline_mode<synchronous>, transform_indices = @transform_10, window_bounds = array<i64: 1, 32>}, {pipeline_mode = #tpu.pipeline_mode<synchronous>, transform_indices = @transform_11, window_bounds = array<i64: 1, 32>}, {pipeline_mode = #tpu.pipeline_mode<synchronous>, transform_indices = @transform_12, window_bounds = array<i64: 1, 32>}, {pipeline_mode = #tpu.pipeline_mode<synchronous>, transform_indices = @transform_13, window_bounds = array<i64: 32, 128>}, {pipeline_mode = #tpu.pipeline_mode<synchronous>, transform_indices = @transform_14, window_bounds = array<i64: 1, 128>}, {pipeline_mode = #tpu.pipeline_mode<synchronous>, transform_indices = @transform_15, window_bounds = array<i64: 128, 32>}, {pipeline_mode = #tpu.pipeline_mode<synchronous>, transform_indices = @transform_16, window_bounds = array<i64: 1, 32>}, {pipeline_mode = #tpu.pipeline_mode<synchronous>, transform_indices = @transform_17, window_bounds = array<i64: 1, 32>}, {pipeline_mode = #tpu.pipeline_mode<synchronous>, transform_indices = @transform_18, window_bounds = array<i64: 1, 32>}, {pipeline_mode = #tpu.pipeline_mode<synchronous>, transform_indices = @transform_19, window_bounds = array<i64: 32, 96>}, {pipeline_mode = #tpu.pipeline_mode<synchronous>, transform_indices = @transform_20, window_bounds = array<i64: 1, 96>}, {pipeline_mode = #tpu.pipeline_mode<synchronous>, transform_indices = @transform_21, window_bounds = array<i64: 32, 32>}, {pipeline_mode = #tpu.pipeline_mode<synchronous>, transform_indices = @transform_22, window_bounds = array<i64: 1, 32>}, {pipeline_mode = #tpu.pipeline_mode<synchronous>, transform_indices = @transform_23, window_bounds = array<i64: 1, 32>}, {pipeline_mode = #tpu.pipeline_mode<synchronous>, transform_indices = @transform_24, window_bounds = array<i64: 1, 32>}, {pipeline_mode = #tpu.pipeline_mode<synchronous>, transform_indices = @transform_25, window_bounds = array<i64: 32, 128>}, {pipeline_mode = #tpu.pipeline_mode<synchronous>, transform_indices = @transform_26, window_bounds = array<i64: 1, 128>}, {pipeline_mode = #tpu.pipeline_mode<synchronous>, transform_indices = @transform_27, window_bounds = array<i64: 128, 32>}, {pipeline_mode = #tpu.pipeline_mode<synchronous>, transform_indices = @transform_28, window_bounds = array<i64: 1, 32>}, {pipeline_mode = #tpu.pipeline_mode<synchronous>, transform_indices = @transform_29, window_bounds = array<i64: 1, 32>}, {pipeline_mode = #tpu.pipeline_mode<synchronous>, transform_indices = @transform_30, window_bounds = array<i64: 1, 32>}, {transform_indices = @transform_31, window_bounds = array<i64: 2, 128>}]} {
    %c0 = arith.constant 0 : index
    %c0_0 = arith.constant 0 : index
    %0 = vector.load %arg1[%c0, %c0_0] : memref<192x32xbf16, #tpu.memory_space<vmem>>, vector<192x32xbf16>
    %c0_1 = arith.constant 0 : index
    %c0_2 = arith.constant 0 : index
    %1 = vector.load %arg8[%c0_1, %c0_2] : memref<32x64xbf16, #tpu.memory_space<vmem>>, vector<32x64xbf16>
    %cst = arith.constant dense<0.000000e+00> : vector<192x64xf32>
    %2 = tpu.matmul %0, %1, %cst {dimension_numbers = #tpu.dot_dimension_numbers<[1], [0], [0], [1], [0, 0, 1, 1], [], []>} : vector<192x32xbf16>, vector<32x64xbf16>, vector<192x64xf32> -> vector<192x64xf32>
    %c0_3 = arith.constant 0 : index
    %c0_4 = arith.constant 0 : index
    %3 = vector.load %arg9[%c0_3, %c0_4] : memref<1x64xf32, #tpu.memory_space<vmem>>, vector<1x64xf32>
    %4 = vector.broadcast %3 : vector<1x64xf32> to vector<192x64xf32>
    %5 = arith.addf %2, %4 : vector<192x64xf32>
    %6 = vector.extract_strided_slice %5 {offsets = [0, 0], sizes = [192, 32], strides = [1, 1]} : vector<192x64xf32> to vector<192x32xf32>
    %7 = vector.shape_cast %6 : vector<192x32xf32> to vector<24x8x32xf32>
    %8 = vector.extract_strided_slice %5 {offsets = [0, 32], sizes = [192, 32], strides = [1, 1]} : vector<192x64xf32> to vector<192x32xf32>
    %9 = vector.shape_cast %8 : vector<192x32xf32> to vector<24x8x32xf32>
    %c0_5 = arith.constant 0 : index
    %c0_6 = arith.constant 0 : index
    %10 = vector.load %arg2[%c0_5, %c0_6] : memref<24x32xbf16, #tpu.memory_space<vmem>>, vector<24x32xbf16>
    %c0_7 = arith.constant 0 : index
    %c0_8 = arith.constant 0 : index
    %11 = vector.load %arg6[%c0_7, %c0_8] : memref<32x32xbf16, #tpu.memory_space<vmem>>, vector<32x32xbf16>
    %cst_9 = arith.constant dense<0.000000e+00> : vector<24x32xf32>
    %12 = tpu.matmul %10, %11, %cst_9 {dimension_numbers = #tpu.dot_dimension_numbers<[1], [0], [0], [1], [0, 0, 1, 1], [], []>} : vector<24x32xbf16>, vector<32x32xbf16>, vector<24x32xf32> -> vector<24x32xf32>
    %c0_10 = arith.constant 0 : index
    %c0_11 = arith.constant 0 : index
    %13 = vector.load %arg7[%c0_10, %c0_11] : memref<1x32xf32, #tpu.memory_space<vmem>>, vector<1x32xf32>
    %14 = vector.broadcast %13 : vector<1x32xf32> to vector<24x32xf32>
    %15 = arith.addf %12, %14 : vector<24x32xf32>
    %16 = vector.shape_cast %15 : vector<24x32xf32> to vector<24x1x32xf32>
    %17 = vector.broadcast %16 : vector<24x1x32xf32> to vector<24x8x32xf32>
    %18 = arith.mulf %17, %7 : vector<24x8x32xf32>
    %19 = vector.shape_cast %18 : vector<24x8x32xf32> to vector<192x32xf32>
    %20 = arith.truncf %19 : vector<192x32xf32> to vector<192x32xbf16>
    %c0_12 = arith.constant 0 : index
    %c0_13 = arith.constant 0 : index
    %21 = vector.load %arg4[%c0_12, %c0_13] : memref<32x8xbf16, #tpu.memory_space<vmem>>, vector<32x8xbf16>
    %cst_14 = arith.constant dense<0.000000e+00> : vector<192x8xf32>
    %22 = tpu.matmul %20, %21, %cst_14 {dimension_numbers = #tpu.dot_dimension_numbers<[1], [0], [0], [1], [0, 0, 1, 1], [], []>} : vector<192x32xbf16>, vector<32x8xbf16>, vector<192x8xf32> -> vector<192x8xf32>
    %23 = vector.shape_cast %22 : vector<192x8xf32> to vector<24x8x8xf32>
    %c0_15 = arith.constant 0 : index
    %c0_16 = arith.constant 0 : index
    %c0_17 = arith.constant 0 : index
    %24 = vector.load %arg3[%c0_15, %c0_16, %c0_17] : memref<24x8x1xf32, #tpu.memory_space<vmem>>, vector<24x8x1xf32>
    %25 = vector.broadcast %24 : vector<24x8x1xf32> to vector<24x8x8xf32>
    %26 = arith.addf %23, %25 : vector<24x8x8xf32>
    %cst_18 = arith.constant dense<0xFF800000> : vector<24x8xf32>
    %27 = vector.multi_reduction <maximumf>, %26, %cst_18 [1] : vector<24x8x8xf32> to vector<24x8xf32>
    %28 = vector.shape_cast %27 : vector<24x8xf32> to vector<24x1x8xf32>
    %29 = vector.broadcast %28 : vector<24x1x8xf32> to vector<24x8x8xf32>
    %30 = arith.subf %26, %29 : vector<24x8x8xf32>
    %31 = math.exp %30 : vector<24x8x8xf32>
    %cst_19 = arith.constant dense<0.000000e+00> : vector<24x8xf32>
    %32 = vector.multi_reduction <add>, %31, %cst_19 [1] : vector<24x8x8xf32> to vector<24x8xf32>
    %33 = vector.shape_cast %32 : vector<24x8xf32> to vector<24x1x8xf32>
    %34 = tpu.reciprocal %33 {approx = true} : vector<24x1x8xf32> -> vector<24x1x8xf32>
    %35 = vector.broadcast %34 : vector<24x1x8xf32> to vector<24x8x8xf32>
    %36 = arith.mulf %31, %35 : vector<24x8x8xf32>
    %37 = vector.shape_cast %36 : vector<24x8x8xf32> to vector<192x8xf32>
    %38 = arith.truncf %37 : vector<192x8xf32> to vector<192x8xbf16>
    %c0_20 = arith.constant 0 : index
    %c0_21 = arith.constant 0 : index
    %39 = vector.load %arg5[%c0_20, %c0_21] : memref<8x32xbf16, #tpu.memory_space<vmem>>, vector<8x32xbf16>
    %cst_22 = arith.constant dense<0.000000e+00> : vector<192x32xf32>
    %40 = tpu.matmul %38, %39, %cst_22 {dimension_numbers = #tpu.dot_dimension_numbers<[1], [0], [0], [1], [0, 0, 1, 1], [], []>} : vector<192x8xbf16>, vector<8x32xbf16>, vector<192x32xf32> -> vector<192x32xf32>
    %41 = vector.shape_cast %40 : vector<192x32xf32> to vector<24x8x32xf32>
    %42 = arith.mulf %41, %9 : vector<24x8x32xf32>
    %cst_23 = arith.constant dense<0.000000e+00> : vector<24x32xf32>
    %43 = vector.multi_reduction <add>, %42, %cst_23 [1] : vector<24x8x32xf32> to vector<24x32xf32>
    %44 = arith.truncf %43 : vector<24x32xf32> to vector<24x32xbf16>
    %c0_24 = arith.constant 0 : index
    %c0_25 = arith.constant 0 : index
    %45 = vector.load %arg10[%c0_24, %c0_25] : memref<32x32xbf16, #tpu.memory_space<vmem>>, vector<32x32xbf16>
    %cst_26 = arith.constant dense<0.000000e+00> : vector<24x32xf32>
    %46 = tpu.matmul %44, %45, %cst_26 {dimension_numbers = #tpu.dot_dimension_numbers<[1], [0], [0], [1], [0, 0, 1, 1], [], []>} : vector<24x32xbf16>, vector<32x32xbf16>, vector<24x32xf32> -> vector<24x32xf32>
    %c0_27 = arith.constant 0 : index
    %c0_28 = arith.constant 0 : index
    %47 = vector.load %arg11[%c0_27, %c0_28] : memref<1x32xf32, #tpu.memory_space<vmem>>, vector<1x32xf32>
    %48 = vector.broadcast %47 : vector<1x32xf32> to vector<24x32xf32>
    %49 = arith.addf %46, %48 : vector<24x32xf32>
    %50 = arith.extf %10 : vector<24x32xbf16> to vector<24x32xf32>
    %51 = arith.addf %50, %49 : vector<24x32xf32>
    %c0_29 = arith.constant 0 : index
    %c0_30 = arith.constant 0 : index
    %52 = vector.load %arg12[%c0_29, %c0_30] : memref<1x32xf32, #tpu.memory_space<vmem>>, vector<1x32xf32>
    %c0_31 = arith.constant 0 : index
    %c0_32 = arith.constant 0 : index
    %53 = vector.load %arg13[%c0_31, %c0_32] : memref<1x32xf32, #tpu.memory_space<vmem>>, vector<1x32xf32>
    %cst_33 = arith.constant dense<0.000000e+00> : vector<24xf32>
    %54 = vector.multi_reduction <add>, %51, %cst_33 [1] : vector<24x32xf32> to vector<24xf32>
    %55 = vector.shape_cast %54 : vector<24xf32> to vector<24x1xf32>
    %cst_34 = arith.constant 3.200000e+01 : f32
    %56 = vector.broadcast %cst_34 : f32 to vector<24x1xf32>
    %57 = arith.divf %55, %56 : vector<24x1xf32>
    %58 = vector.broadcast %57 : vector<24x1xf32> to vector<24x32xf32>
    %59 = arith.subf %51, %58 : vector<24x32xf32>
    %60 = arith.mulf %59, %59 : vector<24x32xf32>
    %cst_35 = arith.constant dense<0.000000e+00> : vector<24xf32>
    %61 = vector.multi_reduction <add>, %60, %cst_35 [1] : vector<24x32xf32> to vector<24xf32>
    %62 = vector.shape_cast %61 : vector<24xf32> to vector<24x1xf32>
    %cst_36 = arith.constant 3.200000e+01 : f32
    %63 = vector.broadcast %cst_36 : f32 to vector<24x1xf32>
    %64 = arith.divf %62, %63 : vector<24x1xf32>
    %cst_37 = arith.constant 9.99999974E-6 : f32
    %65 = vector.broadcast %cst_37 : f32 to vector<24x1xf32>
    %66 = arith.addf %64, %65 : vector<24x1xf32>
    %67 = math.rsqrt %66 : vector<24x1xf32>
    %68 = vector.broadcast %67 : vector<24x1xf32> to vector<24x32xf32>
    %69 = arith.mulf %59, %68 : vector<24x32xf32>
    %70 = vector.broadcast %52 : vector<1x32xf32> to vector<24x32xf32>
    %71 = arith.mulf %69, %70 : vector<24x32xf32>
    %72 = vector.broadcast %53 : vector<1x32xf32> to vector<24x32xf32>
    %73 = arith.addf %71, %72 : vector<24x32xf32>
    %74 = arith.truncf %73 : vector<24x32xf32> to vector<24x32xbf16>
    %c0_38 = arith.constant 0 : index
    %c0_39 = arith.constant 0 : index
    %75 = vector.load %arg14[%c0_38, %c0_39] : memref<32x128xbf16, #tpu.memory_space<vmem>>, vector<32x128xbf16>
    %cst_40 = arith.constant dense<0.000000e+00> : vector<24x128xf32>
    %76 = tpu.matmul %74, %75, %cst_40 {dimension_numbers = #tpu.dot_dimension_numbers<[1], [0], [0], [1], [0, 0, 1, 1], [], []>} : vector<24x32xbf16>, vector<32x128xbf16>, vector<24x128xf32> -> vector<24x128xf32>
    %c0_41 = arith.constant 0 : index
    %c0_42 = arith.constant 0 : index
    %77 = vector.load %arg15[%c0_41, %c0_42] : memref<1x128xf32, #tpu.memory_space<vmem>>, vector<1x128xf32>
    %78 = vector.broadcast %77 : vector<1x128xf32> to vector<24x128xf32>
    %79 = arith.addf %76, %78 : vector<24x128xf32>
    %cst_43 = arith.constant 0.000000e+00 : f32
    %80 = vector.broadcast %cst_43 : f32 to vector<24x128xf32>
    %81 = arith.maximumf %79, %80 : vector<24x128xf32>
    %82 = arith.truncf %81 : vector<24x128xf32> to vector<24x128xbf16>
    %c0_44 = arith.constant 0 : index
    %c0_45 = arith.constant 0 : index
    %83 = vector.load %arg16[%c0_44, %c0_45] : memref<128x32xbf16, #tpu.memory_space<vmem>>, vector<128x32xbf16>
    %cst_46 = arith.constant dense<0.000000e+00> : vector<24x32xf32>
    %84 = tpu.matmul %82, %83, %cst_46 {dimension_numbers = #tpu.dot_dimension_numbers<[1], [0], [0], [1], [0, 0, 1, 1], [], []>} : vector<24x128xbf16>, vector<128x32xbf16>, vector<24x32xf32> -> vector<24x32xf32>
    %c0_47 = arith.constant 0 : index
    %c0_48 = arith.constant 0 : index
    %85 = vector.load %arg17[%c0_47, %c0_48] : memref<1x32xf32, #tpu.memory_space<vmem>>, vector<1x32xf32>
    %86 = vector.broadcast %85 : vector<1x32xf32> to vector<24x32xf32>
    %87 = arith.addf %84, %86 : vector<24x32xf32>
    %88 = arith.addf %73, %87 : vector<24x32xf32>
    %c0_49 = arith.constant 0 : index
    %c0_50 = arith.constant 0 : index
    %89 = vector.load %arg18[%c0_49, %c0_50] : memref<1x32xf32, #tpu.memory_space<vmem>>, vector<1x32xf32>
    %c0_51 = arith.constant 0 : index
    %c0_52 = arith.constant 0 : index
    %90 = vector.load %arg19[%c0_51, %c0_52] : memref<1x32xf32, #tpu.memory_space<vmem>>, vector<1x32xf32>
    %cst_53 = arith.constant dense<0.000000e+00> : vector<24xf32>
    %91 = vector.multi_reduction <add>, %88, %cst_53 [1] : vector<24x32xf32> to vector<24xf32>
    %92 = vector.shape_cast %91 : vector<24xf32> to vector<24x1xf32>
    %cst_54 = arith.constant 3.200000e+01 : f32
    %93 = vector.broadcast %cst_54 : f32 to vector<24x1xf32>
    %94 = arith.divf %92, %93 : vector<24x1xf32>
    %95 = vector.broadcast %94 : vector<24x1xf32> to vector<24x32xf32>
    %96 = arith.subf %88, %95 : vector<24x32xf32>
    %97 = arith.mulf %96, %96 : vector<24x32xf32>
    %cst_55 = arith.constant dense<0.000000e+00> : vector<24xf32>
    %98 = vector.multi_reduction <add>, %97, %cst_55 [1] : vector<24x32xf32> to vector<24xf32>
    %99 = vector.shape_cast %98 : vector<24xf32> to vector<24x1xf32>
    %cst_56 = arith.constant 3.200000e+01 : f32
    %100 = vector.broadcast %cst_56 : f32 to vector<24x1xf32>
    %101 = arith.divf %99, %100 : vector<24x1xf32>
    %cst_57 = arith.constant 9.99999974E-6 : f32
    %102 = vector.broadcast %cst_57 : f32 to vector<24x1xf32>
    %103 = arith.addf %101, %102 : vector<24x1xf32>
    %104 = math.rsqrt %103 : vector<24x1xf32>
    %105 = vector.broadcast %104 : vector<24x1xf32> to vector<24x32xf32>
    %106 = arith.mulf %96, %105 : vector<24x32xf32>
    %107 = vector.broadcast %89 : vector<1x32xf32> to vector<24x32xf32>
    %108 = arith.mulf %106, %107 : vector<24x32xf32>
    %109 = vector.broadcast %90 : vector<1x32xf32> to vector<24x32xf32>
    %110 = arith.addf %108, %109 : vector<24x32xf32>
    %111 = arith.truncf %110 : vector<24x32xf32> to vector<24x32xbf16>
    %c0_58 = arith.constant 0 : index
    %c0_59 = arith.constant 0 : index
    %112 = vector.load %arg20[%c0_58, %c0_59] : memref<32x96xbf16, #tpu.memory_space<vmem>>, vector<32x96xbf16>
    %cst_60 = arith.constant dense<0.000000e+00> : vector<24x96xf32>
    %113 = tpu.matmul %111, %112, %cst_60 {dimension_numbers = #tpu.dot_dimension_numbers<[1], [0], [0], [1], [0, 0, 1, 1], [], []>} : vector<24x32xbf16>, vector<32x96xbf16>, vector<24x96xf32> -> vector<24x96xf32>
    %c0_61 = arith.constant 0 : index
    %c0_62 = arith.constant 0 : index
    %114 = vector.load %arg21[%c0_61, %c0_62] : memref<1x96xf32, #tpu.memory_space<vmem>>, vector<1x96xf32>
    %115 = vector.broadcast %114 : vector<1x96xf32> to vector<24x96xf32>
    %116 = arith.addf %113, %115 : vector<24x96xf32>
    %117 = vector.extract_strided_slice %116 {offsets = [0, 0], sizes = [24, 32], strides = [1, 1]} : vector<24x96xf32> to vector<24x32xf32>
    %118 = vector.shape_cast %117 : vector<24x32xf32> to vector<8x3x32xf32>
    %119 = vector.extract_strided_slice %116 {offsets = [0, 32], sizes = [24, 32], strides = [1, 1]} : vector<24x96xf32> to vector<24x32xf32>
    %120 = vector.shape_cast %119 : vector<24x32xf32> to vector<8x3x32xf32>
    %121 = vector.extract_strided_slice %116 {offsets = [0, 64], sizes = [24, 32], strides = [1, 1]} : vector<24x96xf32> to vector<24x32xf32>
    %122 = vector.shape_cast %121 : vector<24x32xf32> to vector<8x3x32xf32>
    %123 = vector.shape_cast %118 : vector<8x3x32xf32> to vector<8x3x1x32xf32>
    %124 = vector.shape_cast %120 : vector<8x3x32xf32> to vector<8x1x3x32xf32>
    %125 = vector.broadcast %123 : vector<8x3x1x32xf32> to vector<8x3x3x32xf32>
    %126 = vector.broadcast %124 : vector<8x1x3x32xf32> to vector<8x3x3x32xf32>
    %127 = arith.mulf %125, %126 : vector<8x3x3x32xf32>
    %128 = vector.shape_cast %127 : vector<8x3x3x32xf32> to vector<72x32xf32>
    %129 = arith.truncf %128 : vector<72x32xf32> to vector<72x32xbf16>
    %c0_63 = arith.constant 0 : index
    %c0_64 = arith.constant 0 : index
    %130 = vector.load %arg4[%c0_63, %c0_64] : memref<32x8xbf16, #tpu.memory_space<vmem>>, vector<32x8xbf16>
    %cst_65 = arith.constant dense<0.000000e+00> : vector<72x8xf32>
    %131 = tpu.matmul %129, %130, %cst_65 {dimension_numbers = #tpu.dot_dimension_numbers<[1], [0], [0], [1], [0, 0, 1, 1], [], []>} : vector<72x32xbf16>, vector<32x8xbf16>, vector<72x8xf32> -> vector<72x8xf32>
    %132 = vector.shape_cast %131 : vector<72x8xf32> to vector<8x3x3x8xf32>
    %cst_66 = arith.constant dense<0xFF800000> : vector<8x3x8xf32>
    %133 = vector.multi_reduction <maximumf>, %132, %cst_66 [2] : vector<8x3x3x8xf32> to vector<8x3x8xf32>
    %134 = vector.shape_cast %133 : vector<8x3x8xf32> to vector<8x3x1x8xf32>
    %135 = vector.broadcast %134 : vector<8x3x1x8xf32> to vector<8x3x3x8xf32>
    %136 = arith.subf %132, %135 : vector<8x3x3x8xf32>
    %137 = math.exp %136 : vector<8x3x3x8xf32>
    %cst_67 = arith.constant dense<0.000000e+00> : vector<8x3x8xf32>
    %138 = vector.multi_reduction <add>, %137, %cst_67 [2] : vector<8x3x3x8xf32> to vector<8x3x8xf32>
    %139 = vector.shape_cast %138 : vector<8x3x8xf32> to vector<8x3x1x8xf32>
    %140 = tpu.reciprocal %139 {approx = true} : vector<8x3x1x8xf32> -> vector<8x3x1x8xf32>
    %141 = vector.broadcast %140 : vector<8x3x1x8xf32> to vector<8x3x3x8xf32>
    %142 = arith.mulf %137, %141 : vector<8x3x3x8xf32>
    %143 = vector.shape_cast %142 : vector<8x3x3x8xf32> to vector<72x8xf32>
    %144 = arith.truncf %143 : vector<72x8xf32> to vector<72x8xbf16>
    %c0_68 = arith.constant 0 : index
    %c0_69 = arith.constant 0 : index
    %145 = vector.load %arg5[%c0_68, %c0_69] : memref<8x32xbf16, #tpu.memory_space<vmem>>, vector<8x32xbf16>
    %cst_70 = arith.constant dense<0.000000e+00> : vector<72x32xf32>
    %146 = tpu.matmul %144, %145, %cst_70 {dimension_numbers = #tpu.dot_dimension_numbers<[1], [0], [0], [1], [0, 0, 1, 1], [], []>} : vector<72x8xbf16>, vector<8x32xbf16>, vector<72x32xf32> -> vector<72x32xf32>
    %147 = vector.shape_cast %146 : vector<72x32xf32> to vector<8x3x3x32xf32>
    %148 = vector.shape_cast %122 : vector<8x3x32xf32> to vector<8x1x3x32xf32>
    %149 = vector.broadcast %148 : vector<8x1x3x32xf32> to vector<8x3x3x32xf32>
    %150 = arith.mulf %147, %149 : vector<8x3x3x32xf32>
    %cst_71 = arith.constant dense<0.000000e+00> : vector<8x3x32xf32>
    %151 = vector.multi_reduction <add>, %150, %cst_71 [2] : vector<8x3x3x32xf32> to vector<8x3x32xf32>
    %152 = vector.shape_cast %151 : vector<8x3x32xf32> to vector<24x32xf32>
    %153 = arith.truncf %152 : vector<24x32xf32> to vector<24x32xbf16>
    %c0_72 = arith.constant 0 : index
    %c0_73 = arith.constant 0 : index
    %154 = vector.load %arg22[%c0_72, %c0_73] : memref<32x32xbf16, #tpu.memory_space<vmem>>, vector<32x32xbf16>
    %cst_74 = arith.constant dense<0.000000e+00> : vector<24x32xf32>
    %155 = tpu.matmul %153, %154, %cst_74 {dimension_numbers = #tpu.dot_dimension_numbers<[1], [0], [0], [1], [0, 0, 1, 1], [], []>} : vector<24x32xbf16>, vector<32x32xbf16>, vector<24x32xf32> -> vector<24x32xf32>
    %c0_75 = arith.constant 0 : index
    %c0_76 = arith.constant 0 : index
    %156 = vector.load %arg23[%c0_75, %c0_76] : memref<1x32xf32, #tpu.memory_space<vmem>>, vector<1x32xf32>
    %157 = vector.broadcast %156 : vector<1x32xf32> to vector<24x32xf32>
    %158 = arith.addf %155, %157 : vector<24x32xf32>
    %159 = arith.addf %110, %158 : vector<24x32xf32>
    %c0_77 = arith.constant 0 : index
    %c0_78 = arith.constant 0 : index
    %160 = vector.load %arg24[%c0_77, %c0_78] : memref<1x32xf32, #tpu.memory_space<vmem>>, vector<1x32xf32>
    %c0_79 = arith.constant 0 : index
    %c0_80 = arith.constant 0 : index
    %161 = vector.load %arg25[%c0_79, %c0_80] : memref<1x32xf32, #tpu.memory_space<vmem>>, vector<1x32xf32>
    %cst_81 = arith.constant dense<0.000000e+00> : vector<24xf32>
    %162 = vector.multi_reduction <add>, %159, %cst_81 [1] : vector<24x32xf32> to vector<24xf32>
    %163 = vector.shape_cast %162 : vector<24xf32> to vector<24x1xf32>
    %cst_82 = arith.constant 3.200000e+01 : f32
    %164 = vector.broadcast %cst_82 : f32 to vector<24x1xf32>
    %165 = arith.divf %163, %164 : vector<24x1xf32>
    %166 = vector.broadcast %165 : vector<24x1xf32> to vector<24x32xf32>
    %167 = arith.subf %159, %166 : vector<24x32xf32>
    %168 = arith.mulf %167, %167 : vector<24x32xf32>
    %cst_83 = arith.constant dense<0.000000e+00> : vector<24xf32>
    %169 = vector.multi_reduction <add>, %168, %cst_83 [1] : vector<24x32xf32> to vector<24xf32>
    %170 = vector.shape_cast %169 : vector<24xf32> to vector<24x1xf32>
    %cst_84 = arith.constant 3.200000e+01 : f32
    %171 = vector.broadcast %cst_84 : f32 to vector<24x1xf32>
    %172 = arith.divf %170, %171 : vector<24x1xf32>
    %cst_85 = arith.constant 9.99999974E-6 : f32
    %173 = vector.broadcast %cst_85 : f32 to vector<24x1xf32>
    %174 = arith.addf %172, %173 : vector<24x1xf32>
    %175 = math.rsqrt %174 : vector<24x1xf32>
    %176 = vector.broadcast %175 : vector<24x1xf32> to vector<24x32xf32>
    %177 = arith.mulf %167, %176 : vector<24x32xf32>
    %178 = vector.broadcast %160 : vector<1x32xf32> to vector<24x32xf32>
    %179 = arith.mulf %177, %178 : vector<24x32xf32>
    %180 = vector.broadcast %161 : vector<1x32xf32> to vector<24x32xf32>
    %181 = arith.addf %179, %180 : vector<24x32xf32>
    %182 = arith.truncf %181 : vector<24x32xf32> to vector<24x32xbf16>
    %c0_86 = arith.constant 0 : index
    %c0_87 = arith.constant 0 : index
    %183 = vector.load %arg26[%c0_86, %c0_87] : memref<32x128xbf16, #tpu.memory_space<vmem>>, vector<32x128xbf16>
    %cst_88 = arith.constant dense<0.000000e+00> : vector<24x128xf32>
    %184 = tpu.matmul %182, %183, %cst_88 {dimension_numbers = #tpu.dot_dimension_numbers<[1], [0], [0], [1], [0, 0, 1, 1], [], []>} : vector<24x32xbf16>, vector<32x128xbf16>, vector<24x128xf32> -> vector<24x128xf32>
    %c0_89 = arith.constant 0 : index
    %c0_90 = arith.constant 0 : index
    %185 = vector.load %arg27[%c0_89, %c0_90] : memref<1x128xf32, #tpu.memory_space<vmem>>, vector<1x128xf32>
    %186 = vector.broadcast %185 : vector<1x128xf32> to vector<24x128xf32>
    %187 = arith.addf %184, %186 : vector<24x128xf32>
    %cst_91 = arith.constant 0.000000e+00 : f32
    %188 = vector.broadcast %cst_91 : f32 to vector<24x128xf32>
    %189 = arith.maximumf %187, %188 : vector<24x128xf32>
    %190 = arith.truncf %189 : vector<24x128xf32> to vector<24x128xbf16>
    %c0_92 = arith.constant 0 : index
    %c0_93 = arith.constant 0 : index
    %191 = vector.load %arg28[%c0_92, %c0_93] : memref<128x32xbf16, #tpu.memory_space<vmem>>, vector<128x32xbf16>
    %cst_94 = arith.constant dense<0.000000e+00> : vector<24x32xf32>
    %192 = tpu.matmul %190, %191, %cst_94 {dimension_numbers = #tpu.dot_dimension_numbers<[1], [0], [0], [1], [0, 0, 1, 1], [], []>} : vector<24x128xbf16>, vector<128x32xbf16>, vector<24x32xf32> -> vector<24x32xf32>
    %c0_95 = arith.constant 0 : index
    %c0_96 = arith.constant 0 : index
    %193 = vector.load %arg29[%c0_95, %c0_96] : memref<1x32xf32, #tpu.memory_space<vmem>>, vector<1x32xf32>
    %194 = vector.broadcast %193 : vector<1x32xf32> to vector<24x32xf32>
    %195 = arith.addf %192, %194 : vector<24x32xf32>
    %196 = arith.addf %181, %195 : vector<24x32xf32>
    %c0_97 = arith.constant 0 : index
    %c0_98 = arith.constant 0 : index
    %197 = vector.load %arg30[%c0_97, %c0_98] : memref<1x32xf32, #tpu.memory_space<vmem>>, vector<1x32xf32>
    %c0_99 = arith.constant 0 : index
    %c0_100 = arith.constant 0 : index
    %198 = vector.load %arg31[%c0_99, %c0_100] : memref<1x32xf32, #tpu.memory_space<vmem>>, vector<1x32xf32>
    %cst_101 = arith.constant dense<0.000000e+00> : vector<24xf32>
    %199 = vector.multi_reduction <add>, %196, %cst_101 [1] : vector<24x32xf32> to vector<24xf32>
    %200 = vector.shape_cast %199 : vector<24xf32> to vector<24x1xf32>
    %cst_102 = arith.constant 3.200000e+01 : f32
    %201 = vector.broadcast %cst_102 : f32 to vector<24x1xf32>
    %202 = arith.divf %200, %201 : vector<24x1xf32>
    %203 = vector.broadcast %202 : vector<24x1xf32> to vector<24x32xf32>
    %204 = arith.subf %196, %203 : vector<24x32xf32>
    %205 = arith.mulf %204, %204 : vector<24x32xf32>
    %cst_103 = arith.constant dense<0.000000e+00> : vector<24xf32>
    %206 = vector.multi_reduction <add>, %205, %cst_103 [1] : vector<24x32xf32> to vector<24xf32>
    %207 = vector.shape_cast %206 : vector<24xf32> to vector<24x1xf32>
    %cst_104 = arith.constant 3.200000e+01 : f32
    %208 = vector.broadcast %cst_104 : f32 to vector<24x1xf32>
    %209 = arith.divf %207, %208 : vector<24x1xf32>
    %cst_105 = arith.constant 9.99999974E-6 : f32
    %210 = vector.broadcast %cst_105 : f32 to vector<24x1xf32>
    %211 = arith.addf %209, %210 : vector<24x1xf32>
    %212 = math.rsqrt %211 : vector<24x1xf32>
    %213 = vector.broadcast %212 : vector<24x1xf32> to vector<24x32xf32>
    %214 = arith.mulf %204, %213 : vector<24x32xf32>
    %215 = vector.broadcast %197 : vector<1x32xf32> to vector<24x32xf32>
    %216 = arith.mulf %214, %215 : vector<24x32xf32>
    %217 = vector.broadcast %198 : vector<1x32xf32> to vector<24x32xf32>
    %218 = arith.addf %216, %217 : vector<24x32xf32>
    %219 = vector.shape_cast %218 : vector<24x32xf32> to vector<2x4x3x32xf32>
    %220 = vector.extract_strided_slice %219 {offsets = [0, 0, 0, 0], sizes = [2, 1, 3, 32], strides = [1, 1, 1, 1]} : vector<2x4x3x32xf32> to vector<2x1x3x32xf32>
    %221 = vector.shape_cast %220 : vector<2x1x3x32xf32> to vector<2x3x32xf32>
    %cst_106 = arith.constant dense<0.000000e+00> : vector<2x32xf32>
    %222 = vector.multi_reduction <add>, %221, %cst_106 [1] : vector<2x3x32xf32> to vector<2x32xf32>
    %cst_107 = arith.constant 3.000000e+00 : f32
    %223 = vector.broadcast %cst_107 : f32 to vector<2x32xf32>
    %224 = arith.divf %222, %223 : vector<2x32xf32>
    %c0_108 = arith.constant 0 : index
    %c0_109 = arith.constant 0 : index
    %225 = vector.load %arg32[%c0_108, %c0_109] : memref<2x128xf32, #tpu.memory_space<vmem>>, vector<2x32xf32>
    tpu.vector_store %arg32[%c0_108, %c0_109], %224 {strides = array<i32>} : memref<2x128xf32, #tpu.memory_space<vmem>>, vector<2x32xf32>,
    %226 = vector.extract_strided_slice %219 {offsets = [0, 1, 0, 0], sizes = [2, 1, 3, 32], strides = [1, 1, 1, 1]} : vector<2x4x3x32xf32> to vector<2x1x3x32xf32>
    %227 = vector.shape_cast %226 : vector<2x1x3x32xf32> to vector<2x3x32xf32>
    %cst_110 = arith.constant dense<0.000000e+00> : vector<2x32xf32>
    %228 = vector.multi_reduction <add>, %227, %cst_110 [1] : vector<2x3x32xf32> to vector<2x32xf32>
    %cst_111 = arith.constant 3.000000e+00 : f32
    %229 = vector.broadcast %cst_111 : f32 to vector<2x32xf32>
    %230 = arith.divf %228, %229 : vector<2x32xf32>
    %c0_112 = arith.constant 0 : index
    %c32 = arith.constant 32 : index
    %231 = vector.load %arg32[%c0_112, %c32] : memref<2x128xf32, #tpu.memory_space<vmem>>, vector<2x32xf32>
    tpu.vector_store %arg32[%c0_112, %c32], %230 {strides = array<i32>} : memref<2x128xf32, #tpu.memory_space<vmem>>, vector<2x32xf32>,
    %232 = vector.extract_strided_slice %219 {offsets = [0, 2, 0, 0], sizes = [2, 1, 3, 32], strides = [1, 1, 1, 1]} : vector<2x4x3x32xf32> to vector<2x1x3x32xf32>
    %233 = vector.shape_cast %232 : vector<2x1x3x32xf32> to vector<2x3x32xf32>
    %cst_113 = arith.constant dense<0.000000e+00> : vector<2x32xf32>
    %234 = vector.multi_reduction <add>, %233, %cst_113 [1] : vector<2x3x32xf32> to vector<2x32xf32>
    %cst_114 = arith.constant 3.000000e+00 : f32
    %235 = vector.broadcast %cst_114 : f32 to vector<2x32xf32>
    %236 = arith.divf %234, %235 : vector<2x32xf32>
    %c0_115 = arith.constant 0 : index
    %c64 = arith.constant 64 : index
    %237 = vector.load %arg32[%c0_115, %c64] : memref<2x128xf32, #tpu.memory_space<vmem>>, vector<2x32xf32>
    tpu.vector_store %arg32[%c0_115, %c64], %236 {strides = array<i32>} : memref<2x128xf32, #tpu.memory_space<vmem>>, vector<2x32xf32>,
    %238 = vector.extract_strided_slice %219 {offsets = [0, 3, 0, 0], sizes = [2, 1, 3, 32], strides = [1, 1, 1, 1]} : vector<2x4x3x32xf32> to vector<2x1x3x32xf32>
    %239 = vector.shape_cast %238 : vector<2x1x3x32xf32> to vector<2x3x32xf32>
    %cst_116 = arith.constant dense<0.000000e+00> : vector<2x32xf32>
    %240 = vector.multi_reduction <add>, %239, %cst_116 [1] : vector<2x3x32xf32> to vector<2x32xf32>
    %cst_117 = arith.constant 3.000000e+00 : f32
    %241 = vector.broadcast %cst_117 : f32 to vector<2x32xf32>
    %242 = arith.divf %240, %241 : vector<2x32xf32>
    %c0_118 = arith.constant 0 : index
    %c96 = arith.constant 96 : index
    %243 = vector.load %arg32[%c0_118, %c96] : memref<2x128xf32, #tpu.memory_space<vmem>>, vector<2x32xf32>
    tpu.vector_store %arg32[%c0_118, %c96], %242 {strides = array<i32>} : memref<2x128xf32, #tpu.memory_space<vmem>>, vector<2x32xf32>,
    return
  }
  func.func @transform_0(%arg0: i32) -> (i32, i32) {
    %c0_i32 = arith.constant 0 : i32
    %c0_i32_0 = arith.constant 0 : i32
    return %arg0, %c0_i32 : i32, i32
  }
  func.func @transform_1(%arg0: i32) -> (i32, i32) {
    %c0_i32 = arith.constant 0 : i32
    %c0_i32_0 = arith.constant 0 : i32
    return %arg0, %c0_i32 : i32, i32
  }
  func.func @transform_2(%arg0: i32) -> (i32, i32, i32) {
    %c0_i32 = arith.constant 0 : i32
    %c0_i32_0 = arith.constant 0 : i32
    %c0_i32_1 = arith.constant 0 : i32
    return %arg0, %c0_i32, %c0_i32_0 : i32, i32, i32
  }
  func.func @transform_3(%arg0: i32) -> (i32, i32) {
    %c0_i32 = arith.constant 0 : i32
    %c0_i32_0 = arith.constant 0 : i32
    %c0_i32_1 = arith.constant 0 : i32
    return %c0_i32, %c0_i32_0 : i32, i32
  }
  func.func @transform_4(%arg0: i32) -> (i32, i32) {
    %c0_i32 = arith.constant 0 : i32
    %c0_i32_0 = arith.constant 0 : i32
    %c0_i32_1 = arith.constant 0 : i32
    return %c0_i32, %c0_i32_0 : i32, i32
  }
  func.func @transform_5(%arg0: i32) -> (i32, i32) {
    %c0_i32 = arith.constant 0 : i32
    %c0_i32_0 = arith.constant 0 : i32
    %c0_i32_1 = arith.constant 0 : i32
    return %c0_i32, %c0_i32_0 : i32, i32
  }
  func.func @transform_6(%arg0: i32) -> (i32, i32) {
    %c0_i32 = arith.constant 0 : i32
    %c0_i32_0 = arith.constant 0 : i32
    %c0_i32_1 = arith.constant 0 : i32
    return %c0_i32, %c0_i32_0 : i32, i32
  }
  func.func @transform_7(%arg0: i32) -> (i32, i32) {
    %c0_i32 = arith.constant 0 : i32
    %c0_i32_0 = arith.constant 0 : i32
    %c0_i32_1 = arith.constant 0 : i32
    return %c0_i32, %c0_i32_0 : i32, i32
  }
  func.func @transform_8(%arg0: i32) -> (i32, i32) {
    %c0_i32 = arith.constant 0 : i32
    %c0_i32_0 = arith.constant 0 : i32
    %c0_i32_1 = arith.constant 0 : i32
    return %c0_i32, %c0_i32_0 : i32, i32
  }
  func.func @transform_9(%arg0: i32) -> (i32, i32) {
    %c0_i32 = arith.constant 0 : i32
    %c0_i32_0 = arith.constant 0 : i32
    %c0_i32_1 = arith.constant 0 : i32
    return %c0_i32, %c0_i32_0 : i32, i32
  }
  func.func @transform_10(%arg0: i32) -> (i32, i32) {
    %c0_i32 = arith.constant 0 : i32
    %c0_i32_0 = arith.constant 0 : i32
    %c0_i32_1 = arith.constant 0 : i32
    return %c0_i32, %c0_i32_0 : i32, i32
  }
  func.func @transform_11(%arg0: i32) -> (i32, i32) {
    %c0_i32 = arith.constant 0 : i32
    %c0_i32_0 = arith.constant 0 : i32
    %c0_i32_1 = arith.constant 0 : i32
    return %c0_i32, %c0_i32_0 : i32, i32
  }
  func.func @transform_12(%arg0: i32) -> (i32, i32) {
    %c0_i32 = arith.constant 0 : i32
    %c0_i32_0 = arith.constant 0 : i32
    %c0_i32_1 = arith.constant 0 : i32
    return %c0_i32, %c0_i32_0 : i32, i32
  }
  func.func @transform_13(%arg0: i32) -> (i32, i32) {
    %c0_i32 = arith.constant 0 : i32
    %c0_i32_0 = arith.constant 0 : i32
    %c0_i32_1 = arith.constant 0 : i32
    return %c0_i32, %c0_i32_0 : i32, i32
  }
  func.func @transform_14(%arg0: i32) -> (i32, i32) {
    %c0_i32 = arith.constant 0 : i32
    %c0_i32_0 = arith.constant 0 : i32
    %c0_i32_1 = arith.constant 0 : i32
    return %c0_i32, %c0_i32_0 : i32, i32
  }
  func.func @transform_15(%arg0: i32) -> (i32, i32) {
    %c0_i32 = arith.constant 0 : i32
    %c0_i32_0 = arith.constant 0 : i32
    %c0_i32_1 = arith.constant 0 : i32
    return %c0_i32, %c0_i32_0 : i32, i32
  }
  func.func @transform_16(%arg0: i32) -> (i32, i32) {
    %c0_i32 = arith.constant 0 : i32
    %c0_i32_0 = arith.constant 0 : i32
    %c0_i32_1 = arith.constant 0 : i32
    return %c0_i32, %c0_i32_0 : i32, i32
  }
  func.func @transform_17(%arg0: i32) -> (i32, i32) {
    %c0_i32 = arith.constant 0 : i32
    %c0_i32_0 = arith.constant 0 : i32
    %c0_i32_1 = arith.constant 0 : i32
    return %c0_i32, %c0_i32_0 : i32, i32
  }
  func.func @transform_18(%arg0: i32) -> (i32, i32) {
    %c0_i32 = arith.constant 0 : i32
    %c0_i32_0 = arith.constant 0 : i32
    %c0_i32_1 = arith.constant 0 : i32
    return %c0_i32, %c0_i32_0 : i32, i32
  }
  func.func @transform_19(%arg0: i32) -> (i32, i32) {
    %c0_i32 = arith.constant 0 : i32
    %c0_i32_0 = arith.constant 0 : i32
    %c0_i32_1 = arith.constant 0 : i32
    return %c0_i32, %c0_i32_0 : i32, i32
  }
  func.func @transform_20(%arg0: i32) -> (i32, i32) {
    %c0_i32 = arith.constant 0 : i32
    %c0_i32_0 = arith.constant 0 : i32
    %c0_i32_1 = arith.constant 0 : i32
    return %c0_i32, %c0_i32_0 : i32, i32
  }
  func.func @transform_21(%arg0: i32) -> (i32, i32) {
    %c0_i32 = arith.constant 0 : i32
    %c0_i32_0 = arith.constant 0 : i32
    %c0_i32_1 = arith.constant 0 : i32
    return %c0_i32, %c0_i32_0 : i32, i32
  }
  func.func @transform_22(%arg0: i32) -> (i32, i32) {
    %c0_i32 = arith.constant 0 : i32
    %c0_i32_0 = arith.constant 0 : i32
    %c0_i32_1 = arith.constant 0 : i32
    return %c0_i32, %c0_i32_0 : i32, i32
  }
  func.func @transform_23(%arg0: i32) -> (i32, i32) {
    %c0_i32 = arith.constant 0 : i32
    %c0_i32_0 = arith.constant 0 : i32
    %c0_i32_1 = arith.constant 0 : i32
    return %c0_i32, %c0_i32_0 : i32, i32
  }
  func.func @transform_24(%arg0: i32) -> (i32, i32) {
    %c0_i32 = arith.constant 0 : i32
    %c0_i32_0 = arith.constant 0 : i32
    %c0_i32_1 = arith.constant 0 : i32
    return %c0_i32, %c0_i32_0 : i32, i32
  }
  func.func @transform_25(%arg0: i32) -> (i32, i32) {
    %c0_i32 = arith.constant 0 : i32
    %c0_i32_0 = arith.constant 0 : i32
    %c0_i32_1 = arith.constant 0 : i32
    return %c0_i32, %c0_i32_0 : i32, i32
  }
  func.func @transform_26(%arg0: i32) -> (i32, i32) {
    %c0_i32 = arith.constant 0 : i32
    %c0_i32_0 = arith.constant 0 : i32
    %c0_i32_1 = arith.constant 0 : i32
    return %c0_i32, %c0_i32_0 : i32, i32
  }
  func.func @transform_27(%arg0: i32) -> (i32, i32) {
    %c0_i32 = arith.constant 0 : i32
    %c0_i32_0 = arith.constant 0 : i32
    %c0_i32_1 = arith.constant 0 : i32
    return %c0_i32, %c0_i32_0 : i32, i32
  }
  func.func @transform_28(%arg0: i32) -> (i32, i32) {
    %c0_i32 = arith.constant 0 : i32
    %c0_i32_0 = arith.constant 0 : i32
    %c0_i32_1 = arith.constant 0 : i32
    return %c0_i32, %c0_i32_0 : i32, i32
  }
  func.func @transform_29(%arg0: i32) -> (i32, i32) {
    %c0_i32 = arith.constant 0 : i32
    %c0_i32_0 = arith.constant 0 : i32
    %c0_i32_1 = arith.constant 0 : i32
    return %c0_i32, %c0_i32_0 : i32, i32
  }
  func.func @transform_30(%arg0: i32) -> (i32, i32) {
    %c0_i32 = arith.constant 0 : i32
    %c0_i32_0 = arith.constant 0 : i32
    %c0_i32_1 = arith.constant 0 : i32
    return %c0_i32, %c0_i32_0 : i32, i32
  }
  func.func @transform_31(%arg0: i32) -> (i32, i32) {
    %c0_i32 = arith.constant 0 : i32
    %c0_i32_0 = arith.constant 0 : i32
    return %arg0, %c0_i32 : i32, i32
  }
}

</mosaic_0001>

<llo_original>
// kernel: mul.53
$region0: #{mul.53}
  #allocation0 [shape = 's32[1]{0}', space=sflag, size = 0x4, scoped, tag = 'scoped memory for mul.53']
  %s0 = inlined_call_operand.vmem [shape: f32[1,96], index: 0, kind: input, shape index: {}]
  %s1 = inlined_call_operand.vmem [shape: f32[1,96], index: 1, kind: input, shape index: {}]
  %s2 = inlined_call_operand.vmem [shape: f32[1,96], index: 2, kind: output, shape index: {}]
  %v3 = vld [vmem:[%s0] sm:$0x1]
  %v4 = vld [vmem:[%s1] sm:$0x1]
  %5 = xla_tuple %v3, %v4
  %6 = xla_tuple %5
  %v7 = vmul.f32 %v3, %v4
  %8 = xla_tuple %v7
  %9 = vst [vmem:[%s2] sm:$0x1] %v7

// kernel: token_sample_adapter_forward.1
$region0: #{token_sample_adapter_forward.1}
  #allocation0 [shape = 'u32[]', space=smem, size = 0x4, offset = 0x4, fixed_abs, tag = 'smem constant byte address 0x4 - core index']
  #allocation1 [shape = 'u32[72,128]{1,0:T(1,128)}', space=vmem, size = 0x9000, scoped, tag = 'internal scratch']
  %s0 = inlined_call_operand.smem [shape: u32[32], index: -1, kind: input, shape index: {}]
  %s1 = sld [smem:[%s0]]
  %s2 = scalar_lea.smem %s0, 1
  %s3 = sld [smem:[%s2]]
  %s4 = scalar_lea.smem %s0, 2
  %s5 = sld [smem:[%s4]]
  %s6 = scalar_lea.smem %s0, 3
  %s7 = sld [smem:[%s6]]
  %s8 = scalar_lea.smem %s0, 4
  %s9 = sld [smem:[%s8]]
  %s10 = scalar_lea.smem %s0, 5
  %s11 = sld [smem:[%s10]]
  %s12 = scalar_lea.smem %s0, 6
  %s13 = sld [smem:[%s12]]
  %s14 = scalar_lea.smem %s0, 7
  %s15 = sld [smem:[%s14]]
  %s16 = scalar_lea.smem %s0, 8
  %s17 = sld [smem:[%s16]]
  %s18 = scalar_lea.smem %s0, 9
  %s19 = sld [smem:[%s18]]
  %s20 = scalar_lea.smem %s0, 10
  %s21 = sld [smem:[%s20]]
  %s22 = scalar_lea.smem %s0, 11
  %s23 = sld [smem:[%s22]]
  %s24 = scalar_lea.smem %s0, 12
  %s25 = sld [smem:[%s24]]
  %s26 = scalar_lea.smem %s0, 13
  %s27 = sld [smem:[%s26]]
  %s28 = scalar_lea.smem %s0, 14
  %s29 = sld [smem:[%s28]]
  %s30 = scalar_lea.smem %s0, 15
  %s31 = sld [smem:[%s30]]
  %s32 = scalar_lea.smem %s0, 16
  %s33 = sld [smem:[%s32]]
  %s34 = scalar_lea.smem %s0, 17
  %s35 = sld [smem:[%s34]]
  %s36 = scalar_lea.smem %s0, 18
  %s37 = sld [smem:[%s36]]
  %s38 = scalar_lea.smem %s0, 19
  %s39 = sld [smem:[%s38]]
  %s40 = scalar_lea.smem %s0, 20
  %s41 = sld [smem:[%s40]]
  %s42 = scalar_lea.smem %s0, 21
  %s43 = sld [smem:[%s42]]
  %s44 = scalar_lea.smem %s0, 22
  %s45 = sld [smem:[%s44]]
  %s46 = scalar_lea.smem %s0, 23
  %s47 = sld [smem:[%s46]]
  %s48 = scalar_lea.smem %s0, 24
  %s49 = sld [smem:[%s48]]
  %s50 = scalar_lea.smem %s0, 25
  %s51 = sld [smem:[%s50]]
  %s52 = scalar_lea.smem %s0, 26
  %s53 = sld [smem:[%s52]]
  %s54 = scalar_lea.smem %s0, 27
  %s55 = sld [smem:[%s54]]
  %s56 = scalar_lea.smem %s0, 28
  %s57 = sld [smem:[%s56]]
  %s58 = scalar_lea.smem %s0, 29
  %s59 = sld [smem:[%s58]]
  %s60 = scalar_lea.smem %s0, 30
  %s61 = sld [smem:[%s60]]
  %s62 = scalar_lea.smem %s0, 31
  %s63 = sld [smem:[%s62]]
  %s64 = sld [smem:[#allocation0]]
  $region134: #{token_sample_adapter_forward.1} parent=0
    _
  %s66 = ssub.s32 1, %s64
  %s67 = scalar_select 0, %s66, %s64
  // Predicated region
  $region2: #{token_sample_adapter_forward.1} parent=0 // pred_check
    _
  $region3: #{token_sample_adapter_forward.1} parent=0 // pred_check_branch
    %69 = sbr.rel (0) target = $region5
  $region4: #{token_sample_adapter_forward.1} parent=0 // pred_region
    _
  $region5: #{token_sample_adapter_forward.1} parent=0 // pred_fallthru
    _
  // Predicated region
  $region6: #{token_sample_adapter_forward.1} parent=0 // pred_check
    _
  $region7: #{token_sample_adapter_forward.1} parent=0 // pred_check_branch
    %71 = sbr.rel (0) target = $region9
  $region8: #{token_sample_adapter_forward.1} parent=0 // pred_region
    _
  $region9: #{token_sample_adapter_forward.1} parent=0 // pred_fallthru
    _
  // Predicated region
  $region10: #{token_sample_adapter_forward.1} parent=0 // pred_check
    _
  $region11: #{token_sample_adapter_forward.1} parent=0 // pred_check_branch
    %73 = sbr.rel (0) target = $region13
  $region12: #{token_sample_adapter_forward.1} parent=0 // pred_region
    _
  $region13: #{token_sample_adapter_forward.1} parent=0 // pred_fallthru
    _
  // Predicated region
  $region14: #{token_sample_adapter_forward.1} parent=0 // pred_check
    _
  $region15: #{token_sample_adapter_forward.1} parent=0 // pred_check_branch
    %75 = sbr.rel (0) target = $region17
  $region16: #{token_sample_adapter_forward.1} parent=0 // pred_region
    _
  $region17: #{token_sample_adapter_forward.1} parent=0 // pred_fallthru
    _
  // Predicated region
  $region18: #{token_sample_adapter_forward.1} parent=0 // pred_check
    _
  $region19: #{token_sample_adapter_forward.1} parent=0 // pred_check_branch
    %77 = sbr.rel (0) target = $region21
  $region20: #{token_sample_adapter_forward.1} parent=0 // pred_region
    _
  $region21: #{token_sample_adapter_forward.1} parent=0 // pred_fallthru
    _
  // Predicated region
  $region22: #{token_sample_adapter_forward.1} parent=0 // pred_check
    _
  $region23: #{token_sample_adapter_forward.1} parent=0 // pred_check_branch
    %79 = sbr.rel (0) target = $region25
  $region24: #{token_sample_adapter_forward.1} parent=0 // pred_region
    _
  $region25: #{token_sample_adapter_forward.1} parent=0 // pred_fallthru
    _
  // Predicated region
  $region26: #{token_sample_adapter_forward.1} parent=0 // pred_check
    _
  $region27: #{token_sample_adapter_forward.1} parent=0 // pred_check_branch
    %81 = sbr.rel (0) target = $region29
  $region28: #{token_sample_adapter_forward.1} parent=0 // pred_region
    _
  $region29: #{token_sample_adapter_forward.1} parent=0 // pred_fallthru
    _
  // Predicated region
  $region30: #{token_sample_adapter_forward.1} parent=0 // pred_check
    _
  $region31: #{token_sample_adapter_forward.1} parent=0 // pred_check_branch
    %83 = sbr.rel (0) target = $region33
  $region32: #{token_sample_adapter_forward.1} parent=0 // pred_region
    _
  $region33: #{token_sample_adapter_forward.1} parent=0 // pred_fallthru
    _
  // Predicated region
  $region34: #{token_sample_adapter_forward.1} parent=0 // pred_check
    _
  $region35: #{token_sample_adapter_forward.1} parent=0 // pred_check_branch
    %85 = sbr.rel (0) target = $region37
  $region36: #{token_sample_adapter_forward.1} parent=0 // pred_region
    _
  $region37: #{token_sample_adapter_forward.1} parent=0 // pred_fallthru
    _
  // Predicated region
  $region38: #{token_sample_adapter_forward.1} parent=0 // pred_check
    _
  $region39: #{token_sample_adapter_forward.1} parent=0 // pred_check_branch
    %87 = sbr.rel (0) target = $region41
  $region40: #{token_sample_adapter_forward.1} parent=0 // pred_region
    _
  $region41: #{token_sample_adapter_forward.1} parent=0 // pred_fallthru
    _
  // Predicated region
  $region42: #{token_sample_adapter_forward.1} parent=0 // pred_check
    _
  $region43: #{token_sample_adapter_forward.1} parent=0 // pred_check_branch
    %89 = sbr.rel (0) target = $region45
  $region44: #{token_sample_adapter_forward.1} parent=0 // pred_region
    _
  $region45: #{token_sample_adapter_forward.1} parent=0 // pred_fallthru
    _
  // Predicated region
  $region46: #{token_sample_adapter_forward.1} parent=0 // pred_check
    _
  $region47: #{token_sample_adapter_forward.1} parent=0 // pred_check_branch
    %91 = sbr.rel (0) target = $region49
  $region48: #{token_sample_adapter_forward.1} parent=0 // pred_region
    _
  $region49: #{token_sample_adapter_forward.1} parent=0 // pred_fallthru
    _
  // Predicated region
  $region50: #{token_sample_adapter_forward.1} parent=0 // pred_check
    _
  $region51: #{token_sample_adapter_forward.1} parent=0 // pred_check_branch
    %93 = sbr.rel (0) target = $region53
  $region52: #{token_sample_adapter_forward.1} parent=0 // pred_region
    _
  $region53: #{token_sample_adapter_forward.1} parent=0 // pred_fallthru
    _
  // Predicated region
  $region54: #{token_sample_adapter_forward.1} parent=0 // pred_check
    _
  $region55: #{token_sample_adapter_forward.1} parent=0 // pred_check_branch
    %95 = sbr.rel (0) target = $region57
  $region56: #{token_sample_adapter_forward.1} parent=0 // pred_region
    _
  $region57: #{token_sample_adapter_forward.1} parent=0 // pred_fallthru
    _
  // Predicated region
  $region58: #{token_sample_adapter_forward.1} parent=0 // pred_check
    _
  $region59: #{token_sample_adapter_forward.1} parent=0 // pred_check_branch
    %97 = sbr.rel (0) target = $region61
  $region60: #{token_sample_adapter_forward.1} parent=0 // pred_region
    _
  $region61: #{token_sample_adapter_forward.1} parent=0 // pred_fallthru
    _
  // Predicated region
  $region62: #{token_sample_adapter_forward.1} parent=0 // pred_check
    _
  $region63: #{token_sample_adapter_forward.1} parent=0 // pred_check_branch
    %99 = sbr.rel (0) target = $region65
  $region64: #{token_sample_adapter_forward.1} parent=0 // pred_region
    _
  $region65: #{token_sample_adapter_forward.1} parent=0 // pred_fallthru
    _
  // Predicated region
  $region66: #{token_sample_adapter_forward.1} parent=0 // pred_check
    _
  $region67: #{token_sample_adapter_forward.1} parent=0 // pred_check_branch
    %101 = sbr.rel (0) target = $region69
  $region68: #{token_sample_adapter_forward.1} parent=0 // pred_region
    _
  $region69: #{token_sample_adapter_forward.1} parent=0 // pred_fallthru
    _
  // Predicated region
  $region70: #{token_sample_adapter_forward.1} parent=0 // pred_check
    _
  $region71: #{token_sample_adapter_forward.1} parent=0 // pred_check_branch
    %103 = sbr.rel (0) target = $region73
  $region72: #{token_sample_adapter_forward.1} parent=0 // pred_region
    _
  $region73: #{token_sample_adapter_forward.1} parent=0 // pred_fallthru
    _
  // Predicated region
  $region74: #{token_sample_adapter_forward.1} parent=0 // pred_check
    _
  $region75: #{token_sample_adapter_forward.1} parent=0 // pred_check_branch
    %105 = sbr.rel (0) target = $region77
  $region76: #{token_sample_adapter_forward.1} parent=0 // pred_region
    _
  $region77: #{token_sample_adapter_forward.1} parent=0 // pred_fallthru
    _
  // Predicated region
  $region78: #{token_sample_adapter_forward.1} parent=0 // pred_check
    _
  $region79: #{token_sample_adapter_forward.1} parent=0 // pred_check_branch
    %107 = sbr.rel (0) target = $region81
  $region80: #{token_sample_adapter_forward.1} parent=0 // pred_region
    _
  $region81: #{token_sample_adapter_forward.1} parent=0 // pred_fallthru
    _
  // Predicated region
  $region82: #{token_sample_adapter_forward.1} parent=0 // pred_check
    _
  $region83: #{token_sample_adapter_forward.1} parent=0 // pred_check_branch
    %109 = sbr.rel (0) target = $region85
  $region84: #{token_sample_adapter_forward.1} parent=0 // pred_region
    _
  $region85: #{token_sample_adapter_forward.1} parent=0 // pred_fallthru
    _
  // Predicated region
  $region86: #{token_sample_adapter_forward.1} parent=0 // pred_check
    _
  $region87: #{token_sample_adapter_forward.1} parent=0 // pred_check_branch
    %111 = sbr.rel (0) target = $region89
  $region88: #{token_sample_adapter_forward.1} parent=0 // pred_region
    _
  $region89: #{token_sample_adapter_forward.1} parent=0 // pred_fallthru
    _
  // Predicated region
  $region90: #{token_sample_adapter_forward.1} parent=0 // pred_check
    _
  $region91: #{token_sample_adapter_forward.1} parent=0 // pred_check_branch
    %113 = sbr.rel (0) target = $region93
  $region92: #{token_sample_adapter_forward.1} parent=0 // pred_region
    _
  $region93: #{token_sample_adapter_forward.1} parent=0 // pred_fallthru
    _
  // Predicated region
  $region94: #{token_sample_adapter_forward.1} parent=0 // pred_check
    _
  $region95: #{token_sample_adapter_forward.1} parent=0 // pred_check_branch
    %115 = sbr.rel (0) target = $region97
  $region96: #{token_sample_adapter_forward.1} parent=0 // pred_region
    _
  $region97: #{token_sample_adapter_forward.1} parent=0 // pred_fallthru
    _
  // Predicated region
  $region98: #{token_sample_adapter_forward.1} parent=0 // pred_check
    _
  $region99: #{token_sample_adapter_forward.1} parent=0 // pred_check_branch
    %117 = sbr.rel (0) target = $region101
  $region100: #{token_sample_adapter_forward.1} parent=0 // pred_region
    _
  $region101: #{token_sample_adapter_forward.1} parent=0 // pred_fallthru
    _
  // Predicated region
  $region102: #{token_sample_adapter_forward.1} parent=0 // pred_check
    _
  $region103: #{token_sample_adapter_forward.1} parent=0 // pred_check_branch
    %119 = sbr.rel (0) target = $region105
  $region104: #{token_sample_adapter_forward.1} parent=0 // pred_region
    _
  $region105: #{token_sample_adapter_forward.1} parent=0 // pred_fallthru
    _
  // Predicated region
  $region106: #{token_sample_adapter_forward.1} parent=0 // pred_check
    _
  $region107: #{token_sample_adapter_forward.1} parent=0 // pred_check_branch
    %121 = sbr.rel (0) target = $region109
  $region108: #{token_sample_adapter_forward.1} parent=0 // pred_region
    _
  $region109: #{token_sample_adapter_forward.1} parent=0 // pred_fallthru
    _
  // Predicated region
  $region110: #{token_sample_adapter_forward.1} parent=0 // pred_check
    _
  $region111: #{token_sample_adapter_forward.1} parent=0 // pred_check_branch
    %123 = sbr.rel (0) target = $region113
  $region112: #{token_sample_adapter_forward.1} parent=0 // pred_region
    _
  $region113: #{token_sample_adapter_forward.1} parent=0 // pred_fallthru
    _
  // Predicated region
  $region114: #{token_sample_adapter_forward.1} parent=0 // pred_check
    _
  $region115: #{token_sample_adapter_forward.1} parent=0 // pred_check_branch
    %125 = sbr.rel (0) target = $region117
  $region116: #{token_sample_adapter_forward.1} parent=0 // pred_region
    _
  $region117: #{token_sample_adapter_forward.1} parent=0 // pred_fallthru
    _
  // Predicated region
  $region118: #{token_sample_adapter_forward.1} parent=0 // pred_check
    _
  $region119: #{token_sample_adapter_forward.1} parent=0 // pred_check_branch
    %127 = sbr.rel (0) target = $region121
  $region120: #{token_sample_adapter_forward.1} parent=0 // pred_region
    _
  $region121: #{token_sample_adapter_forward.1} parent=0 // pred_fallthru
    _
  // Predicated region
  $region122: #{token_sample_adapter_forward.1} parent=0 // pred_check
    _
  $region123: #{token_sample_adapter_forward.1} parent=0 // pred_check_branch
    %129 = sbr.rel (0) target = $region125
  $region124: #{token_sample_adapter_forward.1} parent=0 // pred_region
    _
  $region125: #{token_sample_adapter_forward.1} parent=0 // pred_fallthru
    _
  %v131 = vld [vmem:[%s1] sm:$0xf]
  %v132 = vld [vmem:[%s1 + $0x4] sm:$0xf]
  %v133 = vld [vmem:[%s1 + $0x8] sm:$0xf]
  %v134 = vld [vmem:[%s1 + $0xc] sm:$0xf]
  %v135 = vld [vmem:[%s1 + $0x10] sm:$0xf]
  %v136 = vld [vmem:[%s1 + $0x14] sm:$0xf]
  %v137 = vld [vmem:[%s1 + $0x18] sm:$0xf]
  %v138 = vld [vmem:[%s1 + $0x1c] sm:$0xf]
  %v139 = vld [vmem:[%s1 + $0x20] sm:$0xf]
  %v140 = vld [vmem:[%s1 + $0x24] sm:$0xf]
  %v141 = vld [vmem:[%s1 + $0x28] sm:$0xf]
  %v142 = vld [vmem:[%s1 + $0x2c] sm:$0xf]
  %v143 = vld [vmem:[%s1 + $0x30] sm:$0xf]
  %v144 = vld [vmem:[%s1 + $0x34] sm:$0xf]
  %v145 = vld [vmem:[%s1 + $0x38] sm:$0xf]
  %v146 = vld [vmem:[%s1 + $0x3c] sm:$0xf]
  %v147 = vld [vmem:[%s1 + $0x40] sm:$0xf]
  %v148 = vld [vmem:[%s1 + $0x44] sm:$0xf]
  %v149 = vld [vmem:[%s1 + $0x48] sm:$0xf]
  %v150 = vld [vmem:[%s1 + $0x4c] sm:$0xf]
  %v151 = vld [vmem:[%s1 + $0x50] sm:$0xf]
  %v152 = vld [vmem:[%s1 + $0x54] sm:$0xf]
  %v153 = vld [vmem:[%s1 + $0x58] sm:$0xf]
  %v154 = vld [vmem:[%s1 + $0x5c] sm:$0xf]
  %v155 = vld [vmem:[%s15] sm:$0xf]
  %v156 = vld [vmem:[%s15 + $0x4] sm:$0xf]
  %v157 = vld [vmem:[%s15 + $0x8] sm:$0xf]
  %v158 = vld [vmem:[%s15 + $0xc] sm:$0xf]
  %v159 = vld [vmem:[%s17] sm:$0x1]
  %v161 = vperm.slane %v159, 0
  %v187 = vunpack.c.l.b16 %v131
  %v188 = vunpack.c.l.b16 %v132
  %v189 = vunpack.c.l.b16 %v133
  %v190 = vunpack.c.l.b16 %v134
  %v191 = vunpack.c.l.b16 %v135
  %v192 = vunpack.c.l.b16 %v136
  %v193 = vunpack.c.l.b16 %v137
  %v194 = vunpack.c.l.b16 %v138
  %v195 = vunpack.c.l.b16 %v139
  %v196 = vunpack.c.l.b16 %v140
  %v197 = vunpack.c.l.b16 %v141
  %v198 = vunpack.c.l.b16 %v142
  %v199 = vunpack.c.l.b16 %v143
  %v200 = vunpack.c.l.b16 %v144
  %v201 = vunpack.c.l.b16 %v145
  %v202 = vunpack.c.l.b16 %v146
  %v203 = vunpack.c.l.b16 %v147
  %v204 = vunpack.c.l.b16 %v148
  %v205 = vunpack.c.l.b16 %v149
  %v206 = vunpack.c.l.b16 %v150
  %v207 = vunpack.c.l.b16 %v151
  %v208 = vunpack.c.l.b16 %v152
  %v209 = vunpack.c.l.b16 %v153
  %v210 = vunpack.c.l.b16 %v154
  %v211 = vpack.c.b16 %v188, %v187
  %v212 = vpack.c.b16 %v190, %v189
  %v213 = vpack.c.b16 %v192, %v191
  %v214 = vpack.c.b16 %v194, %v193
  %v215 = vpack.c.b16 %v196, %v195
  %v216 = vpack.c.b16 %v198, %v197
  %v217 = vpack.c.b16 %v200, %v199
  %v218 = vpack.c.b16 %v202, %v201
  %v219 = vpack.c.b16 %v204, %v203
  %v220 = vpack.c.b16 %v206, %v205
  %v221 = vpack.c.b16 %v208, %v207
  %v222 = vpack.c.b16 %v210, %v209
  %v227 = vunpack.c.l.b16 %v155
  %v228 = vunpack.c.l.b16 %v156
  %v229 = vunpack.c.l.b16 %v157
  %v230 = vunpack.c.l.b16 %v158
  %v231 = vpack.c.b16 %v228, %v227
  %v232 = vpack.c.b16 %v230, %v229
  %vm235 = vcmask 261120
  %v237 = vsel %vm235, %v211, 0
  %v240 = vsel %vm235, %v212, 0
  %v243 = vsel %vm235, %v213, 0
  %v246 = vsel %vm235, %v214, 0
  %v249 = vsel %vm235, %v215, 0
  %v252 = vsel %vm235, %v216, 0
  %v255 = vsel %vm235, %v217, 0
  %v258 = vsel %vm235, %v218, 0
  %v261 = vsel %vm235, %v219, 0
  %v264 = vsel %vm235, %v220, 0
  %v267 = vsel %vm235, %v221, 0
  %v270 = vsel %vm235, %v222, 0
  %272 = vmatpush.bf16.msra.mxu0 0
  %273 = vmatpush.bf16.msra.mxu0 0
  %274 = vmatpush.bf16.msra.mxu0 0
  %275 = vmatpush.bf16.msra.mxu0 0
  %276 = vmatpush.bf16.msra.mxu0 0
  %277 = vmatpush.bf16.msra.mxu0 0
  %278 = vmatpush.bf16.msra.mxu0 %v232
  %279 = vmatpush.bf16.msra.mxu0 %v231
  %280 = vmatmul.bf16.gmra.mxu0 %v237
  %v281 = vpop.f32.mrf.mxu0
  %v282 = vadd.f32 %v161, %v281
  %v283 = vpop.f32.mrf.mxu0
  %v284 = vadd.f32 %v161, %v283
  %285 = vmatmul.bf16.gmra.mxu0 %v240
  %v286 = vpop.f32.mrf.mxu0
  %v287 = vadd.f32 %v161, %v286
  %v288 = vpop.f32.mrf.mxu0
  %v289 = vadd.f32 %v161, %v288
  %290 = vmatmul.bf16.gmra.mxu0 %v243
  %v291 = vpop.f32.mrf.mxu0
  %v292 = vadd.f32 %v161, %v291
  %v293 = vpop.f32.mrf.mxu0
  %v294 = vadd.f32 %v161, %v293
  %295 = vmatmul.bf16.gmra.mxu0 %v246
  %v296 = vpop.f32.mrf.mxu0
  %v297 = vadd.f32 %v161, %v296
  %v298 = vpop.f32.mrf.mxu0
  %v299 = vadd.f32 %v161, %v298
  %300 = vmatmul.bf16.gmra.mxu0 %v249
  %v301 = vpop.f32.mrf.mxu0
  %v302 = vadd.f32 %v161, %v301
  %v303 = vpop.f32.mrf.mxu0
  %v304 = vadd.f32 %v161, %v303
  %305 = vmatmul.bf16.gmra.mxu0 %v252
  %v306 = vpop.f32.mrf.mxu0
  %v307 = vadd.f32 %v161, %v306
  %v308 = vpop.f32.mrf.mxu0
  %v309 = vadd.f32 %v161, %v308
  %310 = vmatmul.bf16.gmra.mxu0 %v255
  %v311 = vpop.f32.mrf.mxu0
  %v312 = vadd.f32 %v161, %v311
  %v313 = vpop.f32.mrf.mxu0
  %v314 = vadd.f32 %v161, %v313
  %315 = vmatmul.bf16.gmra.mxu0 %v258
  %v316 = vpop.f32.mrf.mxu0
  %v317 = vadd.f32 %v161, %v316
  %v318 = vpop.f32.mrf.mxu0
  %v319 = vadd.f32 %v161, %v318
  %320 = vmatmul.bf16.gmra.mxu0 %v261
  %v321 = vpop.f32.mrf.mxu0
  %v322 = vadd.f32 %v161, %v321
  %v323 = vpop.f32.mrf.mxu0
  %v324 = vadd.f32 %v161, %v323
  %325 = vmatmul.bf16.gmra.mxu0 %v264
  %v326 = vpop.f32.mrf.mxu0
  %v327 = vadd.f32 %v161, %v326
  %v328 = vpop.f32.mrf.mxu0
  %v329 = vadd.f32 %v161, %v328
  %330 = vmatmul.bf16.gmra.mxu0 %v267
  %v331 = vpop.f32.mrf.mxu0
  %v332 = vadd.f32 %v161, %v331
  %v333 = vpop.f32.mrf.mxu0
  %v334 = vadd.f32 %v161, %v333
  %335 = vmatmul.bf16.gmra.mxu0 %v270
  %v336 = vpop.f32.mrf.mxu0
  %v337 = vadd.f32 %v161, %v336
  %v338 = vpop.f32.mrf.mxu0
  %v339 = vadd.f32 %v161, %v338
  %340 = vdwg.mxu0
  %v341 = vld [vmem:[%s3] sm:$0xf]
  %v342 = vld [vmem:[%s3 + $0x4] sm:$0xf]
  %v343 = vld [vmem:[%s3 + $0x8] sm:$0xf]
  %v344 = vld [vmem:[%s11] sm:$0xf]
  %v345 = vld [vmem:[%s11 + $0x4] sm:$0xf]
  %v346 = vld [vmem:[%s11 + $0x8] sm:$0xf]
  %v347 = vld [vmem:[%s11 + $0xc] sm:$0xf]
  %v348 = vld [vmem:[%s13] sm:$0x1]
  %v350 = vperm.slane %v348, 0
  %v355 = vunpack.c.l.b16 %v341
  %v356 = vunpack.c.l.b16 %v342
  %v357 = vunpack.c.l.b16 %v343
  %v358 = vpack.c.b16 %v356, %v355
  %v359 = vpack.c.b16 %v357, %v357
  %v364 = vunpack.c.l.b16 %v344
  %v365 = vunpack.c.l.b16 %v345
  %v366 = vunpack.c.l.b16 %v346
  %v367 = vunpack.c.l.b16 %v347
  %v368 = vpack.c.b16 %v365, %v364
  %v369 = vpack.c.b16 %v367, %v366
  %v373 = vsel %vm235, %v358, 0
  %v376 = vsel %vm235, %v359, 0
  %378 = vmatpush.bf16.msra.mxu0 0
  %379 = vmatpush.bf16.msra.mxu0 0
  %380 = vmatpush.bf16.msra.mxu0 0
  %381 = vmatpush.bf16.msra.mxu0 0
  %382 = vmatpush.bf16.msra.mxu0 0
  %383 = vmatpush.bf16.msra.mxu0 0
  %384 = vmatpush.bf16.msra.mxu0 %v369
  %385 = vmatpush.bf16.msra.mxu0 %v368
  %386 = vmatmul.bf16.gmra.mxu0 %v373
  %v387 = vpop.f32.mrf.mxu0
  %v388 = vadd.f32 %v350, %v387
  %v389 = vpop.f32.mrf.mxu0
  %v390 = vadd.f32 %v350, %v389
  %391 = vmatmul.bf16.gmra.mxu0 %v376
  %v392 = vpop.f32.mrf.mxu0
  %v393 = vadd.f32 %v350, %v392
  %v394 = vpop.f32.mrf.mxu0
  %395 = vdwg.mxu0
  %v399 = vrot.slane %v388, 1
  %v400 = vrot.slane %v388, 2
  %v401 = vrot.slane %v388, 3
  %v402 = vrot.slane %v388, 4
  %v403 = vrot.slane %v388, 5
  %v404 = vrot.slane %v388, 6
  %v405 = vrot.slane %v388, 7
  %v406 = vrot.slane %v390, 1
  %v407 = vrot.slane %v390, 2
  %v408 = vrot.slane %v390, 3
  %v409 = vrot.slane %v390, 4
  %v410 = vrot.slane %v390, 5
  %v411 = vrot.slane %v390, 6
  %v412 = vrot.slane %v390, 7
  %v413 = vrot.slane %v393, 1
  %v414 = vrot.slane %v393, 2
  %v415 = vrot.slane %v393, 3
  %v416 = vrot.slane %v393, 4
  %v417 = vrot.slane %v393, 5
  %v418 = vrot.slane %v393, 6
  %v419 = vrot.slane %v393, 7
  %v420 = vperm.slane %v388, 0
  %v421 = vperm.slane %v399, 0
  %v422 = vperm.slane %v400, 0
  %v423 = vperm.slane %v401, 0
  %v424 = vperm.slane %v402, 0
  %v425 = vperm.slane %v403, 0
  %v426 = vperm.slane %v404, 0
  %v427 = vperm.slane %v405, 0
  %v428 = vperm.slane %v390, 0
  %v429 = vperm.slane %v406, 0
  %v430 = vperm.slane %v407, 0
  %v431 = vperm.slane %v408, 0
  %v432 = vperm.slane %v409, 0
  %v433 = vperm.slane %v410, 0
  %v434 = vperm.slane %v411, 0
  %v435 = vperm.slane %v412, 0
  %v436 = vperm.slane %v393, 0
  %v437 = vperm.slane %v413, 0
  %v438 = vperm.slane %v414, 0
  %v439 = vperm.slane %v415, 0
  %v440 = vperm.slane %v416, 0
  %v441 = vperm.slane %v417, 0
  %v442 = vperm.slane %v418, 0
  %v443 = vperm.slane %v419, 0
  %v468 = vmul.f32 %v420, %v282
  %v469 = vmul.f32 %v421, %v284
  %v470 = vmul.f32 %v422, %v287
  %v471 = vmul.f32 %v423, %v289
  %v472 = vmul.f32 %v424, %v292
  %v473 = vmul.f32 %v425, %v294
  %v474 = vmul.f32 %v426, %v297
  %v475 = vmul.f32 %v427, %v299
  %v476 = vmul.f32 %v428, %v302
  %v477 = vmul.f32 %v429, %v304
  %v478 = vmul.f32 %v430, %v307
  %v479 = vmul.f32 %v431, %v309
  %v480 = vmul.f32 %v432, %v312
  %v481 = vmul.f32 %v433, %v314
  %v482 = vmul.f32 %v434, %v317
  %v483 = vmul.f32 %v435, %v319
  %v484 = vmul.f32 %v436, %v322
  %v485 = vmul.f32 %v437, %v324
  %v486 = vmul.f32 %v438, %v327
  %v487 = vmul.f32 %v439, %v329
  %v488 = vmul.f32 %v440, %v332
  %v489 = vmul.f32 %v441, %v334
  %v490 = vmul.f32 %v442, %v337
  %v491 = vmul.f32 %v443, %v339
  %v492 = vpack.c.bf16 %v469, %v468
  %v493 = vpack.c.bf16 %v471, %v470
  %v494 = vpack.c.bf16 %v473, %v472
  %v495 = vpack.c.bf16 %v475, %v474
  %v496 = vpack.c.bf16 %v477, %v476
  %v497 = vpack.c.bf16 %v479, %v478
  %v498 = vpack.c.bf16 %v481, %v480
  %v499 = vpack.c.bf16 %v483, %v482
  %v500 = vpack.c.bf16 %v485, %v484
  %v501 = vpack.c.bf16 %v487, %v486
  %v502 = vpack.c.bf16 %v489, %v488
  %v503 = vpack.c.bf16 %v491, %v490
  %v504 = vld [vmem:[%s7] sm:$0xf]
  %v505 = vld [vmem:[%s7 + $0x4] sm:$0xf]
  %v506 = vld [vmem:[%s7 + $0x8] sm:$0xf]
  %v507 = vld [vmem:[%s7 + $0xc] sm:$0xf]
  %v512 = vunpack.c.l.b16 %v504
  %v513 = vunpack.c.l.b16 %v505
  %v514 = vunpack.c.l.b16 %v506
  %v515 = vunpack.c.l.b16 %v507
  %v516 = vpack.c.b16 %v513, %v512
  %v517 = vpack.c.b16 %v515, %v514
  %v521 = vsel %vm235, %v492, 0
  %v524 = vsel %vm235, %v493, 0
  %v527 = vsel %vm235, %v494, 0
  %v530 = vsel %vm235, %v495, 0
  %v533 = vsel %vm235, %v496, 0
  %v536 = vsel %vm235, %v497, 0
  %v539 = vsel %vm235, %v498, 0
  %v542 = vsel %vm235, %v499, 0
  %v545 = vsel %vm235, %v500, 0
  %v548 = vsel %vm235, %v501, 0
  %v551 = vsel %vm235, %v502, 0
  %v554 = vsel %vm235, %v503, 0
  %556 = vmatpush.bf16.msra.mxu0 0
  %557 = vmatpush.bf16.msra.mxu0 0
  %558 = vmatpush.bf16.msra.mxu0 0
  %559 = vmatpush.bf16.msra.mxu0 0
  %560 = vmatpush.bf16.msra.mxu0 0
  %561 = vmatpush.bf16.msra.mxu0 0
  %562 = vmatpush.bf16.msra.mxu0 %v517
  %563 = vmatpush.bf16.msra.mxu0 %v516
  %564 = vmatmul.bf16.gmra.mxu0 %v521
  %v565 = vpop.f32.mrf.mxu0
  %v566 = vadd.f32 0.0, %v565
  %v567 = vpop.f32.mrf.mxu0
  %v568 = vadd.f32 0.0, %v567
  %569 = vmatmul.bf16.gmra.mxu0 %v524
  %v570 = vpop.f32.mrf.mxu0
  %v571 = vadd.f32 0.0, %v570
  %v572 = vpop.f32.mrf.mxu0
  %v573 = vadd.f32 0.0, %v572
  %574 = vmatmul.bf16.gmra.mxu0 %v527
  %v575 = vpop.f32.mrf.mxu0
  %v576 = vadd.f32 0.0, %v575
  %v577 = vpop.f32.mrf.mxu0
  %v578 = vadd.f32 0.0, %v577
  %579 = vmatmul.bf16.gmra.mxu0 %v530
  %v580 = vpop.f32.mrf.mxu0
  %v581 = vadd.f32 0.0, %v580
  %v582 = vpop.f32.mrf.mxu0
  %v583 = vadd.f32 0.0, %v582
  %584 = vmatmul.bf16.gmra.mxu0 %v533
  %v585 = vpop.f32.mrf.mxu0
  %v586 = vadd.f32 0.0, %v585
  %v587 = vpop.f32.mrf.mxu0
  %v588 = vadd.f32 0.0, %v587
  %589 = vmatmul.bf16.gmra.mxu0 %v536
  %v590 = vpop.f32.mrf.mxu0
  %v591 = vadd.f32 0.0, %v590
  %v592 = vpop.f32.mrf.mxu0
  %v593 = vadd.f32 0.0, %v592
  %594 = vmatmul.bf16.gmra.mxu0 %v539
  %v595 = vpop.f32.mrf.mxu0
  %v596 = vadd.f32 0.0, %v595
  %v597 = vpop.f32.mrf.mxu0
  %v598 = vadd.f32 0.0, %v597
  %599 = vmatmul.bf16.gmra.mxu0 %v542
  %v600 = vpop.f32.mrf.mxu0
  %v601 = vadd.f32 0.0, %v600
  %v602 = vpop.f32.mrf.mxu0
  %v603 = vadd.f32 0.0, %v602
  %604 = vmatmul.bf16.gmra.mxu0 %v545
  %v605 = vpop.f32.mrf.mxu0
  %v606 = vadd.f32 0.0, %v605
  %v607 = vpop.f32.mrf.mxu0
  %v608 = vadd.f32 0.0, %v607
  %609 = vmatmul.bf16.gmra.mxu0 %v548
  %v610 = vpop.f32.mrf.mxu0
  %v611 = vadd.f32 0.0, %v610
  %v612 = vpop.f32.mrf.mxu0
  %v613 = vadd.f32 0.0, %v612
  %614 = vmatmul.bf16.gmra.mxu0 %v551
  %v615 = vpop.f32.mrf.mxu0
  %v616 = vadd.f32 0.0, %v615
  %v617 = vpop.f32.mrf.mxu0
  %v618 = vadd.f32 0.0, %v617
  %619 = vmatmul.bf16.gmra.mxu0 %v554
  %v620 = vpop.f32.mrf.mxu0
  %v621 = vadd.f32 0.0, %v620
  %v622 = vpop.f32.mrf.mxu0
  %v623 = vadd.f32 0.0, %v622
  %624 = vdwg.mxu0
  %v625 = vld [vmem:[%s5] sm:$0xff]
  %v626 = vld [vmem:[%s5 + $0x8] sm:$0xff]
  %v627 = vld [vmem:[%s5 + $0x10] sm:$0xff]
  %v628 = vld [vmem:[%s5 + $0x18] sm:$0xff]
  %v629 = vld [vmem:[%s5 + $0x20] sm:$0xff]
  %v630 = vld [vmem:[%s5 + $0x28] sm:$0xff]
  %v631 = vld [vmem:[%s5 + $0x30] sm:$0xff]
  %v632 = vld [vmem:[%s5 + $0x38] sm:$0xff]
  %v633 = vld [vmem:[%s5 + $0x40] sm:$0xff]
  %v634 = vld [vmem:[%s5 + $0x48] sm:$0xff]
  %v635 = vld [vmem:[%s5 + $0x50] sm:$0xff]
  %v636 = vld [vmem:[%s5 + $0x58] sm:$0xff]
  %v637 = vld [vmem:[%s5 + $0x60] sm:$0xff]
  %v638 = vld [vmem:[%s5 + $0x68] sm:$0xff]
  %v639 = vld [vmem:[%s5 + $0x70] sm:$0xff]
  %v640 = vld [vmem:[%s5 + $0x78] sm:$0xff]
  %v641 = vld [vmem:[%s5 + $0x80] sm:$0xff]
  %v642 = vld [vmem:[%s5 + $0x88] sm:$0xff]
  %v643 = vld [vmem:[%s5 + $0x90] sm:$0xff]
  %v644 = vld [vmem:[%s5 + $0x98] sm:$0xff]
  %v645 = vld [vmem:[%s5 + $0xa0] sm:$0xff]
  %v646 = vld [vmem:[%s5 + $0xa8] sm:$0xff]
  %v647 = vld [vmem:[%s5 + $0xb0] sm:$0xff]
  %v648 = vld [vmem:[%s5 + $0xb8] sm:$0xff]
  %650 = vset.pattern.permute.xlu0 0
  %651 = vperm.xlu0 %650, %v625
  %v652 = vpop.permute.xlu0 %651
  %655 = vset.pattern.permute.xlu0 0
  %656 = vperm.xlu0 %655, %v626
  %v657 = vpop.permute.xlu0 %656
  %660 = vset.pattern.permute.xlu0 0
  %661 = vperm.xlu0 %660, %v627
  %v662 = vpop.permute.xlu0 %661
  %665 = vset.pattern.permute.xlu0 0
  %666 = vperm.xlu0 %665, %v628
  %v667 = vpop.permute.xlu0 %666
  %670 = vset.pattern.permute.xlu0 0
  %671 = vperm.xlu0 %670, %v629
  %v672 = vpop.permute.xlu0 %671
  %675 = vset.pattern.permute.xlu0 0
  %676 = vperm.xlu0 %675, %v630
  %v677 = vpop.permute.xlu0 %676
  %680 = vset.pattern.permute.xlu0 0
  %681 = vperm.xlu0 %680, %v631
  %v682 = vpop.permute.xlu0 %681
  %685 = vset.pattern.permute.xlu0 0
  %686 = vperm.xlu0 %685, %v632
  %v687 = vpop.permute.xlu0 %686
  %690 = vset.pattern.permute.xlu0 0
  %691 = vperm.xlu0 %690, %v633
  %v692 = vpop.permute.xlu0 %691
  %695 = vset.pattern.permute.xlu0 0
  %696 = vperm.xlu0 %695, %v634
  %v697 = vpop.permute.xlu0 %696
  %700 = vset.pattern.permute.xlu0 0
  %701 = vperm.xlu0 %700, %v635
  %v702 = vpop.permute.xlu0 %701
  %705 = vset.pattern.permute.xlu0 0
  %706 = vperm.xlu0 %705, %v636
  %v707 = vpop.permute.xlu0 %706
  %710 = vset.pattern.permute.xlu0 0
  %711 = vperm.xlu0 %710, %v637
  %v712 = vpop.permute.xlu0 %711
  %715 = vset.pattern.permute.xlu0 0
  %716 = vperm.xlu0 %715, %v638
  %v717 = vpop.permute.xlu0 %716
  %720 = vset.pattern.permute.xlu0 0
  %721 = vperm.xlu0 %720, %v639
  %v722 = vpop.permute.xlu0 %721
  %725 = vset.pattern.permute.xlu0 0
  %726 = vperm.xlu0 %725, %v640
  %v727 = vpop.permute.xlu0 %726
  %730 = vset.pattern.permute.xlu0 0
  %731 = vperm.xlu0 %730, %v641
  %v732 = vpop.permute.xlu0 %731
  %735 = vset.pattern.permute.xlu0 0
  %736 = vperm.xlu0 %735, %v642
  %v737 = vpop.permute.xlu0 %736
  %740 = vset.pattern.permute.xlu0 0
  %741 = vperm.xlu0 %740, %v643
  %v742 = vpop.permute.xlu0 %741
  %745 = vset.pattern.permute.xlu0 0
  %746 = vperm.xlu0 %745, %v644
  %v747 = vpop.permute.xlu0 %746
  %750 = vset.pattern.permute.xlu0 0
  %751 = vperm.xlu0 %750, %v645
  %v752 = vpop.permute.xlu0 %751
  %755 = vset.pattern.permute.xlu0 0
  %756 = vperm.xlu0 %755, %v646
  %v757 = vpop.permute.xlu0 %756
  %760 = vset.pattern.permute.xlu0 0
  %761 = vperm.xlu0 %760, %v647
  %v762 = vpop.permute.xlu0 %761
  %765 = vset.pattern.permute.xlu0 0
  %766 = vperm.xlu0 %765, %v648
  %v767 = vpop.permute.xlu0 %766
  %v769 = vadd.f32 %v566, %v652
  %v770 = vadd.f32 %v568, %v657
  %v771 = vadd.f32 %v571, %v662
  %v772 = vadd.f32 %v573, %v667
  %v773 = vadd.f32 %v576, %v672
  %v774 = vadd.f32 %v578, %v677
  %v775 = vadd.f32 %v581, %v682
  %v776 = vadd.f32 %v583, %v687
  %v777 = vadd.f32 %v586, %v692
  %v778 = vadd.f32 %v588, %v697
  %v779 = vadd.f32 %v591, %v702
  %v780 = vadd.f32 %v593, %v707
  %v781 = vadd.f32 %v596, %v712
  %v782 = vadd.f32 %v598, %v717
  %v783 = vadd.f32 %v601, %v722
  %v784 = vadd.f32 %v603, %v727
  %v785 = vadd.f32 %v606, %v732
  %v786 = vadd.f32 %v608, %v737
  %v787 = vadd.f32 %v611, %v742
  %v788 = vadd.f32 %v613, %v747
  %v789 = vadd.f32 %v616, %v752
  %v790 = vadd.f32 %v618, %v757
  %v791 = vadd.f32 %v621, %v762
  %v792 = vadd.f32 %v623, %v767
  %vm793 = vcmask 64512
  %v794 = vsel %vm793, %v769, -inf
  %v795 = vrot.slane %v794, 4
  %v796 = vmax.f32 %v794, %v795
  %v797 = vrot.slane %v796, 2
  %v798 = vmax.f32 %v796, %v797
  %v799 = vrot.slane %v798, 1
  %v800 = vmax.f32 %v798, %v799
  %v801 = vsel %vm793, %v770, -inf
  %v802 = vrot.slane %v801, 4
  %v803 = vmax.f32 %v801, %v802
  %v804 = vrot.slane %v803, 2
  %v805 = vmax.f32 %v803, %v804
  %v806 = vrot.slane %v805, 1
  %v807 = vmax.f32 %v805, %v806
  %v808 = vsel %vm793, %v771, -inf
  %v809 = vrot.slane %v808, 4
  %v810 = vmax.f32 %v808, %v809
  %v811 = vrot.slane %v810, 2
  %v812 = vmax.f32 %v810, %v811
  %v813 = vrot.slane %v812, 1
  %v814 = vmax.f32 %v812, %v813
  %v815 = vsel %vm793, %v772, -inf
  %v816 = vrot.slane %v815, 4
  %v817 = vmax.f32 %v815, %v816
  %v818 = vrot.slane %v817, 2
  %v819 = vmax.f32 %v817, %v818
  %v820 = vrot.slane %v819, 1
  %v821 = vmax.f32 %v819, %v820
  %v822 = vsel %vm793, %v773, -inf
  %v823 = vrot.slane %v822, 4
  %v824 = vmax.f32 %v822, %v823
  %v825 = vrot.slane %v824, 2
  %v826 = vmax.f32 %v824, %v825
  %v827 = vrot.slane %v826, 1
  %v828 = vmax.f32 %v826, %v827
  %v829 = vsel %vm793, %v774, -inf
  %v830 = vrot.slane %v829, 4
  %v831 = vmax.f32 %v829, %v830
  %v832 = vrot.slane %v831, 2
  %v833 = vmax.f32 %v831, %v832
  %v834 = vrot.slane %v833, 1
  %v835 = vmax.f32 %v833, %v834
  %v836 = vsel %vm793, %v775, -inf
  %v837 = vrot.slane %v836, 4
  %v838 = vmax.f32 %v836, %v837
  %v839 = vrot.slane %v838, 2
  %v840 = vmax.f32 %v838, %v839
  %v841 = vrot.slane %v840, 1
  %v842 = vmax.f32 %v840, %v841
  %v843 = vsel %vm793, %v776, -inf
  %v844 = vrot.slane %v843, 4
  %v845 = vmax.f32 %v843, %v844
  %v846 = vrot.slane %v845, 2
  %v847 = vmax.f32 %v845, %v846
  %v848 = vrot.slane %v847, 1
  %v849 = vmax.f32 %v847, %v848
  %v850 = vsel %vm793, %v777, -inf
  %v851 = vrot.slane %v850, 4
  %v852 = vmax.f32 %v850, %v851
  %v853 = vrot.slane %v852, 2
  %v854 = vmax.f32 %v852, %v853
  %v855 = vrot.slane %v854, 1
  %v856 = vmax.f32 %v854, %v855
  %v857 = vsel %vm793, %v778, -inf
  %v858 = vrot.slane %v857, 4
  %v859 = vmax.f32 %v857, %v858
  %v860 = vrot.slane %v859, 2
  %v861 = vmax.f32 %v859, %v860
  %v862 = vrot.slane %v861, 1
  %v863 = vmax.f32 %v861, %v862
  %v864 = vsel %vm793, %v779, -inf
  %v865 = vrot.slane %v864, 4
  %v866 = vmax.f32 %v864, %v865
  %v867 = vrot.slane %v866, 2
  %v868 = vmax.f32 %v866, %v867
  %v869 = vrot.slane %v868, 1
  %v870 = vmax.f32 %v868, %v869
  %v871 = vsel %vm793, %v780, -inf
  %v872 = vrot.slane %v871, 4
  %v873 = vmax.f32 %v871, %v872
  %v874 = vrot.slane %v873, 2
  %v875 = vmax.f32 %v873, %v874
  %v876 = vrot.slane %v875, 1
  %v877 = vmax.f32 %v875, %v876
  %v878 = vsel %vm793, %v781, -inf
  %v879 = vrot.slane %v878, 4
  %v880 = vmax.f32 %v878, %v879
  %v881 = vrot.slane %v880, 2
  %v882 = vmax.f32 %v880, %v881
  %v883 = vrot.slane %v882, 1
  %v884 = vmax.f32 %v882, %v883
  %v885 = vsel %vm793, %v782, -inf
  %v886 = vrot.slane %v885, 4
  %v887 = vmax.f32 %v885, %v886
  %v888 = vrot.slane %v887, 2
  %v889 = vmax.f32 %v887, %v888
  %v890 = vrot.slane %v889, 1
  %v891 = vmax.f32 %v889, %v890
  %v892 = vsel %vm793, %v783, -inf
  %v893 = vrot.slane %v892, 4
  %v894 = vmax.f32 %v892, %v893
  %v895 = vrot.slane %v894, 2
  %v896 = vmax.f32 %v894, %v895
  %v897 = vrot.slane %v896, 1
  %v898 = vmax.f32 %v896, %v897
  %v899 = vsel %vm793, %v784, -inf
  %v900 = vrot.slane %v899, 4
  %v901 = vmax.f32 %v899, %v900
  %v902 = vrot.slane %v901, 2
  %v903 = vmax.f32 %v901, %v902
  %v904 = vrot.slane %v903, 1
  %v905 = vmax.f32 %v903, %v904
  %v906 = vsel %vm793, %v785, -inf
  %v907 = vrot.slane %v906, 4
  %v908 = vmax.f32 %v906, %v907
  %v909 = vrot.slane %v908, 2
  %v910 = vmax.f32 %v908, %v909
  %v911 = vrot.slane %v910, 1
  %v912 = vmax.f32 %v910, %v911
  %v913 = vsel %vm793, %v786, -inf
  %v914 = vrot.slane %v913, 4
  %v915 = vmax.f32 %v913, %v914
  %v916 = vrot.slane %v915, 2
  %v917 = vmax.f32 %v915, %v916
  %v918 = vrot.slane %v917, 1
  %v919 = vmax.f32 %v917, %v918
  %v920 = vsel %vm793, %v787, -inf
  %v921 = vrot.slane %v920, 4
  %v922 = vmax.f32 %v920, %v921
  %v923 = vrot.slane %v922, 2
  %v924 = vmax.f32 %v922, %v923
  %v925 = vrot.slane %v924, 1
  %v926 = vmax.f32 %v924, %v925
  %v927 = vsel %vm793, %v788, -inf
  %v928 = vrot.slane %v927, 4
  %v929 = vmax.f32 %v927, %v928
  %v930 = vrot.slane %v929, 2
  %v931 = vmax.f32 %v929, %v930
  %v932 = vrot.slane %v931, 1
  %v933 = vmax.f32 %v931, %v932
  %v934 = vsel %vm793, %v789, -inf
  %v935 = vrot.slane %v934, 4
  %v936 = vmax.f32 %v934, %v935
  %v937 = vrot.slane %v936, 2
  %v938 = vmax.f32 %v936, %v937
  %v939 = vrot.slane %v938, 1
  %v940 = vmax.f32 %v938, %v939
  %v941 = vsel %vm793, %v790, -inf
  %v942 = vrot.slane %v941, 4
  %v943 = vmax.f32 %v941, %v942
  %v944 = vrot.slane %v943, 2
  %v945 = vmax.f32 %v943, %v944
  %v946 = vrot.slane %v945, 1
  %v947 = vmax.f32 %v945, %v946
  %v948 = vsel %vm793, %v791, -inf
  %v949 = vrot.slane %v948, 4
  %v950 = vmax.f32 %v948, %v949
  %v951 = vrot.slane %v950, 2
  %v952 = vmax.f32 %v950, %v951
  %v953 = vrot.slane %v952, 1
  %v954 = vmax.f32 %v952, %v953
  %v955 = vsel %vm793, %v792, -inf
  %v956 = vrot.slane %v955, 4
  %v957 = vmax.f32 %v955, %v956
  %v958 = vrot.slane %v957, 2
  %v959 = vmax.f32 %v957, %v958
  %v960 = vrot.slane %v959, 1
  %v961 = vmax.f32 %v959, %v960
  %v962 = vsub.f32 %v769, %v800
  %v963 = vsub.f32 %v770, %v807
  %v964 = vsub.f32 %v771, %v814
  %v965 = vsub.f32 %v772, %v821
  %v966 = vsub.f32 %v773, %v828
  %v967 = vsub.f32 %v774, %v835
  %v968 = vsub.f32 %v775, %v842
  %v969 = vsub.f32 %v776, %v849
  %v970 = vsub.f32 %v777, %v856
  %v971 = vsub.f32 %v778, %v863
  %v972 = vsub.f32 %v779, %v870
  %v973 = vsub.f32 %v780, %v877
  %v974 = vsub.f32 %v781, %v884
  %v975 = vsub.f32 %v782, %v891
  %v976 = vsub.f32 %v783, %v898
  %v977 = vsub.f32 %v784, %v905
  %v978 = vsub.f32 %v785, %v912
  %v979 = vsub.f32 %v786, %v919
  %v980 = vsub.f32 %v787, %v926
  %v981 = vsub.f32 %v788, %v933
  %v982 = vsub.f32 %v789, %v940
  %v983 = vsub.f32 %v790, %v947
  %v984 = vsub.f32 %v791, %v954
  %v985 = vsub.f32 %v792, %v961
  %v986 = vmul.f32 %v962, 1.442695
  %v987 = vpow.pop %v986
  %v988 = vmul.f32 %v963, 1.442695
  %v989 = vpow.pop %v988
  %v990 = vmul.f32 %v964, 1.442695
  %v991 = vpow.pop %v990
  %v992 = vmul.f32 %v965, 1.442695
  %v993 = vpow.pop %v992
  %v994 = vmul.f32 %v966, 1.442695
  %v995 = vpow.pop %v994
  %v996 = vmul.f32 %v967, 1.442695
  %v997 = vpow.pop %v996
  %v998 = vmul.f32 %v968, 1.442695
  %v999 = vpow.pop %v998
  %v1000 = vmul.f32 %v969, 1.442695
  %v1001 = vpow.pop %v1000
  %v1002 = vmul.f32 %v970, 1.442695
  %v1003 = vpow.pop %v1002
  %v1004 = vmul.f32 %v971, 1.442695
  %v1005 = vpow.pop %v1004
  %v1006 = vmul.f32 %v972, 1.442695
  %v1007 = vpow.pop %v1006
  %v1008 = vmul.f32 %v973, 1.442695
  %v1009 = vpow.pop %v1008
  %v1010 = vmul.f32 %v974, 1.442695
  %v1011 = vpow.pop %v1010
  %v1012 = vmul.f32 %v975, 1.442695
  %v1013 = vpow.pop %v1012
  %v1014 = vmul.f32 %v976, 1.442695
  %v1015 = vpow.pop %v1014
  %v1016 = vmul.f32 %v977, 1.442695
  %v1017 = vpow.pop %v1016
  %v1018 = vmul.f32 %v978, 1.442695
  %v1019 = vpow.pop %v1018
  %v1020 = vmul.f32 %v979, 1.442695
  %v1021 = vpow.pop %v1020
  %v1022 = vmul.f32 %v980, 1.442695
  %v1023 = vpow.pop %v1022
  %v1024 = vmul.f32 %v981, 1.442695
  %v1025 = vpow.pop %v1024
  %v1026 = vmul.f32 %v982, 1.442695
  %v1027 = vpow.pop %v1026
  %v1028 = vmul.f32 %v983, 1.442695
  %v1029 = vpow.pop %v1028
  %v1030 = vmul.f32 %v984, 1.442695
  %v1031 = vpow.pop %v1030
  %v1032 = vmul.f32 %v985, 1.442695
  %v1033 = vpow.pop %v1032
  %v1034 = vsel %vm793, %v987, 0.0
  %v1035 = vrot.slane %v1034, 4
  %v1036 = vadd.f32 %v1034, %v1035
  %v1037 = vrot.slane %v1036, 2
  %v1038 = vadd.f32 %v1036, %v1037
  %v1039 = vrot.slane %v1038, 1
  %v1040 = vadd.f32 %v1038, %v1039
  %v1041 = vsel %vm793, %v989, 0.0
  %v1042 = vrot.slane %v1041, 4
  %v1043 = vadd.f32 %v1041, %v1042
  %v1044 = vrot.slane %v1043, 2
  %v1045 = vadd.f32 %v1043, %v1044
  %v1046 = vrot.slane %v1045, 1
  %v1047 = vadd.f32 %v1045, %v1046
  %v1048 = vsel %vm793, %v991, 0.0
  %v1049 = vrot.slane %v1048, 4
  %v1050 = vadd.f32 %v1048, %v1049
  %v1051 = vrot.slane %v1050, 2
  %v1052 = vadd.f32 %v1050, %v1051
  %v1053 = vrot.slane %v1052, 1
  %v1054 = vadd.f32 %v1052, %v1053
  %v1055 = vsel %vm793, %v993, 0.0
  %v1056 = vrot.slane %v1055, 4
  %v1057 = vadd.f32 %v1055, %v1056
  %v1058 = vrot.slane %v1057, 2
  %v1059 = vadd.f32 %v1057, %v1058
  %v1060 = vrot.slane %v1059, 1
  %v1061 = vadd.f32 %v1059, %v1060
  %v1062 = vsel %vm793, %v995, 0.0
  %v1063 = vrot.slane %v1062, 4
  %v1064 = vadd.f32 %v1062, %v1063
  %v1065 = vrot.slane %v1064, 2
  %v1066 = vadd.f32 %v1064, %v1065
  %v1067 = vrot.slane %v1066, 1
  %v1068 = vadd.f32 %v1066, %v1067
  %v1069 = vsel %vm793, %v997, 0.0
  %v1070 = vrot.slane %v1069, 4
  %v1071 = vadd.f32 %v1069, %v1070
  %v1072 = vrot.slane %v1071, 2
  %v1073 = vadd.f32 %v1071, %v1072
  %v1074 = vrot.slane %v1073, 1
  %v1075 = vadd.f32 %v1073, %v1074
  %v1076 = vsel %vm793, %v999, 0.0
  %v1077 = vrot.slane %v1076, 4
  %v1078 = vadd.f32 %v1076, %v1077
  %v1079 = vrot.slane %v1078, 2
  %v1080 = vadd.f32 %v1078, %v1079
  %v1081 = vrot.slane %v1080, 1
  %v1082 = vadd.f32 %v1080, %v1081
  %v1083 = vsel %vm793, %v1001, 0.0
  %v1084 = vrot.slane %v1083, 4
  %v1085 = vadd.f32 %v1083, %v1084
  %v1086 = vrot.slane %v1085, 2
  %v1087 = vadd.f32 %v1085, %v1086
  %v1088 = vrot.slane %v1087, 1
  %v1089 = vadd.f32 %v1087, %v1088
  %v1090 = vsel %vm793, %v1003, 0.0
  %v1091 = vrot.slane %v1090, 4
  %v1092 = vadd.f32 %v1090, %v1091
  %v1093 = vrot.slane %v1092, 2
  %v1094 = vadd.f32 %v1092, %v1093
  %v1095 = vrot.slane %v1094, 1
  %v1096 = vadd.f32 %v1094, %v1095
  %v1097 = vsel %vm793, %v1005, 0.0
  %v1098 = vrot.slane %v1097, 4
  %v1099 = vadd.f32 %v1097, %v1098
  %v1100 = vrot.slane %v1099, 2
  %v1101 = vadd.f32 %v1099, %v1100
  %v1102 = vrot.slane %v1101, 1
  %v1103 = vadd.f32 %v1101, %v1102
  %v1104 = vsel %vm793, %v1007, 0.0
  %v1105 = vrot.slane %v1104, 4
  %v1106 = vadd.f32 %v1104, %v1105
  %v1107 = vrot.slane %v1106, 2
  %v1108 = vadd.f32 %v1106, %v1107
  %v1109 = vrot.slane %v1108, 1
  %v1110 = vadd.f32 %v1108, %v1109
  %v1111 = vsel %vm793, %v1009, 0.0
  %v1112 = vrot.slane %v1111, 4
  %v1113 = vadd.f32 %v1111, %v1112
  %v1114 = vrot.slane %v1113, 2
  %v1115 = vadd.f32 %v1113, %v1114
  %v1116 = vrot.slane %v1115, 1
  %v1117 = vadd.f32 %v1115, %v1116
  %v1118 = vsel %vm793, %v1011, 0.0
  %v1119 = vrot.slane %v1118, 4
  %v1120 = vadd.f32 %v1118, %v1119
  %v1121 = vrot.slane %v1120, 2
  %v1122 = vadd.f32 %v1120, %v1121
  %v1123 = vrot.slane %v1122, 1
  %v1124 = vadd.f32 %v1122, %v1123
  %v1125 = vsel %vm793, %v1013, 0.0
  %v1126 = vrot.slane %v1125, 4
  %v1127 = vadd.f32 %v1125, %v1126
  %v1128 = vrot.slane %v1127, 2
  %v1129 = vadd.f32 %v1127, %v1128
  %v1130 = vrot.slane %v1129, 1
  %v1131 = vadd.f32 %v1129, %v1130
  %v1132 = vsel %vm793, %v1015, 0.0
  %v1133 = vrot.slane %v1132, 4
  %v1134 = vadd.f32 %v1132, %v1133
  %v1135 = vrot.slane %v1134, 2
  %v1136 = vadd.f32 %v1134, %v1135
  %v1137 = vrot.slane %v1136, 1
  %v1138 = vadd.f32 %v1136, %v1137
  %v1139 = vsel %vm793, %v1017, 0.0
  %v1140 = vrot.slane %v1139, 4
  %v1141 = vadd.f32 %v1139, %v1140
  %v1142 = vrot.slane %v1141, 2
  %v1143 = vadd.f32 %v1141, %v1142
  %v1144 = vrot.slane %v1143, 1
  %v1145 = vadd.f32 %v1143, %v1144
  %v1146 = vsel %vm793, %v1019, 0.0
  %v1147 = vrot.slane %v1146, 4
  %v1148 = vadd.f32 %v1146, %v1147
  %v1149 = vrot.slane %v1148, 2
  %v1150 = vadd.f32 %v1148, %v1149
  %v1151 = vrot.slane %v1150, 1
  %v1152 = vadd.f32 %v1150, %v1151
  %v1153 = vsel %vm793, %v1021, 0.0
  %v1154 = vrot.slane %v1153, 4
  %v1155 = vadd.f32 %v1153, %v1154
  %v1156 = vrot.slane %v1155, 2
  %v1157 = vadd.f32 %v1155, %v1156
  %v1158 = vrot.slane %v1157, 1
  %v1159 = vadd.f32 %v1157, %v1158
  %v1160 = vsel %vm793, %v1023, 0.0
  %v1161 = vrot.slane %v1160, 4
  %v1162 = vadd.f32 %v1160, %v1161
  %v1163 = vrot.slane %v1162, 2
  %v1164 = vadd.f32 %v1162, %v1163
  %v1165 = vrot.slane %v1164, 1
  %v1166 = vadd.f32 %v1164, %v1165
  %v1167 = vsel %vm793, %v1025, 0.0
  %v1168 = vrot.slane %v1167, 4
  %v1169 = vadd.f32 %v1167, %v1168
  %v1170 = vrot.slane %v1169, 2
  %v1171 = vadd.f32 %v1169, %v1170
  %v1172 = vrot.slane %v1171, 1
  %v1173 = vadd.f32 %v1171, %v1172
  %v1174 = vsel %vm793, %v1027, 0.0
  %v1175 = vrot.slane %v1174, 4
  %v1176 = vadd.f32 %v1174, %v1175
  %v1177 = vrot.slane %v1176, 2
  %v1178 = vadd.f32 %v1176, %v1177
  %v1179 = vrot.slane %v1178, 1
  %v1180 = vadd.f32 %v1178, %v1179
  %v1181 = vsel %vm793, %v1029, 0.0
  %v1182 = vrot.slane %v1181, 4
  %v1183 = vadd.f32 %v1181, %v1182
  %v1184 = vrot.slane %v1183, 2
  %v1185 = vadd.f32 %v1183, %v1184
  %v1186 = vrot.slane %v1185, 1
  %v1187 = vadd.f32 %v1185, %v1186
  %v1188 = vsel %vm793, %v1031, 0.0
  %v1189 = vrot.slane %v1188, 4
  %v1190 = vadd.f32 %v1188, %v1189
  %v1191 = vrot.slane %v1190, 2
  %v1192 = vadd.f32 %v1190, %v1191
  %v1193 = vrot.slane %v1192, 1
  %v1194 = vadd.f32 %v1192, %v1193
  %v1195 = vsel %vm793, %v1033, 0.0
  %v1196 = vrot.slane %v1195, 4
  %v1197 = vadd.f32 %v1195, %v1196
  %v1198 = vrot.slane %v1197, 2
  %v1199 = vadd.f32 %v1197, %v1198
  %v1200 = vrot.slane %v1199, 1
  %v1201 = vadd.f32 %v1199, %v1200
  %v1202 = vrcp.pop %v1040
  %v1203 = vrcp.pop %v1047
  %v1204 = vrcp.pop %v1054
  %v1205 = vrcp.pop %v1061
  %v1206 = vrcp.pop %v1068
  %v1207 = vrcp.pop %v1075
  %v1208 = vrcp.pop %v1082
  %v1209 = vrcp.pop %v1089
  %v1210 = vrcp.pop %v1096
  %v1211 = vrcp.pop %v1103
  %v1212 = vrcp.pop %v1110
  %v1213 = vrcp.pop %v1117
  %v1214 = vrcp.pop %v1124
  %v1215 = vrcp.pop %v1131
  %v1216 = vrcp.pop %v1138
  %v1217 = vrcp.pop %v1145
  %v1218 = vrcp.pop %v1152
  %v1219 = vrcp.pop %v1159
  %v1220 = vrcp.pop %v1166
  %v1221 = vrcp.pop %v1173
  %v1222 = vrcp.pop %v1180
  %v1223 = vrcp.pop %v1187
  %v1224 = vrcp.pop %v1194
  %v1225 = vrcp.pop %v1201
  %v1226 = vmul.f32 %v987, %v1202
  %v1227 = vmul.f32 %v989, %v1203
  %v1228 = vmul.f32 %v991, %v1204
  %v1229 = vmul.f32 %v993, %v1205
  %v1230 = vmul.f32 %v995, %v1206
  %v1231 = vmul.f32 %v997, %v1207
  %v1232 = vmul.f32 %v999, %v1208
  %v1233 = vmul.f32 %v1001, %v1209
  %v1234 = vmul.f32 %v1003, %v1210
  %v1235 = vmul.f32 %v1005, %v1211
  %v1236 = vmul.f32 %v1007, %v1212
  %v1237 = vmul.f32 %v1009, %v1213
  %v1238 = vmul.f32 %v1011, %v1214
  %v1239 = vmul.f32 %v1013, %v1215
  %v1240 = vmul.f32 %v1015, %v1216
  %v1241 = vmul.f32 %v1017, %v1217
  %v1242 = vmul.f32 %v1019, %v1218
  %v1243 = vmul.f32 %v1021, %v1219
  %v1244 = vmul.f32 %v1023, %v1220
  %v1245 = vmul.f32 %v1025, %v1221
  %v1246 = vmul.f32 %v1027, %v1222
  %v1247 = vmul.f32 %v1029, %v1223
  %v1248 = vmul.f32 %v1031, %v1224
  %v1249 = vmul.f32 %v1033, %v1225
  %v1250 = vpack.c.bf16 %v1227, %v1226
  %v1251 = vpack.c.bf16 %v1229, %v1228
  %v1252 = vpack.c.bf16 %v1231, %v1230
  %v1253 = vpack.c.bf16 %v1233, %v1232
  %v1254 = vpack.c.bf16 %v1235, %v1234
  %v1255 = vpack.c.bf16 %v1237, %v1236
  %v1256 = vpack.c.bf16 %v1239, %v1238
  %v1257 = vpack.c.bf16 %v1241, %v1240
  %v1258 = vpack.c.bf16 %v1243, %v1242
  %v1259 = vpack.c.bf16 %v1245, %v1244
  %v1260 = vpack.c.bf16 %v1247, %v1246
  %v1261 = vpack.c.bf16 %v1249, %v1248
  %v1262 = vld [vmem:[%s9] sm:$0xf]
  %v1264 = vsel %vm793, %v1250, 0
  %v1267 = vsel %vm793, %v1251, 0
  %v1270 = vsel %vm793, %v1252, 0
  %v1273 = vsel %vm793, %v1253, 0
  %v1276 = vsel %vm793, %v1254, 0
  %v1279 = vsel %vm793, %v1255, 0
  %v1282 = vsel %vm793, %v1256, 0
  %v1285 = vsel %vm793, %v1257, 0
  %v1288 = vsel %vm793, %v1258, 0
  %v1291 = vsel %vm793, %v1259, 0
  %v1294 = vsel %vm793, %v1260, 0
  %v1297 = vsel %vm793, %v1261, 0
  %vm1299 = vcmask 1043456
  %v1301 = vsel %vm1299, %v1262, 0
  %1303 = vmatpush.bf16.msra.mxu0 0
  %1304 = vmatpush.bf16.msra.mxu0 0
  %1305 = vmatpush.bf16.msra.mxu0 0
  %1306 = vmatpush.bf16.msra.mxu0 0
  %1307 = vmatpush.bf16.msra.mxu0 0
  %1308 = vmatpush.bf16.msra.mxu0 0
  %1309 = vmatpush.bf16.msra.mxu0 0
  %1310 = vmatpush.bf16.msra.mxu0 %v1301
  %1311 = vmatmul.bf16.gmra.mxu0 %v1264
  %v1312 = vpop.f32.mrf.mxu0
  %v1313 = vadd.f32 0.0, %v1312
  %v1314 = vpop.f32.mrf.mxu0
  %v1315 = vadd.f32 0.0, %v1314
  %1316 = vmatmul.bf16.gmra.mxu0 %v1267
  %v1317 = vpop.f32.mrf.mxu0
  %v1318 = vadd.f32 0.0, %v1317
  %v1319 = vpop.f32.mrf.mxu0
  %v1320 = vadd.f32 0.0, %v1319
  %1321 = vmatmul.bf16.gmra.mxu0 %v1270
  %v1322 = vpop.f32.mrf.mxu0
  %v1323 = vadd.f32 0.0, %v1322
  %v1324 = vpop.f32.mrf.mxu0
  %v1325 = vadd.f32 0.0, %v1324
  %1326 = vmatmul.bf16.gmra.mxu0 %v1273
  %v1327 = vpop.f32.mrf.mxu0
  %v1328 = vadd.f32 0.0, %v1327
  %v1329 = vpop.f32.mrf.mxu0
  %v1330 = vadd.f32 0.0, %v1329
  %1331 = vmatmul.bf16.gmra.mxu0 %v1276
  %v1332 = vpop.f32.mrf.mxu0
  %v1333 = vadd.f32 0.0, %v1332
  %v1334 = vpop.f32.mrf.mxu0
  %v1335 = vadd.f32 0.0, %v1334
  %1336 = vmatmul.bf16.gmra.mxu0 %v1279
  %v1337 = vpop.f32.mrf.mxu0
  %v1338 = vadd.f32 0.0, %v1337
  %v1339 = vpop.f32.mrf.mxu0
  %v1340 = vadd.f32 0.0, %v1339
  %1341 = vmatmul.bf16.gmra.mxu0 %v1282
  %v1342 = vpop.f32.mrf.mxu0
  %v1343 = vadd.f32 0.0, %v1342
  %v1344 = vpop.f32.mrf.mxu0
  %v1345 = vadd.f32 0.0, %v1344
  %1346 = vmatmul.bf16.gmra.mxu0 %v1285
  %v1347 = vpop.f32.mrf.mxu0
  %v1348 = vadd.f32 0.0, %v1347
  %v1349 = vpop.f32.mrf.mxu0
  %v1350 = vadd.f32 0.0, %v1349
  %1351 = vmatmul.bf16.gmra.mxu0 %v1288
  %v1352 = vpop.f32.mrf.mxu0
  %v1353 = vadd.f32 0.0, %v1352
  %v1354 = vpop.f32.mrf.mxu0
  %v1355 = vadd.f32 0.0, %v1354
  %1356 = vmatmul.bf16.gmra.mxu0 %v1291
  %v1357 = vpop.f32.mrf.mxu0
  %v1358 = vadd.f32 0.0, %v1357
  %v1359 = vpop.f32.mrf.mxu0
  %v1360 = vadd.f32 0.0, %v1359
  %1361 = vmatmul.bf16.gmra.mxu0 %v1294
  %v1362 = vpop.f32.mrf.mxu0
  %v1363 = vadd.f32 0.0, %v1362
  %v1364 = vpop.f32.mrf.mxu0
  %v1365 = vadd.f32 0.0, %v1364
  %1366 = vmatmul.bf16.gmra.mxu0 %v1297
  %v1367 = vpop.f32.mrf.mxu0
  %v1368 = vadd.f32 0.0, %v1367
  %v1369 = vpop.f32.mrf.mxu0
  %v1370 = vadd.f32 0.0, %v1369
  %1371 = vdwg.mxu0
  %1396 = vrot.lane.b32.xlu0 %v282, 96
  %v1397 = vpop.permute.xlu0 %1396
  %1398 = vrot.lane.b32.xlu0 %v284, 96
  %v1399 = vpop.permute.xlu0 %1398
  %1400 = vrot.lane.b32.xlu0 %v287, 96
  %v1401 = vpop.permute.xlu0 %1400
  %1402 = vrot.lane.b32.xlu0 %v289, 96
  %v1403 = vpop.permute.xlu0 %1402
  %1404 = vrot.lane.b32.xlu0 %v292, 96
  %v1405 = vpop.permute.xlu0 %1404
  %1406 = vrot.lane.b32.xlu0 %v294, 96
  %v1407 = vpop.permute.xlu0 %1406
  %1408 = vrot.lane.b32.xlu0 %v297, 96
  %v1409 = vpop.permute.xlu0 %1408
  %1410 = vrot.lane.b32.xlu0 %v299, 96
  %v1411 = vpop.permute.xlu0 %1410
  %1412 = vrot.lane.b32.xlu0 %v302, 96
  %v1413 = vpop.permute.xlu0 %1412
  %1414 = vrot.lane.b32.xlu0 %v304, 96
  %v1415 = vpop.permute.xlu0 %1414
  %1416 = vrot.lane.b32.xlu0 %v307, 96
  %v1417 = vpop.permute.xlu0 %1416
  %1418 = vrot.lane.b32.xlu0 %v309, 96
  %v1419 = vpop.permute.xlu0 %1418
  %1420 = vrot.lane.b32.xlu0 %v312, 96
  %v1421 = vpop.permute.xlu0 %1420
  %1422 = vrot.lane.b32.xlu0 %v314, 96
  %v1423 = vpop.permute.xlu0 %1422
  %1424 = vrot.lane.b32.xlu0 %v317, 96
  %v1425 = vpop.permute.xlu0 %1424
  %1426 = vrot.lane.b32.xlu0 %v319, 96
  %v1427 = vpop.permute.xlu0 %1426
  %1428 = vrot.lane.b32.xlu0 %v322, 96
  %v1429 = vpop.permute.xlu0 %1428
  %1430 = vrot.lane.b32.xlu0 %v324, 96
  %v1431 = vpop.permute.xlu0 %1430
  %1432 = vrot.lane.b32.xlu0 %v327, 96
  %v1433 = vpop.permute.xlu0 %1432
  %1434 = vrot.lane.b32.xlu0 %v329, 96
  %v1435 = vpop.permute.xlu0 %1434
  %1436 = vrot.lane.b32.xlu0 %v332, 96
  %v1437 = vpop.permute.xlu0 %1436
  %1438 = vrot.lane.b32.xlu0 %v334, 96
  %v1439 = vpop.permute.xlu0 %1438
  %1440 = vrot.lane.b32.xlu0 %v337, 96
  %v1441 = vpop.permute.xlu0 %1440
  %1442 = vrot.lane.b32.xlu0 %v339, 96
  %v1443 = vpop.permute.xlu0 %1442
  %v1468 = vmul.f32 %v1313, %v1397
  %v1469 = vmul.f32 %v1315, %v1399
  %v1470 = vmul.f32 %v1318, %v1401
  %v1471 = vmul.f32 %v1320, %v1403
  %v1472 = vmul.f32 %v1323, %v1405
  %v1473 = vmul.f32 %v1325, %v1407
  %v1474 = vmul.f32 %v1328, %v1409
  %v1475 = vmul.f32 %v1330, %v1411
  %v1476 = vmul.f32 %v1333, %v1413
  %v1477 = vmul.f32 %v1335, %v1415
  %v1478 = vmul.f32 %v1338, %v1417
  %v1479 = vmul.f32 %v1340, %v1419
  %v1480 = vmul.f32 %v1343, %v1421
  %v1481 = vmul.f32 %v1345, %v1423
  %v1482 = vmul.f32 %v1348, %v1425
  %v1483 = vmul.f32 %v1350, %v1427
  %v1484 = vmul.f32 %v1353, %v1429
  %v1485 = vmul.f32 %v1355, %v1431
  %v1486 = vmul.f32 %v1358, %v1433
  %v1487 = vmul.f32 %v1360, %v1435
  %v1488 = vmul.f32 %v1363, %v1437
  %v1489 = vmul.f32 %v1365, %v1439
  %v1490 = vmul.f32 %v1368, %v1441
  %v1491 = vmul.f32 %v1370, %v1443
  %v1492 = vsel %vm235, %v1468, 0.0
  %v1493 = vrot.slane %v1492, 4
  %v1494 = vadd.f32 %v1492, %v1493
  %v1495 = vrot.slane %v1494, 2
  %v1496 = vadd.f32 %v1494, %v1495
  %v1497 = vrot.slane %v1496, 1
  %v1498 = vadd.f32 %v1496, %v1497
  %v1499 = vsel %vm235, %v1469, 0.0
  %v1500 = vrot.slane %v1499, 4
  %v1501 = vadd.f32 %v1499, %v1500
  %v1502 = vrot.slane %v1501, 2
  %v1503 = vadd.f32 %v1501, %v1502
  %v1504 = vrot.slane %v1503, 1
  %v1505 = vadd.f32 %v1503, %v1504
  %v1506 = vsel %vm235, %v1470, 0.0
  %v1507 = vrot.slane %v1506, 4
  %v1508 = vadd.f32 %v1506, %v1507
  %v1509 = vrot.slane %v1508, 2
  %v1510 = vadd.f32 %v1508, %v1509
  %v1511 = vrot.slane %v1510, 1
  %v1512 = vadd.f32 %v1510, %v1511
  %v1513 = vsel %vm235, %v1471, 0.0
  %v1514 = vrot.slane %v1513, 4
  %v1515 = vadd.f32 %v1513, %v1514
  %v1516 = vrot.slane %v1515, 2
  %v1517 = vadd.f32 %v1515, %v1516
  %v1518 = vrot.slane %v1517, 1
  %v1519 = vadd.f32 %v1517, %v1518
  %v1520 = vsel %vm235, %v1472, 0.0
  %v1521 = vrot.slane %v1520, 4
  %v1522 = vadd.f32 %v1520, %v1521
  %v1523 = vrot.slane %v1522, 2
  %v1524 = vadd.f32 %v1522, %v1523
  %v1525 = vrot.slane %v1524, 1
  %v1526 = vadd.f32 %v1524, %v1525
  %v1527 = vsel %vm235, %v1473, 0.0
  %v1528 = vrot.slane %v1527, 4
  %v1529 = vadd.f32 %v1527, %v1528
  %v1530 = vrot.slane %v1529, 2
  %v1531 = vadd.f32 %v1529, %v1530
  %v1532 = vrot.slane %v1531, 1
  %v1533 = vadd.f32 %v1531, %v1532
  %v1534 = vsel %vm235, %v1474, 0.0
  %v1535 = vrot.slane %v1534, 4
  %v1536 = vadd.f32 %v1534, %v1535
  %v1537 = vrot.slane %v1536, 2
  %v1538 = vadd.f32 %v1536, %v1537
  %v1539 = vrot.slane %v1538, 1
  %v1540 = vadd.f32 %v1538, %v1539
  %v1541 = vsel %vm235, %v1475, 0.0
  %v1542 = vrot.slane %v1541, 4
  %v1543 = vadd.f32 %v1541, %v1542
  %v1544 = vrot.slane %v1543, 2
  %v1545 = vadd.f32 %v1543, %v1544
  %v1546 = vrot.slane %v1545, 1
  %v1547 = vadd.f32 %v1545, %v1546
  %v1548 = vsel %vm235, %v1476, 0.0
  %v1549 = vrot.slane %v1548, 4
  %v1550 = vadd.f32 %v1548, %v1549
  %v1551 = vrot.slane %v1550, 2
  %v1552 = vadd.f32 %v1550, %v1551
  %v1553 = vrot.slane %v1552, 1
  %v1554 = vadd.f32 %v1552, %v1553
  %v1555 = vsel %vm235, %v1477, 0.0
  %v1556 = vrot.slane %v1555, 4
  %v1557 = vadd.f32 %v1555, %v1556
  %v1558 = vrot.slane %v1557, 2
  %v1559 = vadd.f32 %v1557, %v1558
  %v1560 = vrot.slane %v1559, 1
  %v1561 = vadd.f32 %v1559, %v1560
  %v1562 = vsel %vm235, %v1478, 0.0
  %v1563 = vrot.slane %v1562, 4
  %v1564 = vadd.f32 %v1562, %v1563
  %v1565 = vrot.slane %v1564, 2
  %v1566 = vadd.f32 %v1564, %v1565
  %v1567 = vrot.slane %v1566, 1
  %v1568 = vadd.f32 %v1566, %v1567
  %v1569 = vsel %vm235, %v1479, 0.0
  %v1570 = vrot.slane %v1569, 4
  %v1571 = vadd.f32 %v1569, %v1570
  %v1572 = vrot.slane %v1571, 2
  %v1573 = vadd.f32 %v1571, %v1572
  %v1574 = vrot.slane %v1573, 1
  %v1575 = vadd.f32 %v1573, %v1574
  %v1576 = vsel %vm235, %v1480, 0.0
  %v1577 = vrot.slane %v1576, 4
  %v1578 = vadd.f32 %v1576, %v1577
  %v1579 = vrot.slane %v1578, 2
  %v1580 = vadd.f32 %v1578, %v1579
  %v1581 = vrot.slane %v1580, 1
  %v1582 = vadd.f32 %v1580, %v1581
  %v1583 = vsel %vm235, %v1481, 0.0
  %v1584 = vrot.slane %v1583, 4
  %v1585 = vadd.f32 %v1583, %v1584
  %v1586 = vrot.slane %v1585, 2
  %v1587 = vadd.f32 %v1585, %v1586
  %v1588 = vrot.slane %v1587, 1
  %v1589 = vadd.f32 %v1587, %v1588
  %v1590 = vsel %vm235, %v1482, 0.0
  %v1591 = vrot.slane %v1590, 4
  %v1592 = vadd.f32 %v1590, %v1591
  %v1593 = vrot.slane %v1592, 2
  %v1594 = vadd.f32 %v1592, %v1593
  %v1595 = vrot.slane %v1594, 1
  %v1596 = vadd.f32 %v1594, %v1595
  %v1597 = vsel %vm235, %v1483, 0.0
  %v1598 = vrot.slane %v1597, 4
  %v1599 = vadd.f32 %v1597, %v1598
  %v1600 = vrot.slane %v1599, 2
  %v1601 = vadd.f32 %v1599, %v1600
  %v1602 = vrot.slane %v1601, 1
  %v1603 = vadd.f32 %v1601, %v1602
  %v1604 = vsel %vm235, %v1484, 0.0
  %v1605 = vrot.slane %v1604, 4
  %v1606 = vadd.f32 %v1604, %v1605
  %v1607 = vrot.slane %v1606, 2
  %v1608 = vadd.f32 %v1606, %v1607
  %v1609 = vrot.slane %v1608, 1
  %v1610 = vadd.f32 %v1608, %v1609
  %v1611 = vsel %vm235, %v1485, 0.0
  %v1612 = vrot.slane %v1611, 4
  %v1613 = vadd.f32 %v1611, %v1612
  %v1614 = vrot.slane %v1613, 2
  %v1615 = vadd.f32 %v1613, %v1614
  %v1616 = vrot.slane %v1615, 1
  %v1617 = vadd.f32 %v1615, %v1616
  %v1618 = vsel %vm235, %v1486, 0.0
  %v1619 = vrot.slane %v1618, 4
  %v1620 = vadd.f32 %v1618, %v1619
  %v1621 = vrot.slane %v1620, 2
  %v1622 = vadd.f32 %v1620, %v1621
  %v1623 = vrot.slane %v1622, 1
  %v1624 = vadd.f32 %v1622, %v1623
  %v1625 = vsel %vm235, %v1487, 0.0
  %v1626 = vrot.slane %v1625, 4
  %v1627 = vadd.f32 %v1625, %v1626
  %v1628 = vrot.slane %v1627, 2
  %v1629 = vadd.f32 %v1627, %v1628
  %v1630 = vrot.slane %v1629, 1
  %v1631 = vadd.f32 %v1629, %v1630
  %v1632 = vsel %vm235, %v1488, 0.0
  %v1633 = vrot.slane %v1632, 4
  %v1634 = vadd.f32 %v1632, %v1633
  %v1635 = vrot.slane %v1634, 2
  %v1636 = vadd.f32 %v1634, %v1635
  %v1637 = vrot.slane %v1636, 1
  %v1638 = vadd.f32 %v1636, %v1637
  %v1639 = vsel %vm235, %v1489, 0.0
  %v1640 = vrot.slane %v1639, 4
  %v1641 = vadd.f32 %v1639, %v1640
  %v1642 = vrot.slane %v1641, 2
  %v1643 = vadd.f32 %v1641, %v1642
  %v1644 = vrot.slane %v1643, 1
  %v1645 = vadd.f32 %v1643, %v1644
  %v1646 = vsel %vm235, %v1490, 0.0
  %v1647 = vrot.slane %v1646, 4
  %v1648 = vadd.f32 %v1646, %v1647
  %v1649 = vrot.slane %v1648, 2
  %v1650 = vadd.f32 %v1648, %v1649
  %v1651 = vrot.slane %v1650, 1
  %v1652 = vadd.f32 %v1650, %v1651
  %v1653 = vsel %vm235, %v1491, 0.0
  %v1654 = vrot.slane %v1653, 4
  %v1655 = vadd.f32 %v1653, %v1654
  %v1656 = vrot.slane %v1655, 2
  %v1657 = vadd.f32 %v1655, %v1656
  %v1658 = vrot.slane %v1657, 1
  %v1659 = vadd.f32 %v1657, %v1658
  %v1660 = vpack.c.bf16 %v1498, %v1498
  %v1661 = vpack.c.bf16 %v1505, %v1505
  %v1662 = vpack.c.bf16 %v1512, %v1512
  %v1663 = vpack.c.bf16 %v1519, %v1519
  %v1664 = vpack.c.bf16 %v1526, %v1526
  %v1665 = vpack.c.bf16 %v1533, %v1533
  %v1666 = vpack.c.bf16 %v1540, %v1540
  %v1667 = vpack.c.bf16 %v1547, %v1547
  %v1668 = vpack.c.bf16 %v1554, %v1554
  %v1669 = vpack.c.bf16 %v1561, %v1561
  %v1670 = vpack.c.bf16 %v1568, %v1568
  %v1671 = vpack.c.bf16 %v1575, %v1575
  %v1672 = vpack.c.bf16 %v1582, %v1582
  %v1673 = vpack.c.bf16 %v1589, %v1589
  %v1674 = vpack.c.bf16 %v1596, %v1596
  %v1675 = vpack.c.bf16 %v1603, %v1603
  %v1676 = vpack.c.bf16 %v1610, %v1610
  %v1677 = vpack.c.bf16 %v1617, %v1617
  %v1678 = vpack.c.bf16 %v1624, %v1624
  %v1679 = vpack.c.bf16 %v1631, %v1631
  %v1680 = vpack.c.bf16 %v1638, %v1638
  %v1681 = vpack.c.bf16 %v1645, %v1645
  %v1682 = vpack.c.bf16 %v1652, %v1652
  %v1683 = vpack.c.bf16 %v1659, %v1659
  %v1684 = vld [vmem:[%s19] sm:$0xf]
  %v1685 = vld [vmem:[%s19 + $0x4] sm:$0xf]
  %v1686 = vld [vmem:[%s19 + $0x8] sm:$0xf]
  %v1687 = vld [vmem:[%s19 + $0xc] sm:$0xf]
  %v1688 = vld [vmem:[%s21] sm:$0x1]
  %v1690 = vperm.slane %v1688, 0
  %v1716 = vunpack.c.l.b16 %v1660
  %v1717 = vunpack.c.l.b16 %v1661
  %v1718 = vunpack.c.l.b16 %v1662
  %v1719 = vunpack.c.l.b16 %v1663
  %v1720 = vunpack.c.l.b16 %v1664
  %v1721 = vunpack.c.l.b16 %v1665
  %v1722 = vunpack.c.l.b16 %v1666
  %v1723 = vunpack.c.l.b16 %v1667
  %v1724 = vunpack.c.l.b16 %v1668
  %v1725 = vunpack.c.l.b16 %v1669
  %v1726 = vunpack.c.l.b16 %v1670
  %v1727 = vunpack.c.l.b16 %v1671
  %v1728 = vunpack.c.l.b16 %v1672
  %v1729 = vunpack.c.l.b16 %v1673
  %v1730 = vunpack.c.l.b16 %v1674
  %v1731 = vunpack.c.l.b16 %v1675
  %v1732 = vunpack.c.l.b16 %v1676
  %v1733 = vunpack.c.l.b16 %v1677
  %v1734 = vunpack.c.l.b16 %v1678
  %v1735 = vunpack.c.l.b16 %v1679
  %v1736 = vunpack.c.l.b16 %v1680
  %v1737 = vunpack.c.l.b16 %v1681
  %v1738 = vunpack.c.l.b16 %v1682
  %v1739 = vunpack.c.l.b16 %v1683
  %vm1740 = vcmask 1041409
  %v1741 = vsel %vm1740, %v1717, %v1716
  %vm1742 = vcmask 1042434
  %v1743 = vsel %vm1742, %v1718, %v1741
  %vm1744 = vcmask 1043459
  %v1745 = vsel %vm1744, %v1719, %v1743
  %vm1746 = vcmask 1044484
  %v1747 = vsel %vm1746, %v1720, %v1745
  %vm1748 = vcmask 1045509
  %v1749 = vsel %vm1748, %v1721, %v1747
  %vm1750 = vcmask 1046534
  %v1751 = vsel %vm1750, %v1722, %v1749
  %vm1752 = vcmask 1047559
  %v1753 = vsel %vm1752, %v1723, %v1751
  %v1754 = vsel %vm1740, %v1725, %v1724
  %v1755 = vsel %vm1742, %v1726, %v1754
  %v1756 = vsel %vm1744, %v1727, %v1755
  %v1757 = vsel %vm1746, %v1728, %v1756
  %v1758 = vsel %vm1748, %v1729, %v1757
  %v1759 = vsel %vm1750, %v1730, %v1758
  %v1760 = vsel %vm1752, %v1731, %v1759
  %v1761 = vsel %vm1740, %v1733, %v1732
  %v1762 = vsel %vm1742, %v1734, %v1761
  %v1763 = vsel %vm1744, %v1735, %v1762
  %v1764 = vsel %vm1746, %v1736, %v1763
  %v1765 = vsel %vm1748, %v1737, %v1764
  %v1766 = vsel %vm1750, %v1738, %v1765
  %v1767 = vsel %vm1752, %v1739, %v1766
  %v1768 = vpack.c.b16 %v1760, %v1753
  %v1769 = vpack.c.b16 %v1767, %v1767
  %v1774 = vunpack.c.l.b16 %v1684
  %v1775 = vunpack.c.l.b16 %v1685
  %v1776 = vunpack.c.l.b16 %v1686
  %v1777 = vunpack.c.l.b16 %v1687
  %v1778 = vpack.c.b16 %v1775, %v1774
  %v1779 = vpack.c.b16 %v1777, %v1776
  %v1783 = vsel %vm235, %v1768, 0
  %v1786 = vsel %vm235, %v1769, 0
  %1788 = vmatpush.bf16.msra.mxu0 0
  %1789 = vmatpush.bf16.msra.mxu0 0
  %1790 = vmatpush.bf16.msra.mxu0 0
  %1791 = vmatpush.bf16.msra.mxu0 0
  %1792 = vmatpush.bf16.msra.mxu0 0
  %1793 = vmatpush.bf16.msra.mxu0 0
  %1794 = vmatpush.bf16.msra.mxu0 %v1779
  %1795 = vmatpush.bf16.msra.mxu0 %v1778
  %1796 = vmatmul.bf16.gmra.mxu0 %v1783
  %v1797 = vpop.f32.mrf.mxu0
  %v1798 = vadd.f32 %v1690, %v1797
  %v1799 = vpop.f32.mrf.mxu0
  %v1800 = vadd.f32 %v1690, %v1799
  %1801 = vmatmul.bf16.gmra.mxu0 %v1786
  %v1802 = vpop.f32.mrf.mxu0
  %v1803 = vadd.f32 %v1690, %v1802
  %v1804 = vpop.f32.mrf.mxu0
  %1805 = vdwg.mxu0
  %v1806 = vunpack.c.l.bf16 %v341
  %v1807 = vunpack.c.l.bf16 %v342
  %v1808 = vunpack.c.l.bf16 %v343
  %v1809 = vadd.f32 %v1806, %v1798
  %v1810 = vadd.f32 %v1807, %v1800
  %v1811 = vadd.f32 %v1808, %v1803
  %v1812 = vld [vmem:[%s23] sm:$0x1]
  %v1813 = vld [vmem:[%s25] sm:$0x1]
  %v1814 = vsel %vm235, %v1809, 0.0
  %1815 = vadd.xlane.f32.xlu0 %v1814
  %v1816 = vpop.xlane.xlu0 %1815
  %v1817 = vsel %vm235, %v1810, 0.0
  %1818 = vadd.xlane.f32.xlu0 %v1817
  %v1819 = vpop.xlane.xlu0 %1818
  %v1820 = vsel %vm235, %v1811, 0.0
  %1821 = vadd.xlane.f32.xlu0 %v1820
  %v1822 = vpop.xlane.xlu0 %1821
  %v1823 = vrcp.pop 32.0
  %v1824 = vmul.f32 32.0, %v1823
  %v1825 = vsub.f32 1.0, %v1824
  %v1826 = vmul.f32 %v1823, %v1825
  %v1827 = vadd.f32 %v1823, %v1826
  %vm1828 = vweird.f32 %v1823
  %v1829 = vsel %vm1828, %v1823, %v1827
  %v1830 = vmul.f32 %v1816, %v1829
  %v1831 = vmul.f32 %v1819, %v1829
  %v1832 = vmul.f32 %v1822, %v1829
  %v1833 = vsub.f32 %v1809, %v1830
  %v1834 = vsub.f32 %v1810, %v1831
  %v1835 = vsub.f32 %v1811, %v1832
  %v1836 = vmul.f32 %v1833, %v1833
  %v1837 = vmul.f32 %v1834, %v1834
  %v1838 = vmul.f32 %v1835, %v1835
  %v1839 = vsel %vm235, %v1836, 0.0
  %1840 = vadd.xlane.f32.xlu0 %v1839
  %v1841 = vpop.xlane.xlu0 %1840
  %v1842 = vsel %vm235, %v1837, 0.0
  %1843 = vadd.xlane.f32.xlu0 %v1842
  %v1844 = vpop.xlane.xlu0 %1843
  %v1845 = vsel %vm235, %v1838, 0.0
  %1846 = vadd.xlane.f32.xlu0 %v1845
  %v1847 = vpop.xlane.xlu0 %1846
  %v1848 = vmul.f32 %v1841, %v1829
  %v1849 = vmul.f32 %v1844, %v1829
  %v1850 = vmul.f32 %v1847, %v1829
  %v1851 = vadd.f32 %v1848, 1e-05
  %v1852 = vadd.f32 %v1849, 1e-05
  %v1853 = vadd.f32 %v1850, 1e-05
  %v1854 = vrsqrt.pop %v1851
  %v1855 = vmul.f32 %v1854, %v1851
  %v1856 = vmul.f32 %v1855, %v1854
  %v1857 = vmul.f32 0.5, %v1856
  %v1858 = vsub.f32 1.5, %v1857
  %v1859 = vmul.f32 %v1854, %v1858
  %vm1860 = vweird.f32 %v1851
  %vm1861 = vweird.f32 %v1854
  %vm1862 = vmor %vm1860, %vm1861
  %v1863 = vsel %vm1862, %v1854, %v1859
  %v1864 = vrsqrt.pop %v1852
  %v1865 = vmul.f32 %v1864, %v1852
  %v1866 = vmul.f32 %v1865, %v1864
  %v1867 = vmul.f32 0.5, %v1866
  %v1868 = vsub.f32 1.5, %v1867
  %v1869 = vmul.f32 %v1864, %v1868
  %vm1870 = vweird.f32 %v1852
  %vm1871 = vweird.f32 %v1864
  %vm1872 = vmor %vm1870, %vm1871
  %v1873 = vsel %vm1872, %v1864, %v1869
  %v1874 = vrsqrt.pop %v1853
  %v1875 = vmul.f32 %v1874, %v1853
  %v1876 = vmul.f32 %v1875, %v1874
  %v1877 = vmul.f32 0.5, %v1876
  %v1878 = vsub.f32 1.5, %v1877
  %v1879 = vmul.f32 %v1874, %v1878
  %vm1880 = vweird.f32 %v1853
  %vm1881 = vweird.f32 %v1874
  %vm1882 = vmor %vm1880, %vm1881
  %v1883 = vsel %vm1882, %v1874, %v1879
  %v1884 = vmul.f32 %v1833, %v1863
  %v1885 = vmul.f32 %v1834, %v1873
  %v1886 = vmul.f32 %v1835, %v1883
  %v1888 = vperm.slane %v1812, 0
  %v1890 = vmul.f32 %v1884, %v1888
  %v1891 = vmul.f32 %v1885, %v1888
  %v1892 = vmul.f32 %v1886, %v1888
  %v1894 = vperm.slane %v1813, 0
  %v1896 = vadd.f32 %v1890, %v1894
  %v1897 = vadd.f32 %v1891, %v1894
  %v1898 = vadd.f32 %v1892, %v1894
  %v1899 = vpack.c.bf16 %v1897, %v1896
  %v1900 = vpack.c.bf16 %v1898, %v1898
  %v1901 = vld [vmem:[%s27] sm:$0xf]
  %v1902 = vld [vmem:[%s27 + $0x4] sm:$0xf]
  %v1903 = vld [vmem:[%s27 + $0x8] sm:$0xf]
  %v1904 = vld [vmem:[%s27 + $0xc] sm:$0xf]
  %v1905 = vld [vmem:[%s29] sm:$0x1]
  %v1907 = vperm.slane %v1905, 0
  %v1913 = vunpack.c.l.b16 %v1901
  %v1914 = vunpack.c.l.b16 %v1902
  %v1915 = vunpack.c.l.b16 %v1903
  %v1916 = vunpack.c.l.b16 %v1904
  %v1917 = vpack.c.b16 %v1914, %v1913
  %v1918 = vpack.c.b16 %v1916, %v1915
  %v1922 = vsel %vm235, %v1899, 0
  %v1925 = vsel %vm235, %v1900, 0
  %1927 = vmatpush.bf16.msra.mxu0 0
  %1928 = vmatpush.bf16.msra.mxu0 0
  %1929 = vmatpush.bf16.msra.mxu0 0
  %1930 = vmatpush.bf16.msra.mxu0 0
  %1931 = vmatpush.bf16.msra.mxu0 0
  %1932 = vmatpush.bf16.msra.mxu0 0
  %1933 = vmatpush.bf16.msra.mxu0 %v1918
  %1934 = vmatpush.bf16.msra.mxu0 %v1917
  %1935 = vmatmul.bf16.gmra.mxu0 %v1922
  %v1936 = vpop.f32.mrf.mxu0
  %v1937 = vadd.f32 %v1907, %v1936
  %v1938 = vpop.f32.mrf.mxu0
  %v1939 = vadd.f32 %v1907, %v1938
  %1940 = vmatmul.bf16.gmra.mxu0 %v1925
  %v1941 = vpop.f32.mrf.mxu0
  %v1942 = vadd.f32 %v1907, %v1941
  %v1943 = vpop.f32.mrf.mxu0
  %1944 = vdwg.mxu0
  %v1945 = vmax.f32 %v1937, 0.0
  %v1946 = vmax.f32 %v1939, 0.0
  %v1947 = vmax.f32 %v1942, 0.0
  %v1948 = vpack.c.bf16 %v1946, %v1945
  %v1949 = vpack.c.bf16 %v1947, %v1947
  %v1950 = vld [vmem:[%s31] sm:$0xf]
  %v1951 = vld [vmem:[%s31 + $0x4] sm:$0xf]
  %v1952 = vld [vmem:[%s31 + $0x8] sm:$0xf]
  %v1953 = vld [vmem:[%s31 + $0xc] sm:$0xf]
  %v1954 = vld [vmem:[%s31 + $0x10] sm:$0xf]
  %v1955 = vld [vmem:[%s31 + $0x14] sm:$0xf]
  %v1956 = vld [vmem:[%s31 + $0x18] sm:$0xf]
  %v1957 = vld [vmem:[%s31 + $0x1c] sm:$0xf]
  %v1958 = vld [vmem:[%s31 + $0x20] sm:$0xf]
  %v1959 = vld [vmem:[%s31 + $0x24] sm:$0xf]
  %v1960 = vld [vmem:[%s31 + $0x28] sm:$0xf]
  %v1961 = vld [vmem:[%s31 + $0x2c] sm:$0xf]
  %v1962 = vld [vmem:[%s31 + $0x30] sm:$0xf]
  %v1963 = vld [vmem:[%s31 + $0x34] sm:$0xf]
  %v1964 = vld [vmem:[%s31 + $0x38] sm:$0xf]
  %v1965 = vld [vmem:[%s31 + $0x3c] sm:$0xf]
  %v1966 = vld [vmem:[%s33] sm:$0x1]
  %v1968 = vperm.slane %v1966, 0
  %v1986 = vunpack.c.l.b16 %v1950
  %v1987 = vunpack.c.l.b16 %v1951
  %v1988 = vunpack.c.l.b16 %v1952
  %v1989 = vunpack.c.l.b16 %v1953
  %v1990 = vunpack.c.l.b16 %v1954
  %v1991 = vunpack.c.l.b16 %v1955
  %v1992 = vunpack.c.l.b16 %v1956
  %v1993 = vunpack.c.l.b16 %v1957
  %v1994 = vunpack.c.l.b16 %v1958
  %v1995 = vunpack.c.l.b16 %v1959
  %v1996 = vunpack.c.l.b16 %v1960
  %v1997 = vunpack.c.l.b16 %v1961
  %v1998 = vunpack.c.l.b16 %v1962
  %v1999 = vunpack.c.l.b16 %v1963
  %v2000 = vunpack.c.l.b16 %v1964
  %v2001 = vunpack.c.l.b16 %v1965
  %v2002 = vpack.c.b16 %v1987, %v1986
  %v2003 = vpack.c.b16 %v1989, %v1988
  %v2004 = vpack.c.b16 %v1991, %v1990
  %v2005 = vpack.c.b16 %v1993, %v1992
  %v2006 = vpack.c.b16 %v1995, %v1994
  %v2007 = vpack.c.b16 %v1997, %v1996
  %v2008 = vpack.c.b16 %v1999, %v1998
  %v2009 = vpack.c.b16 %v2001, %v2000
  %2018 = vmatpush.bf16.msra.mxu0 %v2009
  %2019 = vmatpush.bf16.msra.mxu0 %v2008
  %2020 = vmatpush.bf16.msra.mxu0 %v2007
  %2021 = vmatpush.bf16.msra.mxu0 %v2006
  %2022 = vmatpush.bf16.msra.mxu0 %v2005
  %2023 = vmatpush.bf16.msra.mxu0 %v2004
  %2024 = vmatpush.bf16.msra.mxu0 %v2003
  %2025 = vmatpush.bf16.msra.mxu0 %v2002
  %2026 = vmatmul.bf16.gmra.mxu0 %v1948
  %v2027 = vpop.f32.mrf.mxu0
  %v2028 = vadd.f32 %v1968, %v2027
  %v2029 = vpop.f32.mrf.mxu0
  %v2030 = vadd.f32 %v1968, %v2029
  %2031 = vmatmul.bf16.gmra.mxu0 %v1949
  %v2032 = vpop.f32.mrf.mxu0
  %v2033 = vadd.f32 %v1968, %v2032
  %v2034 = vpop.f32.mrf.mxu0
  %2035 = vdwg.mxu0
  %v2036 = vadd.f32 %v1896, %v2028
  %v2037 = vadd.f32 %v1897, %v2030
  %v2038 = vadd.f32 %v1898, %v2033
  %v2039 = vld [vmem:[%s35] sm:$0x1]
  %v2040 = vld [vmem:[%s37] sm:$0x1]
  %v2041 = vsel %vm235, %v2036, 0.0
  %2042 = vadd.xlane.f32.xlu0 %v2041
  %v2043 = vpop.xlane.xlu0 %2042
  %v2044 = vsel %vm235, %v2037, 0.0
  %2045 = vadd.xlane.f32.xlu0 %v2044
  %v2046 = vpop.xlane.xlu0 %2045
  %v2047 = vsel %vm235, %v2038, 0.0
  %2048 = vadd.xlane.f32.xlu0 %v2047
  %v2049 = vpop.xlane.xlu0 %2048
  %v2050 = vmul.f32 %v2043, %v1829
  %v2051 = vmul.f32 %v2046, %v1829
  %v2052 = vmul.f32 %v2049, %v1829
  %v2053 = vsub.f32 %v2036, %v2050
  %v2054 = vsub.f32 %v2037, %v2051
  %v2055 = vsub.f32 %v2038, %v2052
  %v2056 = vmul.f32 %v2053, %v2053
  %v2057 = vmul.f32 %v2054, %v2054
  %v2058 = vmul.f32 %v2055, %v2055
  %v2059 = vsel %vm235, %v2056, 0.0
  %2060 = vadd.xlane.f32.xlu0 %v2059
  %v2061 = vpop.xlane.xlu0 %2060
  %v2062 = vsel %vm235, %v2057, 0.0
  %2063 = vadd.xlane.f32.xlu0 %v2062
  %v2064 = vpop.xlane.xlu0 %2063
  %v2065 = vsel %vm235, %v2058, 0.0
  %2066 = vadd.xlane.f32.xlu0 %v2065
  %v2067 = vpop.xlane.xlu0 %2066
  %v2068 = vmul.f32 %v2061, %v1829
  %v2069 = vmul.f32 %v2064, %v1829
  %v2070 = vmul.f32 %v2067, %v1829
  %v2071 = vadd.f32 %v2068, 1e-05
  %v2072 = vadd.f32 %v2069, 1e-05
  %v2073 = vadd.f32 %v2070, 1e-05
  %v2074 = vrsqrt.pop %v2071
  %v2075 = vmul.f32 %v2074, %v2071
  %v2076 = vmul.f32 %v2075, %v2074
  %v2077 = vmul.f32 0.5, %v2076
  %v2078 = vsub.f32 1.5, %v2077
  %v2079 = vmul.f32 %v2074, %v2078
  %vm2080 = vweird.f32 %v2071
  %vm2081 = vweird.f32 %v2074
  %vm2082 = vmor %vm2080, %vm2081
  %v2083 = vsel %vm2082, %v2074, %v2079
  %v2084 = vrsqrt.pop %v2072
  %v2085 = vmul.f32 %v2084, %v2072
  %v2086 = vmul.f32 %v2085, %v2084
  %v2087 = vmul.f32 0.5, %v2086
  %v2088 = vsub.f32 1.5, %v2087
  %v2089 = vmul.f32 %v2084, %v2088
  %vm2090 = vweird.f32 %v2072
  %vm2091 = vweird.f32 %v2084
  %vm2092 = vmor %vm2090, %vm2091
  %v2093 = vsel %vm2092, %v2084, %v2089
  %v2094 = vrsqrt.pop %v2073
  %v2095 = vmul.f32 %v2094, %v2073
  %v2096 = vmul.f32 %v2095, %v2094
  %v2097 = vmul.f32 0.5, %v2096
  %v2098 = vsub.f32 1.5, %v2097
  %v2099 = vmul.f32 %v2094, %v2098
  %vm2100 = vweird.f32 %v2073
  %vm2101 = vweird.f32 %v2094
  %vm2102 = vmor %vm2100, %vm2101
  %v2103 = vsel %vm2102, %v2094, %v2099
  %v2104 = vmul.f32 %v2053, %v2083
  %v2105 = vmul.f32 %v2054, %v2093
  %v2106 = vmul.f32 %v2055, %v2103
  %v2108 = vperm.slane %v2039, 0
  %v2110 = vmul.f32 %v2104, %v2108
  %v2111 = vmul.f32 %v2105, %v2108
  %v2112 = vmul.f32 %v2106, %v2108
  %v2114 = vperm.slane %v2040, 0
  %v2116 = vadd.f32 %v2110, %v2114
  %v2117 = vadd.f32 %v2111, %v2114
  %v2118 = vadd.f32 %v2112, %v2114
  %v2119 = vpack.c.bf16 %v2117, %v2116
  %v2120 = vpack.c.bf16 %v2118, %v2118
  %v2121 = vld [vmem:[%s39] sm:$0xf]
  %v2122 = vld [vmem:[%s39 + $0x4] sm:$0xf]
  %v2123 = vld [vmem:[%s39 + $0x8] sm:$0xf]
  %v2124 = vld [vmem:[%s39 + $0xc] sm:$0xf]
  %v2125 = vld [vmem:[%s41] sm:$0x1]
  %v2127 = vperm.slane %v2125, 0
  %v2133 = vunpack.c.l.b16 %v2121
  %v2134 = vunpack.c.l.b16 %v2122
  %v2135 = vunpack.c.l.b16 %v2123
  %v2136 = vunpack.c.l.b16 %v2124
  %v2137 = vpack.c.b16 %v2134, %v2133
  %v2138 = vpack.c.b16 %v2136, %v2135
  %v2142 = vsel %vm235, %v2119, 0
  %v2145 = vsel %vm235, %v2120, 0
  %2147 = vmatpush.bf16.msra.mxu0 0
  %2148 = vmatpush.bf16.msra.mxu0 0
  %2149 = vmatpush.bf16.msra.mxu0 0
  %2150 = vmatpush.bf16.msra.mxu0 0
  %2151 = vmatpush.bf16.msra.mxu0 0
  %2152 = vmatpush.bf16.msra.mxu0 0
  %2153 = vmatpush.bf16.msra.mxu0 %v2138
  %2154 = vmatpush.bf16.msra.mxu0 %v2137
  %2155 = vmatmul.bf16.gmra.mxu0 %v2142
  %v2156 = vpop.f32.mrf.mxu0
  %v2157 = vadd.f32 %v2127, %v2156
  %v2158 = vpop.f32.mrf.mxu0
  %v2159 = vadd.f32 %v2127, %v2158
  %2160 = vmatmul.bf16.gmra.mxu0 %v2145
  %v2161 = vpop.f32.mrf.mxu0
  %v2162 = vadd.f32 %v2127, %v2161
  %v2163 = vpop.f32.mrf.mxu0
  %2164 = vdwg.mxu0
  %v2168 = vrot.slane %v2157, 1
  %v2169 = vrot.slane %v2157, 2
  %v2170 = vrot.slane %v2157, 3
  %v2171 = vrot.slane %v2157, 4
  %v2172 = vrot.slane %v2157, 5
  %v2173 = vrot.slane %v2157, 6
  %v2174 = vrot.slane %v2157, 7
  %v2175 = vrot.slane %v2159, 1
  %v2176 = vrot.slane %v2159, 2
  %v2177 = vrot.slane %v2159, 3
  %v2178 = vrot.slane %v2159, 4
  %v2179 = vrot.slane %v2159, 5
  %v2180 = vrot.slane %v2159, 6
  %v2181 = vrot.slane %v2159, 7
  %v2182 = vrot.slane %v2162, 1
  %v2183 = vrot.slane %v2162, 2
  %v2184 = vrot.slane %v2162, 3
  %v2185 = vrot.slane %v2162, 4
  %v2186 = vrot.slane %v2162, 5
  %v2187 = vrot.slane %v2162, 6
  %v2188 = vrot.slane %v2162, 7
  %v2189 = vperm.slane %v2157, 0
  %v2190 = vperm.slane %v2168, 0
  %v2191 = vperm.slane %v2169, 0
  %v2192 = vperm.slane %v2170, 0
  %v2193 = vperm.slane %v2171, 0
  %v2194 = vperm.slane %v2172, 0
  %v2195 = vperm.slane %v2173, 0
  %v2196 = vperm.slane %v2174, 0
  %v2197 = vperm.slane %v2159, 0
  %v2198 = vperm.slane %v2175, 0
  %v2199 = vperm.slane %v2176, 0
  %v2200 = vperm.slane %v2177, 0
  %v2201 = vperm.slane %v2178, 0
  %v2202 = vperm.slane %v2179, 0
  %v2203 = vperm.slane %v2180, 0
  %v2204 = vperm.slane %v2181, 0
  %v2205 = vperm.slane %v2162, 0
  %v2206 = vperm.slane %v2182, 0
  %v2207 = vperm.slane %v2183, 0
  %v2208 = vperm.slane %v2184, 0
  %v2209 = vperm.slane %v2185, 0
  %v2210 = vperm.slane %v2186, 0
  %v2211 = vperm.slane %v2187, 0
  %v2212 = vperm.slane %v2188, 0
  %2237 = vst [vmem:[#allocation1] ss:$9 sm:$0xff] %v2157
  %s2238 = scalar_lea.vmem [#allocation1], 1
  %2239 = vst [vmem:[%s2238] ss:$9 sm:$0xff] %v2168
  %s2240 = scalar_lea.vmem [#allocation1], 2
  %2241 = vst [vmem:[%s2240] ss:$9 sm:$0xff] %v2169
  %v2242 = vld [vmem:[#allocation1] sm:$0xff]
  %2243 = vst [vmem:[#allocation1] ss:$9 sm:$0xff] %v2157
  %2244 = vst [vmem:[%s2238] ss:$9 sm:$0xff] %v2168
  %2245 = vst [vmem:[%s2240] ss:$9 sm:$0xff] %v2169
  %v2246 = vld [vmem:[#allocation1] sm:$0xff]
  %2247 = vst [vmem:[#allocation1] ss:$9 sm:$0xff] %v2157
  %2248 = vst [vmem:[%s2238] ss:$9 sm:$0xff] %v2168
  %2249 = vst [vmem:[%s2240] ss:$9 sm:$0xff] %v2169
  %v2250 = vld [vmem:[#allocation1] sm:$0xff]
  %2251 = vst [vmem:[#allocation1] ss:$9 sm:$0xff] %v2170
  %2252 = vst [vmem:[%s2238] ss:$9 sm:$0xff] %v2171
  %2253 = vst [vmem:[%s2240] ss:$9 sm:$0xff] %v2172
  %v2254 = vld [vmem:[#allocation1] sm:$0xff]
  %2255 = vst [vmem:[#allocation1] ss:$9 sm:$0xff] %v2170
  %2256 = vst [vmem:[%s2238] ss:$9 sm:$0xff] %v2171
  %2257 = vst [vmem:[%s2240] ss:$9 sm:$0xff] %v2172
  %v2258 = vld [vmem:[#allocation1] sm:$0xff]
  %2259 = vst [vmem:[#allocation1] ss:$9 sm:$0xff] %v2170
  %2260 = vst [vmem:[%s2238] ss:$9 sm:$0xff] %v2171
  %2261 = vst [vmem:[%s2240] ss:$9 sm:$0xff] %v2172
  %v2262 = vld [vmem:[#allocation1] sm:$0xff]
  %2263 = vst [vmem:[#allocation1] ss:$9 sm:$0xff] %v2173
  %2264 = vst [vmem:[%s2238] ss:$9 sm:$0xff] %v2174
  %2265 = vst [vmem:[%s2240] ss:$9 sm:$0xff] %v2159
  %v2266 = vld [vmem:[#allocation1] sm:$0xff]
  %2267 = vst [vmem:[#allocation1] ss:$9 sm:$0xff] %v2173
  %2268 = vst [vmem:[%s2238] ss:$9 sm:$0xff] %v2174
  %2269 = vst [vmem:[%s2240] ss:$9 sm:$0xff] %v2159
  %v2270 = vld [vmem:[#allocation1] sm:$0xff]
  %2271 = vst [vmem:[#allocation1] ss:$9 sm:$0xff] %v2173
  %2272 = vst [vmem:[%s2238] ss:$9 sm:$0xff] %v2174
  %2273 = vst [vmem:[%s2240] ss:$9 sm:$0xff] %v2159
  %v2274 = vld [vmem:[#allocation1] sm:$0xff]
  %2275 = vst [vmem:[#allocation1] ss:$9 sm:$0xff] %v2175
  %2276 = vst [vmem:[%s2238] ss:$9 sm:$0xff] %v2176
  %2277 = vst [vmem:[%s2240] ss:$9 sm:$0xff] %v2177
  %v2278 = vld [vmem:[#allocation1] sm:$0xff]
  %2279 = vst [vmem:[#allocation1] ss:$9 sm:$0xff] %v2175
  %2280 = vst [vmem:[%s2238] ss:$9 sm:$0xff] %v2176
  %2281 = vst [vmem:[%s2240] ss:$9 sm:$0xff] %v2177
  %v2282 = vld [vmem:[#allocation1] sm:$0xff]
  %2283 = vst [vmem:[#allocation1] ss:$9 sm:$0xff] %v2175
  %2284 = vst [vmem:[%s2238] ss:$9 sm:$0xff] %v2176
  %2285 = vst [vmem:[%s2240] ss:$9 sm:$0xff] %v2177
  %v2286 = vld [vmem:[#allocation1] sm:$0xff]
  %2287 = vst [vmem:[#allocation1] ss:$9 sm:$0xff] %v2178
  %2288 = vst [vmem:[%s2238] ss:$9 sm:$0xff] %v2179
  %2289 = vst [vmem:[%s2240] ss:$9 sm:$0xff] %v2180
  %v2290 = vld [vmem:[#allocation1] sm:$0xff]
  %2291 = vst [vmem:[#allocation1] ss:$9 sm:$0xff] %v2178
  %2292 = vst [vmem:[%s2238] ss:$9 sm:$0xff] %v2179
  %2293 = vst [vmem:[%s2240] ss:$9 sm:$0xff] %v2180
  %v2294 = vld [vmem:[#allocation1] sm:$0xff]
  %2295 = vst [vmem:[#allocation1] ss:$9 sm:$0xff] %v2178
  %2296 = vst [vmem:[%s2238] ss:$9 sm:$0xff] %v2179
  %2297 = vst [vmem:[%s2240] ss:$9 sm:$0xff] %v2180
  %v2298 = vld [vmem:[#allocation1] sm:$0xff]
  %2299 = vst [vmem:[#allocation1] ss:$9 sm:$0xff] %v2181
  %2300 = vst [vmem:[%s2238] ss:$9 sm:$0xff] %v2162
  %2301 = vst [vmem:[%s2240] ss:$9 sm:$0xff] %v2182
  %v2302 = vld [vmem:[#allocation1] sm:$0xff]
  %2303 = vst [vmem:[#allocation1] ss:$9 sm:$0xff] %v2181
  %2304 = vst [vmem:[%s2238] ss:$9 sm:$0xff] %v2162
  %2305 = vst [vmem:[%s2240] ss:$9 sm:$0xff] %v2182
  %v2306 = vld [vmem:[#allocation1] sm:$0xff]
  %2307 = vst [vmem:[#allocation1] ss:$9 sm:$0xff] %v2181
  %2308 = vst [vmem:[%s2238] ss:$9 sm:$0xff] %v2162
  %2309 = vst [vmem:[%s2240] ss:$9 sm:$0xff] %v2182
  %v2310 = vld [vmem:[#allocation1] sm:$0xff]
  %2311 = vst [vmem:[#allocation1] ss:$9 sm:$0xff] %v2183
  %2312 = vst [vmem:[%s2238] ss:$9 sm:$0xff] %v2184
  %2313 = vst [vmem:[%s2240] ss:$9 sm:$0xff] %v2185
  %v2314 = vld [vmem:[#allocation1] sm:$0xff]
  %2315 = vst [vmem:[#allocation1] ss:$9 sm:$0xff] %v2183
  %2316 = vst [vmem:[%s2238] ss:$9 sm:$0xff] %v2184
  %2317 = vst [vmem:[%s2240] ss:$9 sm:$0xff] %v2185
  %v2318 = vld [vmem:[#allocation1] sm:$0xff]
  %2319 = vst [vmem:[#allocation1] ss:$9 sm:$0xff] %v2183
  %2320 = vst [vmem:[%s2238] ss:$9 sm:$0xff] %v2184
  %2321 = vst [vmem:[%s2240] ss:$9 sm:$0xff] %v2185
  %v2322 = vld [vmem:[#allocation1] sm:$0xff]
  %2323 = vst [vmem:[#allocation1] ss:$9 sm:$0xff] %v2186
  %2324 = vst [vmem:[%s2238] ss:$9 sm:$0xff] %v2187
  %2325 = vst [vmem:[%s2240] ss:$9 sm:$0xff] %v2188
  %v2326 = vld [vmem:[#allocation1] sm:$0xff]
  %2327 = vst [vmem:[#allocation1] ss:$9 sm:$0xff] %v2186
  %2328 = vst [vmem:[%s2238] ss:$9 sm:$0xff] %v2187
  %2329 = vst [vmem:[%s2240] ss:$9 sm:$0xff] %v2188
  %v2330 = vld [vmem:[#allocation1] sm:$0xff]
  %2331 = vst [vmem:[#allocation1] ss:$9 sm:$0xff] %v2186
  %2332 = vst [vmem:[%s2238] ss:$9 sm:$0xff] %v2187
  %2333 = vst [vmem:[%s2240] ss:$9 sm:$0xff] %v2188
  %v2334 = vld [vmem:[#allocation1] sm:$0xff]
  %2335 = vrot.lane.b32.xlu0 %v2242, 96
  %v2336 = vpop.permute.xlu0 %2335
  %2337 = vrot.lane.b32.xlu0 %v2246, 96
  %v2338 = vpop.permute.xlu0 %2337
  %2339 = vrot.lane.b32.xlu0 %v2250, 96
  %v2340 = vpop.permute.xlu0 %2339
  %2341 = vrot.lane.b32.xlu0 %v2254, 96
  %v2342 = vpop.permute.xlu0 %2341
  %2343 = vrot.lane.b32.xlu0 %v2258, 96
  %v2344 = vpop.permute.xlu0 %2343
  %2345 = vrot.lane.b32.xlu0 %v2262, 96
  %v2346 = vpop.permute.xlu0 %2345
  %2347 = vrot.lane.b32.xlu0 %v2266, 96
  %v2348 = vpop.permute.xlu0 %2347
  %2349 = vrot.lane.b32.xlu0 %v2270, 96
  %v2350 = vpop.permute.xlu0 %2349
  %2351 = vrot.lane.b32.xlu0 %v2274, 96
  %v2352 = vpop.permute.xlu0 %2351
  %2353 = vrot.lane.b32.xlu0 %v2278, 96
  %v2354 = vpop.permute.xlu0 %2353
  %2355 = vrot.lane.b32.xlu0 %v2282, 96
  %v2356 = vpop.permute.xlu0 %2355
  %2357 = vrot.lane.b32.xlu0 %v2286, 96
  %v2358 = vpop.permute.xlu0 %2357
  %2359 = vrot.lane.b32.xlu0 %v2290, 96
  %v2360 = vpop.permute.xlu0 %2359
  %2361 = vrot.lane.b32.xlu0 %v2294, 96
  %v2362 = vpop.permute.xlu0 %2361
  %2363 = vrot.lane.b32.xlu0 %v2298, 96
  %v2364 = vpop.permute.xlu0 %2363
  %2365 = vrot.lane.b32.xlu0 %v2302, 96
  %v2366 = vpop.permute.xlu0 %2365
  %2367 = vrot.lane.b32.xlu0 %v2306, 96
  %v2368 = vpop.permute.xlu0 %2367
  %2369 = vrot.lane.b32.xlu0 %v2310, 96
  %v2370 = vpop.permute.xlu0 %2369
  %2371 = vrot.lane.b32.xlu0 %v2314, 96
  %v2372 = vpop.permute.xlu0 %2371
  %2373 = vrot.lane.b32.xlu0 %v2318, 96
  %v2374 = vpop.permute.xlu0 %2373
  %2375 = vrot.lane.b32.xlu0 %v2322, 96
  %v2376 = vpop.permute.xlu0 %2375
  %2377 = vrot.lane.b32.xlu0 %v2326, 96
  %v2378 = vpop.permute.xlu0 %2377
  %2379 = vrot.lane.b32.xlu0 %v2330, 96
  %v2380 = vpop.permute.xlu0 %2379
  %2381 = vrot.lane.b32.xlu0 %v2334, 96
  %v2382 = vpop.permute.xlu0 %2381
  %v2407 = vmul.f32 %v2189, %v2336
  %v2408 = vmul.f32 %v2190, %v2338
  %v2409 = vmul.f32 %v2191, %v2340
  %v2410 = vmul.f32 %v2192, %v2342
  %v2411 = vmul.f32 %v2193, %v2344
  %v2412 = vmul.f32 %v2194, %v2346
  %v2413 = vmul.f32 %v2195, %v2348
  %v2414 = vmul.f32 %v2196, %v2350
  %v2415 = vmul.f32 %v2197, %v2352
  %v2416 = vmul.f32 %v2198, %v2354
  %v2417 = vmul.f32 %v2199, %v2356
  %v2418 = vmul.f32 %v2200, %v2358
  %v2419 = vmul.f32 %v2201, %v2360
  %v2420 = vmul.f32 %v2202, %v2362
  %v2421 = vmul.f32 %v2203, %v2364
  %v2422 = vmul.f32 %v2204, %v2366
  %v2423 = vmul.f32 %v2205, %v2368
  %v2424 = vmul.f32 %v2206, %v2370
  %v2425 = vmul.f32 %v2207, %v2372
  %v2426 = vmul.f32 %v2208, %v2374
  %v2427 = vmul.f32 %v2209, %v2376
  %v2428 = vmul.f32 %v2210, %v2378
  %v2429 = vmul.f32 %v2211, %v2380
  %v2430 = vmul.f32 %v2212, %v2382
  %v2455 = vrot.slane %v2407, 1
  %v2456 = vrot.slane %v2407, 2
  %v2457 = vrot.slane %v2408, 1
  %v2458 = vrot.slane %v2408, 2
  %v2459 = vrot.slane %v2409, 1
  %v2460 = vrot.slane %v2409, 2
  %v2461 = vrot.slane %v2410, 1
  %v2462 = vrot.slane %v2410, 2
  %v2463 = vrot.slane %v2411, 1
  %v2464 = vrot.slane %v2411, 2
  %v2465 = vrot.slane %v2412, 1
  %v2466 = vrot.slane %v2412, 2
  %v2467 = vrot.slane %v2413, 1
  %v2468 = vrot.slane %v2413, 2
  %v2469 = vrot.slane %v2414, 1
  %v2470 = vrot.slane %v2414, 2
  %v2471 = vrot.slane %v2415, 1
  %v2472 = vrot.slane %v2415, 2
  %v2473 = vrot.slane %v2416, 1
  %v2474 = vrot.slane %v2416, 2
  %v2475 = vrot.slane %v2417, 1
  %v2476 = vrot.slane %v2417, 2
  %v2477 = vrot.slane %v2418, 1
  %v2478 = vrot.slane %v2418, 2
  %v2479 = vrot.slane %v2419, 1
  %v2480 = vrot.slane %v2419, 2
  %v2481 = vrot.slane %v2420, 1
  %v2482 = vrot.slane %v2420, 2
  %v2483 = vrot.slane %v2421, 1
  %v2484 = vrot.slane %v2421, 2
  %v2485 = vrot.slane %v2422, 1
  %v2486 = vrot.slane %v2422, 2
  %v2487 = vrot.slane %v2423, 1
  %v2488 = vrot.slane %v2423, 2
  %v2489 = vrot.slane %v2424, 1
  %v2490 = vrot.slane %v2424, 2
  %v2491 = vrot.slane %v2425, 1
  %v2492 = vrot.slane %v2425, 2
  %v2493 = vrot.slane %v2426, 1
  %v2494 = vrot.slane %v2426, 2
  %v2495 = vrot.slane %v2427, 1
  %v2496 = vrot.slane %v2427, 2
  %v2497 = vrot.slane %v2428, 1
  %v2498 = vrot.slane %v2428, 2
  %v2499 = vrot.slane %v2429, 1
  %v2500 = vrot.slane %v2429, 2
  %v2501 = vrot.slane %v2430, 1
  %v2502 = vrot.slane %v2430, 2
  %2503 = vst [vmem:[#allocation1] ss:$9 sm:$0xff] %v2407
  %s2504 = scalar_lea.vmem [#allocation1], 1
  %2505 = vst [vmem:[%s2504] ss:$9 sm:$0xff] %v2455
  %s2506 = scalar_lea.vmem [#allocation1], 2
  %2507 = vst [vmem:[%s2506] ss:$9 sm:$0xff] %v2456
  %s2508 = scalar_lea.vmem [#allocation1], 3
  %2509 = vst [vmem:[%s2508] ss:$9 sm:$0xff] %v2408
  %s2510 = scalar_lea.vmem [#allocation1], 4
  %2511 = vst [vmem:[%s2510] ss:$9 sm:$0xff] %v2457
  %s2512 = scalar_lea.vmem [#allocation1], 5
  %2513 = vst [vmem:[%s2512] ss:$9 sm:$0xff] %v2458
  %s2514 = scalar_lea.vmem [#allocation1], 6
  %2515 = vst [vmem:[%s2514] ss:$9 sm:$0xff] %v2409
  %s2516 = scalar_lea.vmem [#allocation1], 7
  %2517 = vst [vmem:[%s2516] ss:$9 sm:$0xff] %v2459
  %v2518 = vld [vmem:[#allocation1] sm:$0xff]
  %2519 = vst [vmem:[#allocation1] ss:$9 sm:$0xff] %v2460
  %2520 = vst [vmem:[%s2504] ss:$9 sm:$0xff] %v2410
  %2521 = vst [vmem:[%s2506] ss:$9 sm:$0xff] %v2461
  %2522 = vst [vmem:[%s2508] ss:$9 sm:$0xff] %v2462
  %2523 = vst [vmem:[%s2510] ss:$9 sm:$0xff] %v2411
  %2524 = vst [vmem:[%s2512] ss:$9 sm:$0xff] %v2463
  %2525 = vst [vmem:[%s2514] ss:$9 sm:$0xff] %v2464
  %2526 = vst [vmem:[%s2516] ss:$9 sm:$0xff] %v2412
  %v2527 = vld [vmem:[#allocation1] sm:$0xff]
  %2528 = vst [vmem:[#allocation1] ss:$9 sm:$0xff] %v2465
  %2529 = vst [vmem:[%s2504] ss:$9 sm:$0xff] %v2466
  %2530 = vst [vmem:[%s2506] ss:$9 sm:$0xff] %v2413
  %2531 = vst [vmem:[%s2508] ss:$9 sm:$0xff] %v2467
  %2532 = vst [vmem:[%s2510] ss:$9 sm:$0xff] %v2468
  %2533 = vst [vmem:[%s2512] ss:$9 sm:$0xff] %v2414
  %2534 = vst [vmem:[%s2514] ss:$9 sm:$0xff] %v2469
  %2535 = vst [vmem:[%s2516] ss:$9 sm:$0xff] %v2470
  %v2536 = vld [vmem:[#allocation1] sm:$0xff]
  %2537 = vst [vmem:[#allocation1] ss:$9 sm:$0xff] %v2415
  %2538 = vst [vmem:[%s2504] ss:$9 sm:$0xff] %v2471
  %2539 = vst [vmem:[%s2506] ss:$9 sm:$0xff] %v2472
  %2540 = vst [vmem:[%s2508] ss:$9 sm:$0xff] %v2416
  %2541 = vst [vmem:[%s2510] ss:$9 sm:$0xff] %v2473
  %2542 = vst [vmem:[%s2512] ss:$9 sm:$0xff] %v2474
  %2543 = vst [vmem:[%s2514] ss:$9 sm:$0xff] %v2417
  %2544 = vst [vmem:[%s2516] ss:$9 sm:$0xff] %v2475
  %v2545 = vld [vmem:[#allocation1] sm:$0xff]
  %2546 = vst [vmem:[#allocation1] ss:$9 sm:$0xff] %v2476
  %2547 = vst [vmem:[%s2504] ss:$9 sm:$0xff] %v2418
  %2548 = vst [vmem:[%s2506] ss:$9 sm:$0xff] %v2477
  %2549 = vst [vmem:[%s2508] ss:$9 sm:$0xff] %v2478
  %2550 = vst [vmem:[%s2510] ss:$9 sm:$0xff] %v2419
  %2551 = vst [vmem:[%s2512] ss:$9 sm:$0xff] %v2479
  %2552 = vst [vmem:[%s2514] ss:$9 sm:$0xff] %v2480
  %2553 = vst [vmem:[%s2516] ss:$9 sm:$0xff] %v2420
  %v2554 = vld [vmem:[#allocation1] sm:$0xff]
  %2555 = vst [vmem:[#allocation1] ss:$9 sm:$0xff] %v2481
  %2556 = vst [vmem:[%s2504] ss:$9 sm:$0xff] %v2482
  %2557 = vst [vmem:[%s2506] ss:$9 sm:$0xff] %v2421
  %2558 = vst [vmem:[%s2508] ss:$9 sm:$0xff] %v2483
  %2559 = vst [vmem:[%s2510] ss:$9 sm:$0xff] %v2484
  %2560 = vst [vmem:[%s2512] ss:$9 sm:$0xff] %v2422
  %2561 = vst [vmem:[%s2514] ss:$9 sm:$0xff] %v2485
  %2562 = vst [vmem:[%s2516] ss:$9 sm:$0xff] %v2486
  %v2563 = vld [vmem:[#allocation1] sm:$0xff]
  %2564 = vst [vmem:[#allocation1] ss:$9 sm:$0xff] %v2423
  %2565 = vst [vmem:[%s2504] ss:$9 sm:$0xff] %v2487
  %2566 = vst [vmem:[%s2506] ss:$9 sm:$0xff] %v2488
  %2567 = vst [vmem:[%s2508] ss:$9 sm:$0xff] %v2424
  %2568 = vst [vmem:[%s2510] ss:$9 sm:$0xff] %v2489
  %2569 = vst [vmem:[%s2512] ss:$9 sm:$0xff] %v2490
  %2570 = vst [vmem:[%s2514] ss:$9 sm:$0xff] %v2425
  %2571 = vst [vmem:[%s2516] ss:$9 sm:$0xff] %v2491
  %v2572 = vld [vmem:[#allocation1] sm:$0xff]
  %2573 = vst [vmem:[#allocation1] ss:$9 sm:$0xff] %v2492
  %2574 = vst [vmem:[%s2504] ss:$9 sm:$0xff] %v2426
  %2575 = vst [vmem:[%s2506] ss:$9 sm:$0xff] %v2493
  %2576 = vst [vmem:[%s2508] ss:$9 sm:$0xff] %v2494
  %2577 = vst [vmem:[%s2510] ss:$9 sm:$0xff] %v2427
  %2578 = vst [vmem:[%s2512] ss:$9 sm:$0xff] %v2495
  %2579 = vst [vmem:[%s2514] ss:$9 sm:$0xff] %v2496
  %2580 = vst [vmem:[%s2516] ss:$9 sm:$0xff] %v2428
  %v2581 = vld [vmem:[#allocation1] sm:$0xff]
  %2582 = vst [vmem:[#allocation1] ss:$9 sm:$0xff] %v2497
  %2583 = vst [vmem:[%s2504] ss:$9 sm:$0xff] %v2498
  %2584 = vst [vmem:[%s2506] ss:$9 sm:$0xff] %v2429
  %2585 = vst [vmem:[%s2508] ss:$9 sm:$0xff] %v2499
  %2586 = vst [vmem:[%s2510] ss:$9 sm:$0xff] %v2500
  %2587 = vst [vmem:[%s2512] ss:$9 sm:$0xff] %v2430
  %2588 = vst [vmem:[%s2514] ss:$9 sm:$0xff] %v2501
  %2589 = vst [vmem:[%s2516] ss:$9 sm:$0xff] %v2502
  %v2590 = vld [vmem:[#allocation1] sm:$0xff]
  %v2600 = vpack.c.bf16 %v2527, %v2518
  %v2601 = vpack.c.bf16 %v2545, %v2536
  %v2602 = vpack.c.bf16 %v2563, %v2554
  %v2603 = vpack.c.bf16 %v2581, %v2572
  %v2604 = vpack.c.bf16 %v2590, %v2590
  %v2606 = vsel %vm235, %v2600, 0
  %v2609 = vsel %vm235, %v2601, 0
  %v2612 = vsel %vm235, %v2602, 0
  %v2615 = vsel %vm235, %v2603, 0
  %v2618 = vsel %vm235, %v2604, 0
  %2620 = vmatpush.bf16.msra.mxu0 0
  %2621 = vmatpush.bf16.msra.mxu0 0
  %2622 = vmatpush.bf16.msra.mxu0 0
  %2623 = vmatpush.bf16.msra.mxu0 0
  %2624 = vmatpush.bf16.msra.mxu0 0
  %2625 = vmatpush.bf16.msra.mxu0 0
  %2626 = vmatpush.bf16.msra.mxu0 %v517
  %2627 = vmatpush.bf16.msra.mxu0 %v516
  %2628 = vmatmul.bf16.gmra.mxu0 %v2606
  %v2629 = vpop.f32.mrf.mxu0
  %v2630 = vadd.f32 0.0, %v2629
  %v2631 = vpop.f32.mrf.mxu0
  %v2632 = vadd.f32 0.0, %v2631
  %2633 = vmatmul.bf16.gmra.mxu0 %v2609
  %v2634 = vpop.f32.mrf.mxu0
  %v2635 = vadd.f32 0.0, %v2634
  %v2636 = vpop.f32.mrf.mxu0
  %v2637 = vadd.f32 0.0, %v2636
  %2638 = vmatmul.bf16.gmra.mxu0 %v2612
  %v2639 = vpop.f32.mrf.mxu0
  %v2640 = vadd.f32 0.0, %v2639
  %v2641 = vpop.f32.mrf.mxu0
  %v2642 = vadd.f32 0.0, %v2641
  %2643 = vmatmul.bf16.gmra.mxu0 %v2615
  %v2644 = vpop.f32.mrf.mxu0
  %v2645 = vadd.f32 0.0, %v2644
  %v2646 = vpop.f32.mrf.mxu0
  %v2647 = vadd.f32 0.0, %v2646
  %2648 = vmatmul.bf16.gmra.mxu0 %v2618
  %v2649 = vpop.f32.mrf.mxu0
  %v2650 = vadd.f32 0.0, %v2649
  %v2651 = vpop.f32.mrf.mxu0
  %2652 = vdwg.mxu0
  %v2662 = vrot.slane %v2630, 1
  %v2663 = vrot.slane %v2630, 2
  %v2664 = vrot.slane %v2630, 3
  %v2665 = vrot.slane %v2630, 4
  %v2666 = vrot.slane %v2630, 5
  %v2667 = vrot.slane %v2630, 6
  %v2668 = vrot.slane %v2630, 7
  %v2669 = vrot.slane %v2632, 1
  %v2670 = vrot.slane %v2632, 2
  %v2671 = vrot.slane %v2632, 3
  %v2672 = vrot.slane %v2632, 4
  %v2673 = vrot.slane %v2632, 5
  %v2674 = vrot.slane %v2632, 6
  %v2675 = vrot.slane %v2632, 7
  %v2676 = vrot.slane %v2635, 1
  %v2677 = vrot.slane %v2635, 2
  %v2678 = vrot.slane %v2635, 3
  %v2679 = vrot.slane %v2635, 4
  %v2680 = vrot.slane %v2635, 5
  %v2681 = vrot.slane %v2635, 6
  %v2682 = vrot.slane %v2635, 7
  %v2683 = vrot.slane %v2637, 1
  %v2684 = vrot.slane %v2637, 2
  %v2685 = vrot.slane %v2637, 3
  %v2686 = vrot.slane %v2637, 4
  %v2687 = vrot.slane %v2637, 5
  %v2688 = vrot.slane %v2637, 6
  %v2689 = vrot.slane %v2637, 7
  %v2690 = vrot.slane %v2640, 1
  %v2691 = vrot.slane %v2640, 2
  %v2692 = vrot.slane %v2640, 3
  %v2693 = vrot.slane %v2640, 4
  %v2694 = vrot.slane %v2640, 5
  %v2695 = vrot.slane %v2640, 6
  %v2696 = vrot.slane %v2640, 7
  %v2697 = vrot.slane %v2642, 1
  %v2698 = vrot.slane %v2642, 2
  %v2699 = vrot.slane %v2642, 3
  %v2700 = vrot.slane %v2642, 4
  %v2701 = vrot.slane %v2642, 5
  %v2702 = vrot.slane %v2642, 6
  %v2703 = vrot.slane %v2642, 7
  %v2704 = vrot.slane %v2645, 1
  %v2705 = vrot.slane %v2645, 2
  %v2706 = vrot.slane %v2645, 3
  %v2707 = vrot.slane %v2645, 4
  %v2708 = vrot.slane %v2645, 5
  %v2709 = vrot.slane %v2645, 6
  %v2710 = vrot.slane %v2645, 7
  %v2711 = vrot.slane %v2647, 1
  %v2712 = vrot.slane %v2647, 2
  %v2713 = vrot.slane %v2647, 3
  %v2714 = vrot.slane %v2647, 4
  %v2715 = vrot.slane %v2647, 5
  %v2716 = vrot.slane %v2647, 6
  %v2717 = vrot.slane %v2647, 7
  %v2718 = vrot.slane %v2650, 1
  %v2719 = vrot.slane %v2650, 2
  %v2720 = vrot.slane %v2650, 3
  %v2721 = vrot.slane %v2650, 4
  %v2722 = vrot.slane %v2650, 5
  %v2723 = vrot.slane %v2650, 6
  %v2724 = vrot.slane %v2650, 7
  %2788 = vst [vmem:[#allocation1] ss:$9 sm:$0xff] %v2630
  %s2789 = scalar_lea.vmem [#allocation1], 1
  %2790 = vst [vmem:[%s2789] ss:$9 sm:$0xff] %v2662
  %s2791 = scalar_lea.vmem [#allocation1], 2
  %2792 = vst [vmem:[%s2791] ss:$9 sm:$0xff] %v2663
  %v2793 = vld [vmem:[#allocation1] sm:$0xff]
  %2794 = vst [vmem:[#allocation1] ss:$9 sm:$0xff] %v2664
  %2795 = vst [vmem:[%s2789] ss:$9 sm:$0xff] %v2665
  %2796 = vst [vmem:[%s2791] ss:$9 sm:$0xff] %v2666
  %v2797 = vld [vmem:[#allocation1] sm:$0xff]
  %2798 = vst [vmem:[#allocation1] ss:$9 sm:$0xff] %v2667
  %2799 = vst [vmem:[%s2789] ss:$9 sm:$0xff] %v2668
  %2800 = vst [vmem:[%s2791] ss:$9 sm:$0xff] %v2632
  %v2801 = vld [vmem:[#allocation1] sm:$0xff]
  %2802 = vst [vmem:[#allocation1] ss:$9 sm:$0xff] %v2669
  %2803 = vst [vmem:[%s2789] ss:$9 sm:$0xff] %v2670
  %2804 = vst [vmem:[%s2791] ss:$9 sm:$0xff] %v2671
  %v2805 = vld [vmem:[#allocation1] sm:$0xff]
  %2806 = vst [vmem:[#allocation1] ss:$9 sm:$0xff] %v2672
  %2807 = vst [vmem:[%s2789] ss:$9 sm:$0xff] %v2673
  %2808 = vst [vmem:[%s2791] ss:$9 sm:$0xff] %v2674
  %v2809 = vld [vmem:[#allocation1] sm:$0xff]
  %2810 = vst [vmem:[#allocation1] ss:$9 sm:$0xff] %v2675
  %2811 = vst [vmem:[%s2789] ss:$9 sm:$0xff] %v2635
  %2812 = vst [vmem:[%s2791] ss:$9 sm:$0xff] %v2676
  %v2813 = vld [vmem:[#allocation1] sm:$0xff]
  %2814 = vst [vmem:[#allocation1] ss:$9 sm:$0xff] %v2677
  %2815 = vst [vmem:[%s2789] ss:$9 sm:$0xff] %v2678
  %2816 = vst [vmem:[%s2791] ss:$9 sm:$0xff] %v2679
  %v2817 = vld [vmem:[#allocation1] sm:$0xff]
  %2818 = vst [vmem:[#allocation1] ss:$9 sm:$0xff] %v2680
  %2819 = vst [vmem:[%s2789] ss:$9 sm:$0xff] %v2681
  %2820 = vst [vmem:[%s2791] ss:$9 sm:$0xff] %v2682
  %v2821 = vld [vmem:[#allocation1] sm:$0xff]
  %2822 = vst [vmem:[#allocation1] ss:$9 sm:$0xff] %v2637
  %2823 = vst [vmem:[%s2789] ss:$9 sm:$0xff] %v2683
  %2824 = vst [vmem:[%s2791] ss:$9 sm:$0xff] %v2684
  %v2825 = vld [vmem:[#allocation1] sm:$0xff]
  %2826 = vst [vmem:[#allocation1] ss:$9 sm:$0xff] %v2685
  %2827 = vst [vmem:[%s2789] ss:$9 sm:$0xff] %v2686
  %2828 = vst [vmem:[%s2791] ss:$9 sm:$0xff] %v2687
  %v2829 = vld [vmem:[#allocation1] sm:$0xff]
  %2830 = vst [vmem:[#allocation1] ss:$9 sm:$0xff] %v2688
  %2831 = vst [vmem:[%s2789] ss:$9 sm:$0xff] %v2689
  %2832 = vst [vmem:[%s2791] ss:$9 sm:$0xff] %v2640
  %v2833 = vld [vmem:[#allocation1] sm:$0xff]
  %2834 = vst [vmem:[#allocation1] ss:$9 sm:$0xff] %v2690
  %2835 = vst [vmem:[%s2789] ss:$9 sm:$0xff] %v2691
  %2836 = vst [vmem:[%s2791] ss:$9 sm:$0xff] %v2692
  %v2837 = vld [vmem:[#allocation1] sm:$0xff]
  %2838 = vst [vmem:[#allocation1] ss:$9 sm:$0xff] %v2693
  %2839 = vst [vmem:[%s2789] ss:$9 sm:$0xff] %v2694
  %2840 = vst [vmem:[%s2791] ss:$9 sm:$0xff] %v2695
  %v2841 = vld [vmem:[#allocation1] sm:$0xff]
  %2842 = vst [vmem:[#allocation1] ss:$9 sm:$0xff] %v2696
  %2843 = vst [vmem:[%s2789] ss:$9 sm:$0xff] %v2642
  %2844 = vst [vmem:[%s2791] ss:$9 sm:$0xff] %v2697
  %v2845 = vld [vmem:[#allocation1] sm:$0xff]
  %2846 = vst [vmem:[#allocation1] ss:$9 sm:$0xff] %v2698
  %2847 = vst [vmem:[%s2789] ss:$9 sm:$0xff] %v2699
  %2848 = vst [vmem:[%s2791] ss:$9 sm:$0xff] %v2700
  %v2849 = vld [vmem:[#allocation1] sm:$0xff]
  %2850 = vst [vmem:[#allocation1] ss:$9 sm:$0xff] %v2701
  %2851 = vst [vmem:[%s2789] ss:$9 sm:$0xff] %v2702
  %2852 = vst [vmem:[%s2791] ss:$9 sm:$0xff] %v2703
  %v2853 = vld [vmem:[#allocation1] sm:$0xff]
  %2854 = vst [vmem:[#allocation1] ss:$9 sm:$0xff] %v2645
  %2855 = vst [vmem:[%s2789] ss:$9 sm:$0xff] %v2704
  %2856 = vst [vmem:[%s2791] ss:$9 sm:$0xff] %v2705
  %v2857 = vld [vmem:[#allocation1] sm:$0xff]
  %2858 = vst [vmem:[#allocation1] ss:$9 sm:$0xff] %v2706
  %2859 = vst [vmem:[%s2789] ss:$9 sm:$0xff] %v2707
  %2860 = vst [vmem:[%s2791] ss:$9 sm:$0xff] %v2708
  %v2861 = vld [vmem:[#allocation1] sm:$0xff]
  %2862 = vst [vmem:[#allocation1] ss:$9 sm:$0xff] %v2709
  %2863 = vst [vmem:[%s2789] ss:$9 sm:$0xff] %v2710
  %2864 = vst [vmem:[%s2791] ss:$9 sm:$0xff] %v2647
  %v2865 = vld [vmem:[#allocation1] sm:$0xff]
  %2866 = vst [vmem:[#allocation1] ss:$9 sm:$0xff] %v2711
  %2867 = vst [vmem:[%s2789] ss:$9 sm:$0xff] %v2712
  %2868 = vst [vmem:[%s2791] ss:$9 sm:$0xff] %v2713
  %v2869 = vld [vmem:[#allocation1] sm:$0xff]
  %2870 = vst [vmem:[#allocation1] ss:$9 sm:$0xff] %v2714
  %2871 = vst [vmem:[%s2789] ss:$9 sm:$0xff] %v2715
  %2872 = vst [vmem:[%s2791] ss:$9 sm:$0xff] %v2716
  %v2873 = vld [vmem:[#allocation1] sm:$0xff]
  %2874 = vst [vmem:[#allocation1] ss:$9 sm:$0xff] %v2717
  %2875 = vst [vmem:[%s2789] ss:$9 sm:$0xff] %v2650
  %2876 = vst [vmem:[%s2791] ss:$9 sm:$0xff] %v2718
  %v2877 = vld [vmem:[#allocation1] sm:$0xff]
  %2878 = vst [vmem:[#allocation1] ss:$9 sm:$0xff] %v2719
  %2879 = vst [vmem:[%s2789] ss:$9 sm:$0xff] %v2720
  %2880 = vst [vmem:[%s2791] ss:$9 sm:$0xff] %v2721
  %v2881 = vld [vmem:[#allocation1] sm:$0xff]
  %2882 = vst [vmem:[#allocation1] ss:$9 sm:$0xff] %v2722
  %2883 = vst [vmem:[%s2789] ss:$9 sm:$0xff] %v2723
  %2884 = vst [vmem:[%s2791] ss:$9 sm:$0xff] %v2724
  %v2885 = vld [vmem:[#allocation1] sm:$0xff]
  %vm2910 = vcmask 59392
  %v2911 = vsel %vm2910, %v2793, -inf
  %v2912 = vrot.slane %v2911, 4
  %v2913 = vmax.f32 %v2911, %v2912
  %v2914 = vrot.slane %v2913, 2
  %v2915 = vmax.f32 %v2913, %v2914
  %v2916 = vrot.slane %v2915, 1
  %v2917 = vmax.f32 %v2915, %v2916
  %v2918 = vsel %vm2910, %v2797, -inf
  %v2919 = vrot.slane %v2918, 4
  %v2920 = vmax.f32 %v2918, %v2919
  %v2921 = vrot.slane %v2920, 2
  %v2922 = vmax.f32 %v2920, %v2921
  %v2923 = vrot.slane %v2922, 1
  %v2924 = vmax.f32 %v2922, %v2923
  %v2925 = vsel %vm2910, %v2801, -inf
  %v2926 = vrot.slane %v2925, 4
  %v2927 = vmax.f32 %v2925, %v2926
  %v2928 = vrot.slane %v2927, 2
  %v2929 = vmax.f32 %v2927, %v2928
  %v2930 = vrot.slane %v2929, 1
  %v2931 = vmax.f32 %v2929, %v2930
  %v2932 = vsel %vm2910, %v2805, -inf
  %v2933 = vrot.slane %v2932, 4
  %v2934 = vmax.f32 %v2932, %v2933
  %v2935 = vrot.slane %v2934, 2
  %v2936 = vmax.f32 %v2934, %v2935
  %v2937 = vrot.slane %v2936, 1
  %v2938 = vmax.f32 %v2936, %v2937
  %v2939 = vsel %vm2910, %v2809, -inf
  %v2940 = vrot.slane %v2939, 4
  %v2941 = vmax.f32 %v2939, %v2940
  %v2942 = vrot.slane %v2941, 2
  %v2943 = vmax.f32 %v2941, %v2942
  %v2944 = vrot.slane %v2943, 1
  %v2945 = vmax.f32 %v2943, %v2944
  %v2946 = vsel %vm2910, %v2813, -inf
  %v2947 = vrot.slane %v2946, 4
  %v2948 = vmax.f32 %v2946, %v2947
  %v2949 = vrot.slane %v2948, 2
  %v2950 = vmax.f32 %v2948, %v2949
  %v2951 = vrot.slane %v2950, 1
  %v2952 = vmax.f32 %v2950, %v2951
  %v2953 = vsel %vm2910, %v2817, -inf
  %v2954 = vrot.slane %v2953, 4
  %v2955 = vmax.f32 %v2953, %v2954
  %v2956 = vrot.slane %v2955, 2
  %v2957 = vmax.f32 %v2955, %v2956
  %v2958 = vrot.slane %v2957, 1
  %v2959 = vmax.f32 %v2957, %v2958
  %v2960 = vsel %vm2910, %v2821, -inf
  %v2961 = vrot.slane %v2960, 4
  %v2962 = vmax.f32 %v2960, %v2961
  %v2963 = vrot.slane %v2962, 2
  %v2964 = vmax.f32 %v2962, %v2963
  %v2965 = vrot.slane %v2964, 1
  %v2966 = vmax.f32 %v2964, %v2965
  %v2967 = vsel %vm2910, %v2825, -inf
  %v2968 = vrot.slane %v2967, 4
  %v2969 = vmax.f32 %v2967, %v2968
  %v2970 = vrot.slane %v2969, 2
  %v2971 = vmax.f32 %v2969, %v2970
  %v2972 = vrot.slane %v2971, 1
  %v2973 = vmax.f32 %v2971, %v2972
  %v2974 = vsel %vm2910, %v2829, -inf
  %v2975 = vrot.slane %v2974, 4
  %v2976 = vmax.f32 %v2974, %v2975
  %v2977 = vrot.slane %v2976, 2
  %v2978 = vmax.f32 %v2976, %v2977
  %v2979 = vrot.slane %v2978, 1
  %v2980 = vmax.f32 %v2978, %v2979
  %v2981 = vsel %vm2910, %v2833, -inf
  %v2982 = vrot.slane %v2981, 4
  %v2983 = vmax.f32 %v2981, %v2982
  %v2984 = vrot.slane %v2983, 2
  %v2985 = vmax.f32 %v2983, %v2984
  %v2986 = vrot.slane %v2985, 1
  %v2987 = vmax.f32 %v2985, %v2986
  %v2988 = vsel %vm2910, %v2837, -inf
  %v2989 = vrot.slane %v2988, 4
  %v2990 = vmax.f32 %v2988, %v2989
  %v2991 = vrot.slane %v2990, 2
  %v2992 = vmax.f32 %v2990, %v2991
  %v2993 = vrot.slane %v2992, 1
  %v2994 = vmax.f32 %v2992, %v2993
  %v2995 = vsel %vm2910, %v2841, -inf
  %v2996 = vrot.slane %v2995, 4
  %v2997 = vmax.f32 %v2995, %v2996
  %v2998 = vrot.slane %v2997, 2
  %v2999 = vmax.f32 %v2997, %v2998
  %v3000 = vrot.slane %v2999, 1
  %v3001 = vmax.f32 %v2999, %v3000
  %v3002 = vsel %vm2910, %v2845, -inf
  %v3003 = vrot.slane %v3002, 4
  %v3004 = vmax.f32 %v3002, %v3003
  %v3005 = vrot.slane %v3004, 2
  %v3006 = vmax.f32 %v3004, %v3005
  %v3007 = vrot.slane %v3006, 1
  %v3008 = vmax.f32 %v3006, %v3007
  %v3009 = vsel %vm2910, %v2849, -inf
  %v3010 = vrot.slane %v3009, 4
  %v3011 = vmax.f32 %v3009, %v3010
  %v3012 = vrot.slane %v3011, 2
  %v3013 = vmax.f32 %v3011, %v3012
  %v3014 = vrot.slane %v3013, 1
  %v3015 = vmax.f32 %v3013, %v3014
  %v3016 = vsel %vm2910, %v2853, -inf
  %v3017 = vrot.slane %v3016, 4
  %v3018 = vmax.f32 %v3016, %v3017
  %v3019 = vrot.slane %v3018, 2
  %v3020 = vmax.f32 %v3018, %v3019
  %v3021 = vrot.slane %v3020, 1
  %v3022 = vmax.f32 %v3020, %v3021
  %v3023 = vsel %vm2910, %v2857, -inf
  %v3024 = vrot.slane %v3023, 4
  %v3025 = vmax.f32 %v3023, %v3024
  %v3026 = vrot.slane %v3025, 2
  %v3027 = vmax.f32 %v3025, %v3026
  %v3028 = vrot.slane %v3027, 1
  %v3029 = vmax.f32 %v3027, %v3028
  %v3030 = vsel %vm2910, %v2861, -inf
  %v3031 = vrot.slane %v3030, 4
  %v3032 = vmax.f32 %v3030, %v3031
  %v3033 = vrot.slane %v3032, 2
  %v3034 = vmax.f32 %v3032, %v3033
  %v3035 = vrot.slane %v3034, 1
  %v3036 = vmax.f32 %v3034, %v3035
  %v3037 = vsel %vm2910, %v2865, -inf
  %v3038 = vrot.slane %v3037, 4
  %v3039 = vmax.f32 %v3037, %v3038
  %v3040 = vrot.slane %v3039, 2
  %v3041 = vmax.f32 %v3039, %v3040
  %v3042 = vrot.slane %v3041, 1
  %v3043 = vmax.f32 %v3041, %v3042
  %v3044 = vsel %vm2910, %v2869, -inf
  %v3045 = vrot.slane %v3044, 4
  %v3046 = vmax.f32 %v3044, %v3045
  %v3047 = vrot.slane %v3046, 2
  %v3048 = vmax.f32 %v3046, %v3047
  %v3049 = vrot.slane %v3048, 1
  %v3050 = vmax.f32 %v3048, %v3049
  %v3051 = vsel %vm2910, %v2873, -inf
  %v3052 = vrot.slane %v3051, 4
  %v3053 = vmax.f32 %v3051, %v3052
  %v3054 = vrot.slane %v3053, 2
  %v3055 = vmax.f32 %v3053, %v3054
  %v3056 = vrot.slane %v3055, 1
  %v3057 = vmax.f32 %v3055, %v3056
  %v3058 = vsel %vm2910, %v2877, -inf
  %v3059 = vrot.slane %v3058, 4
  %v3060 = vmax.f32 %v3058, %v3059
  %v3061 = vrot.slane %v3060, 2
  %v3062 = vmax.f32 %v3060, %v3061
  %v3063 = vrot.slane %v3062, 1
  %v3064 = vmax.f32 %v3062, %v3063
  %v3065 = vsel %vm2910, %v2881, -inf
  %v3066 = vrot.slane %v3065, 4
  %v3067 = vmax.f32 %v3065, %v3066
  %v3068 = vrot.slane %v3067, 2
  %v3069 = vmax.f32 %v3067, %v3068
  %v3070 = vrot.slane %v3069, 1
  %v3071 = vmax.f32 %v3069, %v3070
  %v3072 = vsel %vm2910, %v2885, -inf
  %v3073 = vrot.slane %v3072, 4
  %v3074 = vmax.f32 %v3072, %v3073
  %v3075 = vrot.slane %v3074, 2
  %v3076 = vmax.f32 %v3074, %v3075
  %v3077 = vrot.slane %v3076, 1
  %v3078 = vmax.f32 %v3076, %v3077
  %v3103 = vrot.slane %v2917, 1
  %v3104 = vrot.slane %v2917, 2
  %v3105 = vrot.slane %v2924, 1
  %v3106 = vrot.slane %v2924, 2
  %v3107 = vrot.slane %v2931, 1
  %v3108 = vrot.slane %v2931, 2
  %v3109 = vrot.slane %v2938, 1
  %v3110 = vrot.slane %v2938, 2
  %v3111 = vrot.slane %v2945, 1
  %v3112 = vrot.slane %v2945, 2
  %v3113 = vrot.slane %v2952, 1
  %v3114 = vrot.slane %v2952, 2
  %v3115 = vrot.slane %v2959, 1
  %v3116 = vrot.slane %v2959, 2
  %v3117 = vrot.slane %v2966, 1
  %v3118 = vrot.slane %v2966, 2
  %v3119 = vrot.slane %v2973, 1
  %v3120 = vrot.slane %v2973, 2
  %v3121 = vrot.slane %v2980, 1
  %v3122 = vrot.slane %v2980, 2
  %v3123 = vrot.slane %v2987, 1
  %v3124 = vrot.slane %v2987, 2
  %v3125 = vrot.slane %v2994, 1
  %v3126 = vrot.slane %v2994, 2
  %v3127 = vrot.slane %v3001, 1
  %v3128 = vrot.slane %v3001, 2
  %v3129 = vrot.slane %v3008, 1
  %v3130 = vrot.slane %v3008, 2
  %v3131 = vrot.slane %v3015, 1
  %v3132 = vrot.slane %v3015, 2
  %v3133 = vrot.slane %v3022, 1
  %v3134 = vrot.slane %v3022, 2
  %v3135 = vrot.slane %v3029, 1
  %v3136 = vrot.slane %v3029, 2
  %v3137 = vrot.slane %v3036, 1
  %v3138 = vrot.slane %v3036, 2
  %v3139 = vrot.slane %v3043, 1
  %v3140 = vrot.slane %v3043, 2
  %v3141 = vrot.slane %v3050, 1
  %v3142 = vrot.slane %v3050, 2
  %v3143 = vrot.slane %v3057, 1
  %v3144 = vrot.slane %v3057, 2
  %v3145 = vrot.slane %v3064, 1
  %v3146 = vrot.slane %v3064, 2
  %v3147 = vrot.slane %v3071, 1
  %v3148 = vrot.slane %v3071, 2
  %v3149 = vrot.slane %v3078, 1
  %v3150 = vrot.slane %v3078, 2
  %v3199 = vsub.f32 %v2630, %v2917
  %v3200 = vsub.f32 %v2662, %v3103
  %v3201 = vsub.f32 %v2663, %v3104
  %v3202 = vsub.f32 %v2664, %v2924
  %v3203 = vsub.f32 %v2665, %v3105
  %v3204 = vsub.f32 %v2666, %v3106
  %v3205 = vsub.f32 %v2667, %v2931
  %v3206 = vsub.f32 %v2668, %v3107
  %v3207 = vsub.f32 %v2632, %v3108
  %v3208 = vsub.f32 %v2669, %v2938
  %v3209 = vsub.f32 %v2670, %v3109
  %v3210 = vsub.f32 %v2671, %v3110
  %v3211 = vsub.f32 %v2672, %v2945
  %v3212 = vsub.f32 %v2673, %v3111
  %v3213 = vsub.f32 %v2674, %v3112
  %v3214 = vsub.f32 %v2675, %v2952
  %v3215 = vsub.f32 %v2635, %v3113
  %v3216 = vsub.f32 %v2676, %v3114
  %v3217 = vsub.f32 %v2677, %v2959
  %v3218 = vsub.f32 %v2678, %v3115
  %v3219 = vsub.f32 %v2679, %v3116
  %v3220 = vsub.f32 %v2680, %v2966
  %v3221 = vsub.f32 %v2681, %v3117
  %v3222 = vsub.f32 %v2682, %v3118
  %v3223 = vsub.f32 %v2637, %v2973
  %v3224 = vsub.f32 %v2683, %v3119
  %v3225 = vsub.f32 %v2684, %v3120
  %v3226 = vsub.f32 %v2685, %v2980
  %v3227 = vsub.f32 %v2686, %v3121
  %v3228 = vsub.f32 %v2687, %v3122
  %v3229 = vsub.f32 %v2688, %v2987
  %v3230 = vsub.f32 %v2689, %v3123
  %v3231 = vsub.f32 %v2640, %v3124
  %v3232 = vsub.f32 %v2690, %v2994
  %v3233 = vsub.f32 %v2691, %v3125
  %v3234 = vsub.f32 %v2692, %v3126
  %v3235 = vsub.f32 %v2693, %v3001
  %v3236 = vsub.f32 %v2694, %v3127
  %v3237 = vsub.f32 %v2695, %v3128
  %v3238 = vsub.f32 %v2696, %v3008
  %v3239 = vsub.f32 %v2642, %v3129
  %v3240 = vsub.f32 %v2697, %v3130
  %v3241 = vsub.f32 %v2698, %v3015
  %v3242 = vsub.f32 %v2699, %v3131
  %v3243 = vsub.f32 %v2700, %v3132
  %v3244 = vsub.f32 %v2701, %v3022
  %v3245 = vsub.f32 %v2702, %v3133
  %v3246 = vsub.f32 %v2703, %v3134
  %v3247 = vsub.f32 %v2645, %v3029
  %v3248 = vsub.f32 %v2704, %v3135
  %v3249 = vsub.f32 %v2705, %v3136
  %v3250 = vsub.f32 %v2706, %v3036
  %v3251 = vsub.f32 %v2707, %v3137
  %v3252 = vsub.f32 %v2708, %v3138
  %v3253 = vsub.f32 %v2709, %v3043
  %v3254 = vsub.f32 %v2710, %v3139
  %v3255 = vsub.f32 %v2647, %v3140
  %v3256 = vsub.f32 %v2711, %v3050
  %v3257 = vsub.f32 %v2712, %v3141
  %v3258 = vsub.f32 %v2713, %v3142
  %v3259 = vsub.f32 %v2714, %v3057
  %v3260 = vsub.f32 %v2715, %v3143
  %v3261 = vsub.f32 %v2716, %v3144
  %v3262 = vsub.f32 %v2717, %v3064
  %v3263 = vsub.f32 %v2650, %v3145
  %v3264 = vsub.f32 %v2718, %v3146
  %v3265 = vsub.f32 %v2719, %v3071
  %v3266 = vsub.f32 %v2720, %v3147
  %v3267 = vsub.f32 %v2721, %v3148
  %v3268 = vsub.f32 %v2722, %v3078
  %v3269 = vsub.f32 %v2723, %v3149
  %v3270 = vsub.f32 %v2724, %v3150
  %v3271 = vmul.f32 %v3199, 1.442695
  %v3272 = vpow.pop %v3271
  %v3273 = vmul.f32 %v3200, 1.442695
  %v3274 = vpow.pop %v3273
  %v3275 = vmul.f32 %v3201, 1.442695
  %v3276 = vpow.pop %v3275
  %v3277 = vmul.f32 %v3202, 1.442695
  %v3278 = vpow.pop %v3277
  %v3279 = vmul.f32 %v3203, 1.442695
  %v3280 = vpow.pop %v3279
  %v3281 = vmul.f32 %v3204, 1.442695
  %v3282 = vpow.pop %v3281
  %v3283 = vmul.f32 %v3205, 1.442695
  %v3284 = vpow.pop %v3283
  %v3285 = vmul.f32 %v3206, 1.442695
  %v3286 = vpow.pop %v3285
  %v3287 = vmul.f32 %v3207, 1.442695
  %v3288 = vpow.pop %v3287
  %v3289 = vmul.f32 %v3208, 1.442695
  %v3290 = vpow.pop %v3289
  %v3291 = vmul.f32 %v3209, 1.442695
  %v3292 = vpow.pop %v3291
  %v3293 = vmul.f32 %v3210, 1.442695
  %v3294 = vpow.pop %v3293
  %v3295 = vmul.f32 %v3211, 1.442695
  %v3296 = vpow.pop %v3295
  %v3297 = vmul.f32 %v3212, 1.442695
  %v3298 = vpow.pop %v3297
  %v3299 = vmul.f32 %v3213, 1.442695
  %v3300 = vpow.pop %v3299
  %v3301 = vmul.f32 %v3214, 1.442695
  %v3302 = vpow.pop %v3301
  %v3303 = vmul.f32 %v3215, 1.442695
  %v3304 = vpow.pop %v3303
  %v3305 = vmul.f32 %v3216, 1.442695
  %v3306 = vpow.pop %v3305
  %v3307 = vmul.f32 %v3217, 1.442695
  %v3308 = vpow.pop %v3307
  %v3309 = vmul.f32 %v3218, 1.442695
  %v3310 = vpow.pop %v3309
  %v3311 = vmul.f32 %v3219, 1.442695
  %v3312 = vpow.pop %v3311
  %v3313 = vmul.f32 %v3220, 1.442695
  %v3314 = vpow.pop %v3313
  %v3315 = vmul.f32 %v3221, 1.442695
  %v3316 = vpow.pop %v3315
  %v3317 = vmul.f32 %v3222, 1.442695
  %v3318 = vpow.pop %v3317
  %v3319 = vmul.f32 %v3223, 1.442695
  %v3320 = vpow.pop %v3319
  %v3321 = vmul.f32 %v3224, 1.442695
  %v3322 = vpow.pop %v3321
  %v3323 = vmul.f32 %v3225, 1.442695
  %v3324 = vpow.pop %v3323
  %v3325 = vmul.f32 %v3226, 1.442695
  %v3326 = vpow.pop %v3325
  %v3327 = vmul.f32 %v3227, 1.442695
  %v3328 = vpow.pop %v3327
  %v3329 = vmul.f32 %v3228, 1.442695
  %v3330 = vpow.pop %v3329
  %v3331 = vmul.f32 %v3229, 1.442695
  %v3332 = vpow.pop %v3331
  %v3333 = vmul.f32 %v3230, 1.442695
  %v3334 = vpow.pop %v3333
  %v3335 = vmul.f32 %v3231, 1.442695
  %v3336 = vpow.pop %v3335
  %v3337 = vmul.f32 %v3232, 1.442695
  %v3338 = vpow.pop %v3337
  %v3339 = vmul.f32 %v3233, 1.442695
  %v3340 = vpow.pop %v3339
  %v3341 = vmul.f32 %v3234, 1.442695
  %v3342 = vpow.pop %v3341
  %v3343 = vmul.f32 %v3235, 1.442695
  %v3344 = vpow.pop %v3343
  %v3345 = vmul.f32 %v3236, 1.442695
  %v3346 = vpow.pop %v3345
  %v3347 = vmul.f32 %v3237, 1.442695
  %v3348 = vpow.pop %v3347
  %v3349 = vmul.f32 %v3238, 1.442695
  %v3350 = vpow.pop %v3349
  %v3351 = vmul.f32 %v3239, 1.442695
  %v3352 = vpow.pop %v3351
  %v3353 = vmul.f32 %v3240, 1.442695
  %v3354 = vpow.pop %v3353
  %v3355 = vmul.f32 %v3241, 1.442695
  %v3356 = vpow.pop %v3355
  %v3357 = vmul.f32 %v3242, 1.442695
  %v3358 = vpow.pop %v3357
  %v3359 = vmul.f32 %v3243, 1.442695
  %v3360 = vpow.pop %v3359
  %v3361 = vmul.f32 %v3244, 1.442695
  %v3362 = vpow.pop %v3361
  %v3363 = vmul.f32 %v3245, 1.442695
  %v3364 = vpow.pop %v3363
  %v3365 = vmul.f32 %v3246, 1.442695
  %v3366 = vpow.pop %v3365
  %v3367 = vmul.f32 %v3247, 1.442695
  %v3368 = vpow.pop %v3367
  %v3369 = vmul.f32 %v3248, 1.442695
  %v3370 = vpow.pop %v3369
  %v3371 = vmul.f32 %v3249, 1.442695
  %v3372 = vpow.pop %v3371
  %v3373 = vmul.f32 %v3250, 1.442695
  %v3374 = vpow.pop %v3373
  %v3375 = vmul.f32 %v3251, 1.442695
  %v3376 = vpow.pop %v3375
  %v3377 = vmul.f32 %v3252, 1.442695
  %v3378 = vpow.pop %v3377
  %v3379 = vmul.f32 %v3253, 1.442695
  %v3380 = vpow.pop %v3379
  %v3381 = vmul.f32 %v3254, 1.442695
  %v3382 = vpow.pop %v3381
  %v3383 = vmul.f32 %v3255, 1.442695
  %v3384 = vpow.pop %v3383
  %v3385 = vmul.f32 %v3256, 1.442695
  %v3386 = vpow.pop %v3385
  %v3387 = vmul.f32 %v3257, 1.442695
  %v3388 = vpow.pop %v3387
  %v3389 = vmul.f32 %v3258, 1.442695
  %v3390 = vpow.pop %v3389
  %v3391 = vmul.f32 %v3259, 1.442695
  %v3392 = vpow.pop %v3391
  %v3393 = vmul.f32 %v3260, 1.442695
  %v3394 = vpow.pop %v3393
  %v3395 = vmul.f32 %v3261, 1.442695
  %v3396 = vpow.pop %v3395
  %v3397 = vmul.f32 %v3262, 1.442695
  %v3398 = vpow.pop %v3397
  %v3399 = vmul.f32 %v3263, 1.442695
  %v3400 = vpow.pop %v3399
  %v3401 = vmul.f32 %v3264, 1.442695
  %v3402 = vpow.pop %v3401
  %v3403 = vmul.f32 %v3265, 1.442695
  %v3404 = vpow.pop %v3403
  %v3405 = vmul.f32 %v3266, 1.442695
  %v3406 = vpow.pop %v3405
  %v3407 = vmul.f32 %v3267, 1.442695
  %v3408 = vpow.pop %v3407
  %v3409 = vmul.f32 %v3268, 1.442695
  %v3410 = vpow.pop %v3409
  %v3411 = vmul.f32 %v3269, 1.442695
  %v3412 = vpow.pop %v3411
  %v3413 = vmul.f32 %v3270, 1.442695
  %v3414 = vpow.pop %v3413
  %3487 = vst [vmem:[#allocation1] ss:$9 sm:$0xff] %v3272
  %s3488 = scalar_lea.vmem [#allocation1], 1
  %3489 = vst [vmem:[%s3488] ss:$9 sm:$0xff] %v3274
  %s3490 = scalar_lea.vmem [#allocation1], 2
  %3491 = vst [vmem:[%s3490] ss:$9 sm:$0xff] %v3276
  %v3492 = vld [vmem:[#allocation1] sm:$0xff]
  %3493 = vst [vmem:[#allocation1] ss:$9 sm:$0xff] %v3278
  %3494 = vst [vmem:[%s3488] ss:$9 sm:$0xff] %v3280
  %3495 = vst [vmem:[%s3490] ss:$9 sm:$0xff] %v3282
  %v3496 = vld [vmem:[#allocation1] sm:$0xff]
  %3497 = vst [vmem:[#allocation1] ss:$9 sm:$0xff] %v3284
  %3498 = vst [vmem:[%s3488] ss:$9 sm:$0xff] %v3286
  %3499 = vst [vmem:[%s3490] ss:$9 sm:$0xff] %v3288
  %v3500 = vld [vmem:[#allocation1] sm:$0xff]
  %3501 = vst [vmem:[#allocation1] ss:$9 sm:$0xff] %v3290
  %3502 = vst [vmem:[%s3488] ss:$9 sm:$0xff] %v3292
  %3503 = vst [vmem:[%s3490] ss:$9 sm:$0xff] %v3294
  %v3504 = vld [vmem:[#allocation1] sm:$0xff]
  %3505 = vst [vmem:[#allocation1] ss:$9 sm:$0xff] %v3296
  %3506 = vst [vmem:[%s3488] ss:$9 sm:$0xff] %v3298
  %3507 = vst [vmem:[%s3490] ss:$9 sm:$0xff] %v3300
  %v3508 = vld [vmem:[#allocation1] sm:$0xff]
  %3509 = vst [vmem:[#allocation1] ss:$9 sm:$0xff] %v3302
  %3510 = vst [vmem:[%s3488] ss:$9 sm:$0xff] %v3304
  %3511 = vst [vmem:[%s3490] ss:$9 sm:$0xff] %v3306
  %v3512 = vld [vmem:[#allocation1] sm:$0xff]
  %3513 = vst [vmem:[#allocation1] ss:$9 sm:$0xff] %v3308
  %3514 = vst [vmem:[%s3488] ss:$9 sm:$0xff] %v3310
  %3515 = vst [vmem:[%s3490] ss:$9 sm:$0xff] %v3312
  %v3516 = vld [vmem:[#allocation1] sm:$0xff]
  %3517 = vst [vmem:[#allocation1] ss:$9 sm:$0xff] %v3314
  %3518 = vst [vmem:[%s3488] ss:$9 sm:$0xff] %v3316
  %3519 = vst [vmem:[%s3490] ss:$9 sm:$0xff] %v3318
  %v3520 = vld [vmem:[#allocation1] sm:$0xff]
  %3521 = vst [vmem:[#allocation1] ss:$9 sm:$0xff] %v3320
  %3522 = vst [vmem:[%s3488] ss:$9 sm:$0xff] %v3322
  %3523 = vst [vmem:[%s3490] ss:$9 sm:$0xff] %v3324
  %v3524 = vld [vmem:[#allocation1] sm:$0xff]
  %3525 = vst [vmem:[#allocation1] ss:$9 sm:$0xff] %v3326
  %3526 = vst [vmem:[%s3488] ss:$9 sm:$0xff] %v3328
  %3527 = vst [vmem:[%s3490] ss:$9 sm:$0xff] %v3330
  %v3528 = vld [vmem:[#allocation1] sm:$0xff]
  %3529 = vst [vmem:[#allocation1] ss:$9 sm:$0xff] %v3332
  %3530 = vst [vmem:[%s3488] ss:$9 sm:$0xff] %v3334
  %3531 = vst [vmem:[%s3490] ss:$9 sm:$0xff] %v3336
  %v3532 = vld [vmem:[#allocation1] sm:$0xff]
  %3533 = vst [vmem:[#allocation1] ss:$9 sm:$0xff] %v3338
  %3534 = vst [vmem:[%s3488] ss:$9 sm:$0xff] %v3340
  %3535 = vst [vmem:[%s3490] ss:$9 sm:$0xff] %v3342
  %v3536 = vld [vmem:[#allocation1] sm:$0xff]
  %3537 = vst [vmem:[#allocation1] ss:$9 sm:$0xff] %v3344
  %3538 = vst [vmem:[%s3488] ss:$9 sm:$0xff] %v3346
  %3539 = vst [vmem:[%s3490] ss:$9 sm:$0xff] %v3348
  %v3540 = vld [vmem:[#allocation1] sm:$0xff]
  %3541 = vst [vmem:[#allocation1] ss:$9 sm:$0xff] %v3350
  %3542 = vst [vmem:[%s3488] ss:$9 sm:$0xff] %v3352
  %3543 = vst [vmem:[%s3490] ss:$9 sm:$0xff] %v3354
  %v3544 = vld [vmem:[#allocation1] sm:$0xff]
  %3545 = vst [vmem:[#allocation1] ss:$9 sm:$0xff] %v3356
  %3546 = vst [vmem:[%s3488] ss:$9 sm:$0xff] %v3358
  %3547 = vst [vmem:[%s3490] ss:$9 sm:$0xff] %v3360
  %v3548 = vld [vmem:[#allocation1] sm:$0xff]
  %3549 = vst [vmem:[#allocation1] ss:$9 sm:$0xff] %v3362
  %3550 = vst [vmem:[%s3488] ss:$9 sm:$0xff] %v3364
  %3551 = vst [vmem:[%s3490] ss:$9 sm:$0xff] %v3366
  %v3552 = vld [vmem:[#allocation1] sm:$0xff]
  %3553 = vst [vmem:[#allocation1] ss:$9 sm:$0xff] %v3368
  %3554 = vst [vmem:[%s3488] ss:$9 sm:$0xff] %v3370
  %3555 = vst [vmem:[%s3490] ss:$9 sm:$0xff] %v3372
  %v3556 = vld [vmem:[#allocation1] sm:$0xff]
  %3557 = vst [vmem:[#allocation1] ss:$9 sm:$0xff] %v3374
  %3558 = vst [vmem:[%s3488] ss:$9 sm:$0xff] %v3376
  %3559 = vst [vmem:[%s3490] ss:$9 sm:$0xff] %v3378
  %v3560 = vld [vmem:[#allocation1] sm:$0xff]
  %3561 = vst [vmem:[#allocation1] ss:$9 sm:$0xff] %v3380
  %3562 = vst [vmem:[%s3488] ss:$9 sm:$0xff] %v3382
  %3563 = vst [vmem:[%s3490] ss:$9 sm:$0xff] %v3384
  %v3564 = vld [vmem:[#allocation1] sm:$0xff]
  %3565 = vst [vmem:[#allocation1] ss:$9 sm:$0xff] %v3386
  %3566 = vst [vmem:[%s3488] ss:$9 sm:$0xff] %v3388
  %3567 = vst [vmem:[%s3490] ss:$9 sm:$0xff] %v3390
  %v3568 = vld [vmem:[#allocation1] sm:$0xff]
  %3569 = vst [vmem:[#allocation1] ss:$9 sm:$0xff] %v3392
  %3570 = vst [vmem:[%s3488] ss:$9 sm:$0xff] %v3394
  %3571 = vst [vmem:[%s3490] ss:$9 sm:$0xff] %v3396
  %v3572 = vld [vmem:[#allocation1] sm:$0xff]
  %3573 = vst [vmem:[#allocation1] ss:$9 sm:$0xff] %v3398
  %3574 = vst [vmem:[%s3488] ss:$9 sm:$0xff] %v3400
  %3575 = vst [vmem:[%s3490] ss:$9 sm:$0xff] %v3402
  %v3576 = vld [vmem:[#allocation1] sm:$0xff]
  %3577 = vst [vmem:[#allocation1] ss:$9 sm:$0xff] %v3404
  %3578 = vst [vmem:[%s3488] ss:$9 sm:$0xff] %v3406
  %3579 = vst [vmem:[%s3490] ss:$9 sm:$0xff] %v3408
  %v3580 = vld [vmem:[#allocation1] sm:$0xff]
  %3581 = vst [vmem:[#allocation1] ss:$9 sm:$0xff] %v3410
  %3582 = vst [vmem:[%s3488] ss:$9 sm:$0xff] %v3412
  %3583 = vst [vmem:[%s3490] ss:$9 sm:$0xff] %v3414
  %v3584 = vld [vmem:[#allocation1] sm:$0xff]
  %v3609 = vsel %vm2910, %v3492, 0.0
  %v3610 = vrot.slane %v3609, 4
  %v3611 = vadd.f32 %v3609, %v3610
  %v3612 = vrot.slane %v3611, 2
  %v3613 = vadd.f32 %v3611, %v3612
  %v3614 = vrot.slane %v3613, 1
  %v3615 = vadd.f32 %v3613, %v3614
  %v3616 = vsel %vm2910, %v3496, 0.0
  %v3617 = vrot.slane %v3616, 4
  %v3618 = vadd.f32 %v3616, %v3617
  %v3619 = vrot.slane %v3618, 2
  %v3620 = vadd.f32 %v3618, %v3619
  %v3621 = vrot.slane %v3620, 1
  %v3622 = vadd.f32 %v3620, %v3621
  %v3623 = vsel %vm2910, %v3500, 0.0
  %v3624 = vrot.slane %v3623, 4
  %v3625 = vadd.f32 %v3623, %v3624
  %v3626 = vrot.slane %v3625, 2
  %v3627 = vadd.f32 %v3625, %v3626
  %v3628 = vrot.slane %v3627, 1
  %v3629 = vadd.f32 %v3627, %v3628
  %v3630 = vsel %vm2910, %v3504, 0.0
  %v3631 = vrot.slane %v3630, 4
  %v3632 = vadd.f32 %v3630, %v3631
  %v3633 = vrot.slane %v3632, 2
  %v3634 = vadd.f32 %v3632, %v3633
  %v3635 = vrot.slane %v3634, 1
  %v3636 = vadd.f32 %v3634, %v3635
  %v3637 = vsel %vm2910, %v3508, 0.0
  %v3638 = vrot.slane %v3637, 4
  %v3639 = vadd.f32 %v3637, %v3638
  %v3640 = vrot.slane %v3639, 2
  %v3641 = vadd.f32 %v3639, %v3640
  %v3642 = vrot.slane %v3641, 1
  %v3643 = vadd.f32 %v3641, %v3642
  %v3644 = vsel %vm2910, %v3512, 0.0
  %v3645 = vrot.slane %v3644, 4
  %v3646 = vadd.f32 %v3644, %v3645
  %v3647 = vrot.slane %v3646, 2
  %v3648 = vadd.f32 %v3646, %v3647
  %v3649 = vrot.slane %v3648, 1
  %v3650 = vadd.f32 %v3648, %v3649
  %v3651 = vsel %vm2910, %v3516, 0.0
  %v3652 = vrot.slane %v3651, 4
  %v3653 = vadd.f32 %v3651, %v3652
  %v3654 = vrot.slane %v3653, 2
  %v3655 = vadd.f32 %v3653, %v3654
  %v3656 = vrot.slane %v3655, 1
  %v3657 = vadd.f32 %v3655, %v3656
  %v3658 = vsel %vm2910, %v3520, 0.0
  %v3659 = vrot.slane %v3658, 4
  %v3660 = vadd.f32 %v3658, %v3659
  %v3661 = vrot.slane %v3660, 2
  %v3662 = vadd.f32 %v3660, %v3661
  %v3663 = vrot.slane %v3662, 1
  %v3664 = vadd.f32 %v3662, %v3663
  %v3665 = vsel %vm2910, %v3524, 0.0
  %v3666 = vrot.slane %v3665, 4
  %v3667 = vadd.f32 %v3665, %v3666
  %v3668 = vrot.slane %v3667, 2
  %v3669 = vadd.f32 %v3667, %v3668
  %v3670 = vrot.slane %v3669, 1
  %v3671 = vadd.f32 %v3669, %v3670
  %v3672 = vsel %vm2910, %v3528, 0.0
  %v3673 = vrot.slane %v3672, 4
  %v3674 = vadd.f32 %v3672, %v3673
  %v3675 = vrot.slane %v3674, 2
  %v3676 = vadd.f32 %v3674, %v3675
  %v3677 = vrot.slane %v3676, 1
  %v3678 = vadd.f32 %v3676, %v3677
  %v3679 = vsel %vm2910, %v3532, 0.0
  %v3680 = vrot.slane %v3679, 4
  %v3681 = vadd.f32 %v3679, %v3680
  %v3682 = vrot.slane %v3681, 2
  %v3683 = vadd.f32 %v3681, %v3682
  %v3684 = vrot.slane %v3683, 1
  %v3685 = vadd.f32 %v3683, %v3684
  %v3686 = vsel %vm2910, %v3536, 0.0
  %v3687 = vrot.slane %v3686, 4
  %v3688 = vadd.f32 %v3686, %v3687
  %v3689 = vrot.slane %v3688, 2
  %v3690 = vadd.f32 %v3688, %v3689
  %v3691 = vrot.slane %v3690, 1
  %v3692 = vadd.f32 %v3690, %v3691
  %v3693 = vsel %vm2910, %v3540, 0.0
  %v3694 = vrot.slane %v3693, 4
  %v3695 = vadd.f32 %v3693, %v3694
  %v3696 = vrot.slane %v3695, 2
  %v3697 = vadd.f32 %v3695, %v3696
  %v3698 = vrot.slane %v3697, 1
  %v3699 = vadd.f32 %v3697, %v3698
  %v3700 = vsel %vm2910, %v3544, 0.0
  %v3701 = vrot.slane %v3700, 4
  %v3702 = vadd.f32 %v3700, %v3701
  %v3703 = vrot.slane %v3702, 2
  %v3704 = vadd.f32 %v3702, %v3703
  %v3705 = vrot.slane %v3704, 1
  %v3706 = vadd.f32 %v3704, %v3705
  %v3707 = vsel %vm2910, %v3548, 0.0
  %v3708 = vrot.slane %v3707, 4
  %v3709 = vadd.f32 %v3707, %v3708
  %v3710 = vrot.slane %v3709, 2
  %v3711 = vadd.f32 %v3709, %v3710
  %v3712 = vrot.slane %v3711, 1
  %v3713 = vadd.f32 %v3711, %v3712
  %v3714 = vsel %vm2910, %v3552, 0.0
  %v3715 = vrot.slane %v3714, 4
  %v3716 = vadd.f32 %v3714, %v3715
  %v3717 = vrot.slane %v3716, 2
  %v3718 = vadd.f32 %v3716, %v3717
  %v3719 = vrot.slane %v3718, 1
  %v3720 = vadd.f32 %v3718, %v3719
  %v3721 = vsel %vm2910, %v3556, 0.0
  %v3722 = vrot.slane %v3721, 4
  %v3723 = vadd.f32 %v3721, %v3722
  %v3724 = vrot.slane %v3723, 2
  %v3725 = vadd.f32 %v3723, %v3724
  %v3726 = vrot.slane %v3725, 1
  %v3727 = vadd.f32 %v3725, %v3726
  %v3728 = vsel %vm2910, %v3560, 0.0
  %v3729 = vrot.slane %v3728, 4
  %v3730 = vadd.f32 %v3728, %v3729
  %v3731 = vrot.slane %v3730, 2
  %v3732 = vadd.f32 %v3730, %v3731
  %v3733 = vrot.slane %v3732, 1
  %v3734 = vadd.f32 %v3732, %v3733
  %v3735 = vsel %vm2910, %v3564, 0.0
  %v3736 = vrot.slane %v3735, 4
  %v3737 = vadd.f32 %v3735, %v3736
  %v3738 = vrot.slane %v3737, 2
  %v3739 = vadd.f32 %v3737, %v3738
  %v3740 = vrot.slane %v3739, 1
  %v3741 = vadd.f32 %v3739, %v3740
  %v3742 = vsel %vm2910, %v3568, 0.0
  %v3743 = vrot.slane %v3742, 4
  %v3744 = vadd.f32 %v3742, %v3743
  %v3745 = vrot.slane %v3744, 2
  %v3746 = vadd.f32 %v3744, %v3745
  %v3747 = vrot.slane %v3746, 1
  %v3748 = vadd.f32 %v3746, %v3747
  %v3749 = vsel %vm2910, %v3572, 0.0
  %v3750 = vrot.slane %v3749, 4
  %v3751 = vadd.f32 %v3749, %v3750
  %v3752 = vrot.slane %v3751, 2
  %v3753 = vadd.f32 %v3751, %v3752
  %v3754 = vrot.slane %v3753, 1
  %v3755 = vadd.f32 %v3753, %v3754
  %v3756 = vsel %vm2910, %v3576, 0.0
  %v3757 = vrot.slane %v3756, 4
  %v3758 = vadd.f32 %v3756, %v3757
  %v3759 = vrot.slane %v3758, 2
  %v3760 = vadd.f32 %v3758, %v3759
  %v3761 = vrot.slane %v3760, 1
  %v3762 = vadd.f32 %v3760, %v3761
  %v3763 = vsel %vm2910, %v3580, 0.0
  %v3764 = vrot.slane %v3763, 4
  %v3765 = vadd.f32 %v3763, %v3764
  %v3766 = vrot.slane %v3765, 2
  %v3767 = vadd.f32 %v3765, %v3766
  %v3768 = vrot.slane %v3767, 1
  %v3769 = vadd.f32 %v3767, %v3768
  %v3770 = vsel %vm2910, %v3584, 0.0
  %v3771 = vrot.slane %v3770, 4
  %v3772 = vadd.f32 %v3770, %v3771
  %v3773 = vrot.slane %v3772, 2
  %v3774 = vadd.f32 %v3772, %v3773
  %v3775 = vrot.slane %v3774, 1
  %v3776 = vadd.f32 %v3774, %v3775
  %v3777 = vrcp.pop %v3615
  %v3778 = vrcp.pop %v3622
  %v3779 = vrcp.pop %v3629
  %v3780 = vrcp.pop %v3636
  %v3781 = vrcp.pop %v3643
  %v3782 = vrcp.pop %v3650
  %v3783 = vrcp.pop %v3657
  %v3784 = vrcp.pop %v3664
  %v3785 = vrcp.pop %v3671
  %v3786 = vrcp.pop %v3678
  %v3787 = vrcp.pop %v3685
  %v3788 = vrcp.pop %v3692
  %v3789 = vrcp.pop %v3699
  %v3790 = vrcp.pop %v3706
  %v3791 = vrcp.pop %v3713
  %v3792 = vrcp.pop %v3720
  %v3793 = vrcp.pop %v3727
  %v3794 = vrcp.pop %v3734
  %v3795 = vrcp.pop %v3741
  %v3796 = vrcp.pop %v3748
  %v3797 = vrcp.pop %v3755
  %v3798 = vrcp.pop %v3762
  %v3799 = vrcp.pop %v3769
  %v3800 = vrcp.pop %v3776
  %v3825 = vrot.slane %v3777, 1
  %v3826 = vrot.slane %v3777, 2
  %v3827 = vrot.slane %v3778, 1
  %v3828 = vrot.slane %v3778, 2
  %v3829 = vrot.slane %v3779, 1
  %v3830 = vrot.slane %v3779, 2
  %v3831 = vrot.slane %v3780, 1
  %v3832 = vrot.slane %v3780, 2
  %v3833 = vrot.slane %v3781, 1
  %v3834 = vrot.slane %v3781, 2
  %v3835 = vrot.slane %v3782, 1
  %v3836 = vrot.slane %v3782, 2
  %v3837 = vrot.slane %v3783, 1
  %v3838 = vrot.slane %v3783, 2
  %v3839 = vrot.slane %v3784, 1
  %v3840 = vrot.slane %v3784, 2
  %v3841 = vrot.slane %v3785, 1
  %v3842 = vrot.slane %v3785, 2
  %v3843 = vrot.slane %v3786, 1
  %v3844 = vrot.slane %v3786, 2
  %v3845 = vrot.slane %v3787, 1
  %v3846 = vrot.slane %v3787, 2
  %v3847 = vrot.slane %v3788, 1
  %v3848 = vrot.slane %v3788, 2
  %v3849 = vrot.slane %v3789, 1
  %v3850 = vrot.slane %v3789, 2
  %v3851 = vrot.slane %v3790, 1
  %v3852 = vrot.slane %v3790, 2
  %v3853 = vrot.slane %v3791, 1
  %v3854 = vrot.slane %v3791, 2
  %v3855 = vrot.slane %v3792, 1
  %v3856 = vrot.slane %v3792, 2
  %v3857 = vrot.slane %v3793, 1
  %v3858 = vrot.slane %v3793, 2
  %v3859 = vrot.slane %v3794, 1
  %v3860 = vrot.slane %v3794, 2
  %v3861 = vrot.slane %v3795, 1
  %v3862 = vrot.slane %v3795, 2
  %v3863 = vrot.slane %v3796, 1
  %v3864 = vrot.slane %v3796, 2
  %v3865 = vrot.slane %v3797, 1
  %v3866 = vrot.slane %v3797, 2
  %v3867 = vrot.slane %v3798, 1
  %v3868 = vrot.slane %v3798, 2
  %v3869 = vrot.slane %v3799, 1
  %v3870 = vrot.slane %v3799, 2
  %v3871 = vrot.slane %v3800, 1
  %v3872 = vrot.slane %v3800, 2
  %v3921 = vmul.f32 %v3272, %v3777
  %v3922 = vmul.f32 %v3274, %v3825
  %v3923 = vmul.f32 %v3276, %v3826
  %v3924 = vmul.f32 %v3278, %v3778
  %v3925 = vmul.f32 %v3280, %v3827
  %v3926 = vmul.f32 %v3282, %v3828
  %v3927 = vmul.f32 %v3284, %v3779
  %v3928 = vmul.f32 %v3286, %v3829
  %v3929 = vmul.f32 %v3288, %v3830
  %v3930 = vmul.f32 %v3290, %v3780
  %v3931 = vmul.f32 %v3292, %v3831
  %v3932 = vmul.f32 %v3294, %v3832
  %v3933 = vmul.f32 %v3296, %v3781
  %v3934 = vmul.f32 %v3298, %v3833
  %v3935 = vmul.f32 %v3300, %v3834
  %v3936 = vmul.f32 %v3302, %v3782
  %v3937 = vmul.f32 %v3304, %v3835
  %v3938 = vmul.f32 %v3306, %v3836
  %v3939 = vmul.f32 %v3308, %v3783
  %v3940 = vmul.f32 %v3310, %v3837
  %v3941 = vmul.f32 %v3312, %v3838
  %v3942 = vmul.f32 %v3314, %v3784
  %v3943 = vmul.f32 %v3316, %v3839
  %v3944 = vmul.f32 %v3318, %v3840
  %v3945 = vmul.f32 %v3320, %v3785
  %v3946 = vmul.f32 %v3322, %v3841
  %v3947 = vmul.f32 %v3324, %v3842
  %v3948 = vmul.f32 %v3326, %v3786
  %v3949 = vmul.f32 %v3328, %v3843
  %v3950 = vmul.f32 %v3330, %v3844
  %v3951 = vmul.f32 %v3332, %v3787
  %v3952 = vmul.f32 %v3334, %v3845
  %v3953 = vmul.f32 %v3336, %v3846
  %v3954 = vmul.f32 %v3338, %v3788
  %v3955 = vmul.f32 %v3340, %v3847
  %v3956 = vmul.f32 %v3342, %v3848
  %v3957 = vmul.f32 %v3344, %v3789
  %v3958 = vmul.f32 %v3346, %v3849
  %v3959 = vmul.f32 %v3348, %v3850
  %v3960 = vmul.f32 %v3350, %v3790
  %v3961 = vmul.f32 %v3352, %v3851
  %v3962 = vmul.f32 %v3354, %v3852
  %v3963 = vmul.f32 %v3356, %v3791
  %v3964 = vmul.f32 %v3358, %v3853
  %v3965 = vmul.f32 %v3360, %v3854
  %v3966 = vmul.f32 %v3362, %v3792
  %v3967 = vmul.f32 %v3364, %v3855
  %v3968 = vmul.f32 %v3366, %v3856
  %v3969 = vmul.f32 %v3368, %v3793
  %v3970 = vmul.f32 %v3370, %v3857
  %v3971 = vmul.f32 %v3372, %v3858
  %v3972 = vmul.f32 %v3374, %v3794
  %v3973 = vmul.f32 %v3376, %v3859
  %v3974 = vmul.f32 %v3378, %v3860
  %v3975 = vmul.f32 %v3380, %v3795
  %v3976 = vmul.f32 %v3382, %v3861
  %v3977 = vmul.f32 %v3384, %v3862
  %v3978 = vmul.f32 %v3386, %v3796
  %v3979 = vmul.f32 %v3388, %v3863
  %v3980 = vmul.f32 %v3390, %v3864
  %v3981 = vmul.f32 %v3392, %v3797
  %v3982 = vmul.f32 %v3394, %v3865
  %v3983 = vmul.f32 %v3396, %v3866
  %v3984 = vmul.f32 %v3398, %v3798
  %v3985 = vmul.f32 %v3400, %v3867
  %v3986 = vmul.f32 %v3402, %v3868
  %v3987 = vmul.f32 %v3404, %v3799
  %v3988 = vmul.f32 %v3406, %v3869
  %v3989 = vmul.f32 %v3408, %v3870
  %v3990 = vmul.f32 %v3410, %v3800
  %v3991 = vmul.f32 %v3412, %v3871
  %v3992 = vmul.f32 %v3414, %v3872
  %4065 = vst [vmem:[#allocation1] ss:$9 sm:$0xff] %v3921
  %s4066 = scalar_lea.vmem [#allocation1], 1
  %4067 = vst [vmem:[%s4066] ss:$9 sm:$0xff] %v3922
  %s4068 = scalar_lea.vmem [#allocation1], 2
  %4069 = vst [vmem:[%s4068] ss:$9 sm:$0xff] %v3923
  %s4070 = scalar_lea.vmem [#allocation1], 3
  %4071 = vst [vmem:[%s4070] ss:$9 sm:$0xff] %v3924
  %s4072 = scalar_lea.vmem [#allocation1], 4
  %4073 = vst [vmem:[%s4072] ss:$9 sm:$0xff] %v3925
  %s4074 = scalar_lea.vmem [#allocation1], 5
  %4075 = vst [vmem:[%s4074] ss:$9 sm:$0xff] %v3926
  %s4076 = scalar_lea.vmem [#allocation1], 6
  %4077 = vst [vmem:[%s4076] ss:$9 sm:$0xff] %v3927
  %s4078 = scalar_lea.vmem [#allocation1], 7
  %4079 = vst [vmem:[%s4078] ss:$9 sm:$0xff] %v3928
  %v4080 = vld [vmem:[#allocation1] sm:$0xff]
  %4081 = vst [vmem:[#allocation1] ss:$9 sm:$0xff] %v3929
  %4082 = vst [vmem:[%s4066] ss:$9 sm:$0xff] %v3930
  %4083 = vst [vmem:[%s4068] ss:$9 sm:$0xff] %v3931
  %4084 = vst [vmem:[%s4070] ss:$9 sm:$0xff] %v3932
  %4085 = vst [vmem:[%s4072] ss:$9 sm:$0xff] %v3933
  %4086 = vst [vmem:[%s4074] ss:$9 sm:$0xff] %v3934
  %4087 = vst [vmem:[%s4076] ss:$9 sm:$0xff] %v3935
  %4088 = vst [vmem:[%s4078] ss:$9 sm:$0xff] %v3936
  %v4089 = vld [vmem:[#allocation1] sm:$0xff]
  %4090 = vst [vmem:[#allocation1] ss:$9 sm:$0xff] %v3937
  %4091 = vst [vmem:[%s4066] ss:$9 sm:$0xff] %v3938
  %4092 = vst [vmem:[%s4068] ss:$9 sm:$0xff] %v3939
  %4093 = vst [vmem:[%s4070] ss:$9 sm:$0xff] %v3940
  %4094 = vst [vmem:[%s4072] ss:$9 sm:$0xff] %v3941
  %4095 = vst [vmem:[%s4074] ss:$9 sm:$0xff] %v3942
  %4096 = vst [vmem:[%s4076] ss:$9 sm:$0xff] %v3943
  %4097 = vst [vmem:[%s4078] ss:$9 sm:$0xff] %v3944
  %v4098 = vld [vmem:[#allocation1] sm:$0xff]
  %4099 = vst [vmem:[#allocation1] ss:$9 sm:$0xff] %v3945
  %4100 = vst [vmem:[%s4066] ss:$9 sm:$0xff] %v3946
  %4101 = vst [vmem:[%s4068] ss:$9 sm:$0xff] %v3947
  %4102 = vst [vmem:[%s4070] ss:$9 sm:$0xff] %v3948
  %4103 = vst [vmem:[%s4072] ss:$9 sm:$0xff] %v3949
  %4104 = vst [vmem:[%s4074] ss:$9 sm:$0xff] %v3950
  %4105 = vst [vmem:[%s4076] ss:$9 sm:$0xff] %v3951
  %4106 = vst [vmem:[%s4078] ss:$9 sm:$0xff] %v3952
  %v4107 = vld [vmem:[#allocation1] sm:$0xff]
  %4108 = vst [vmem:[#allocation1] ss:$9 sm:$0xff] %v3953
  %4109 = vst [vmem:[%s4066] ss:$9 sm:$0xff] %v3954
  %4110 = vst [vmem:[%s4068] ss:$9 sm:$0xff] %v3955
  %4111 = vst [vmem:[%s4070] ss:$9 sm:$0xff] %v3956
  %4112 = vst [vmem:[%s4072] ss:$9 sm:$0xff] %v3957
  %4113 = vst [vmem:[%s4074] ss:$9 sm:$0xff] %v3958
  %4114 = vst [vmem:[%s4076] ss:$9 sm:$0xff] %v3959
  %4115 = vst [vmem:[%s4078] ss:$9 sm:$0xff] %v3960
  %v4116 = vld [vmem:[#allocation1] sm:$0xff]
  %4117 = vst [vmem:[#allocation1] ss:$9 sm:$0xff] %v3961
  %4118 = vst [vmem:[%s4066] ss:$9 sm:$0xff] %v3962
  %4119 = vst [vmem:[%s4068] ss:$9 sm:$0xff] %v3963
  %4120 = vst [vmem:[%s4070] ss:$9 sm:$0xff] %v3964
  %4121 = vst [vmem:[%s4072] ss:$9 sm:$0xff] %v3965
  %4122 = vst [vmem:[%s4074] ss:$9 sm:$0xff] %v3966
  %4123 = vst [vmem:[%s4076] ss:$9 sm:$0xff] %v3967
  %4124 = vst [vmem:[%s4078] ss:$9 sm:$0xff] %v3968
  %v4125 = vld [vmem:[#allocation1] sm:$0xff]
  %4126 = vst [vmem:[#allocation1] ss:$9 sm:$0xff] %v3969
  %4127 = vst [vmem:[%s4066] ss:$9 sm:$0xff] %v3970
  %4128 = vst [vmem:[%s4068] ss:$9 sm:$0xff] %v3971
  %4129 = vst [vmem:[%s4070] ss:$9 sm:$0xff] %v3972
  %4130 = vst [vmem:[%s4072] ss:$9 sm:$0xff] %v3973
  %4131 = vst [vmem:[%s4074] ss:$9 sm:$0xff] %v3974
  %4132 = vst [vmem:[%s4076] ss:$9 sm:$0xff] %v3975
  %4133 = vst [vmem:[%s4078] ss:$9 sm:$0xff] %v3976
  %v4134 = vld [vmem:[#allocation1] sm:$0xff]
  %4135 = vst [vmem:[#allocation1] ss:$9 sm:$0xff] %v3977
  %4136 = vst [vmem:[%s4066] ss:$9 sm:$0xff] %v3978
  %4137 = vst [vmem:[%s4068] ss:$9 sm:$0xff] %v3979
  %4138 = vst [vmem:[%s4070] ss:$9 sm:$0xff] %v3980
  %4139 = vst [vmem:[%s4072] ss:$9 sm:$0xff] %v3981
  %4140 = vst [vmem:[%s4074] ss:$9 sm:$0xff] %v3982
  %4141 = vst [vmem:[%s4076] ss:$9 sm:$0xff] %v3983
  %4142 = vst [vmem:[%s4078] ss:$9 sm:$0xff] %v3984
  %v4143 = vld [vmem:[#allocation1] sm:$0xff]
  %4144 = vst [vmem:[#allocation1] ss:$9 sm:$0xff] %v3985
  %4145 = vst [vmem:[%s4066] ss:$9 sm:$0xff] %v3986
  %4146 = vst [vmem:[%s4068] ss:$9 sm:$0xff] %v3987
  %4147 = vst [vmem:[%s4070] ss:$9 sm:$0xff] %v3988
  %4148 = vst [vmem:[%s4072] ss:$9 sm:$0xff] %v3989
  %4149 = vst [vmem:[%s4074] ss:$9 sm:$0xff] %v3990
  %4150 = vst [vmem:[%s4076] ss:$9 sm:$0xff] %v3991
  %4151 = vst [vmem:[%s4078] ss:$9 sm:$0xff] %v3992
  %v4152 = vld [vmem:[#allocation1] sm:$0xff]
  %v4162 = vpack.c.bf16 %v4089, %v4080
  %v4163 = vpack.c.bf16 %v4107, %v4098
  %v4164 = vpack.c.bf16 %v4125, %v4116
  %v4165 = vpack.c.bf16 %v4143, %v4134
  %v4166 = vpack.c.bf16 %v4152, %v4152
  %v4168 = vsel %vm793, %v4162, 0
  %v4171 = vsel %vm793, %v4163, 0
  %v4174 = vsel %vm793, %v4164, 0
  %v4177 = vsel %vm793, %v4165, 0
  %v4180 = vsel %vm793, %v4166, 0
  %4182 = vmatpush.bf16.msra.mxu0 0
  %4183 = vmatpush.bf16.msra.mxu0 0
  %4184 = vmatpush.bf16.msra.mxu0 0
  %4185 = vmatpush.bf16.msra.mxu0 0
  %4186 = vmatpush.bf16.msra.mxu0 0
  %4187 = vmatpush.bf16.msra.mxu0 0
  %4188 = vmatpush.bf16.msra.mxu0 0
  %4189 = vmatpush.bf16.msra.mxu0 %v1301
  %4190 = vmatmul.bf16.gmra.mxu0 %v4168
  %v4191 = vpop.f32.mrf.mxu0
  %v4192 = vadd.f32 0.0, %v4191
  %v4193 = vpop.f32.mrf.mxu0
  %v4194 = vadd.f32 0.0, %v4193
  %4195 = vmatmul.bf16.gmra.mxu0 %v4171
  %v4196 = vpop.f32.mrf.mxu0
  %v4197 = vadd.f32 0.0, %v4196
  %v4198 = vpop.f32.mrf.mxu0
  %v4199 = vadd.f32 0.0, %v4198
  %4200 = vmatmul.bf16.gmra.mxu0 %v4174
  %v4201 = vpop.f32.mrf.mxu0
  %v4202 = vadd.f32 0.0, %v4201
  %v4203 = vpop.f32.mrf.mxu0
  %v4204 = vadd.f32 0.0, %v4203
  %4205 = vmatmul.bf16.gmra.mxu0 %v4177
  %v4206 = vpop.f32.mrf.mxu0
  %v4207 = vadd.f32 0.0, %v4206
  %v4208 = vpop.f32.mrf.mxu0
  %v4209 = vadd.f32 0.0, %v4208
  %4210 = vmatmul.bf16.gmra.mxu0 %v4180
  %v4211 = vpop.f32.mrf.mxu0
  %v4212 = vadd.f32 0.0, %v4211
  %v4213 = vpop.f32.mrf.mxu0
  %4214 = vdwg.mxu0
  %v4224 = vrot.slane %v4192, 1
  %v4225 = vrot.slane %v4192, 2
  %v4226 = vrot.slane %v4192, 3
  %v4227 = vrot.slane %v4192, 4
  %v4228 = vrot.slane %v4192, 5
  %v4229 = vrot.slane %v4192, 6
  %v4230 = vrot.slane %v4192, 7
  %v4231 = vrot.slane %v4194, 1
  %v4232 = vrot.slane %v4194, 2
  %v4233 = vrot.slane %v4194, 3
  %v4234 = vrot.slane %v4194, 4
  %v4235 = vrot.slane %v4194, 5
  %v4236 = vrot.slane %v4194, 6
  %v4237 = vrot.slane %v4194, 7
  %v4238 = vrot.slane %v4197, 1
  %v4239 = vrot.slane %v4197, 2
  %v4240 = vrot.slane %v4197, 3
  %v4241 = vrot.slane %v4197, 4
  %v4242 = vrot.slane %v4197, 5
  %v4243 = vrot.slane %v4197, 6
  %v4244 = vrot.slane %v4197, 7
  %v4245 = vrot.slane %v4199, 1
  %v4246 = vrot.slane %v4199, 2
  %v4247 = vrot.slane %v4199, 3
  %v4248 = vrot.slane %v4199, 4
  %v4249 = vrot.slane %v4199, 5
  %v4250 = vrot.slane %v4199, 6
  %v4251 = vrot.slane %v4199, 7
  %v4252 = vrot.slane %v4202, 1
  %v4253 = vrot.slane %v4202, 2
  %v4254 = vrot.slane %v4202, 3
  %v4255 = vrot.slane %v4202, 4
  %v4256 = vrot.slane %v4202, 5
  %v4257 = vrot.slane %v4202, 6
  %v4258 = vrot.slane %v4202, 7
  %v4259 = vrot.slane %v4204, 1
  %v4260 = vrot.slane %v4204, 2
  %v4261 = vrot.slane %v4204, 3
  %v4262 = vrot.slane %v4204, 4
  %v4263 = vrot.slane %v4204, 5
  %v4264 = vrot.slane %v4204, 6
  %v4265 = vrot.slane %v4204, 7
  %v4266 = vrot.slane %v4207, 1
  %v4267 = vrot.slane %v4207, 2
  %v4268 = vrot.slane %v4207, 3
  %v4269 = vrot.slane %v4207, 4
  %v4270 = vrot.slane %v4207, 5
  %v4271 = vrot.slane %v4207, 6
  %v4272 = vrot.slane %v4207, 7
  %v4273 = vrot.slane %v4209, 1
  %v4274 = vrot.slane %v4209, 2
  %v4275 = vrot.slane %v4209, 3
  %v4276 = vrot.slane %v4209, 4
  %v4277 = vrot.slane %v4209, 5
  %v4278 = vrot.slane %v4209, 6
  %v4279 = vrot.slane %v4209, 7
  %v4280 = vrot.slane %v4212, 1
  %v4281 = vrot.slane %v4212, 2
  %v4282 = vrot.slane %v4212, 3
  %v4283 = vrot.slane %v4212, 4
  %v4284 = vrot.slane %v4212, 5
  %v4285 = vrot.slane %v4212, 6
  %v4286 = vrot.slane %v4212, 7
  %4350 = vrot.lane.b32.xlu0 %v2157, 64
  %v4351 = vpop.permute.xlu0 %4350
  %4352 = vrot.lane.b32.xlu0 %v2168, 64
  %v4353 = vpop.permute.xlu0 %4352
  %4354 = vrot.lane.b32.xlu0 %v2169, 64
  %v4355 = vpop.permute.xlu0 %4354
  %4356 = vrot.lane.b32.xlu0 %v2170, 64
  %v4357 = vpop.permute.xlu0 %4356
  %4358 = vrot.lane.b32.xlu0 %v2171, 64
  %v4359 = vpop.permute.xlu0 %4358
  %4360 = vrot.lane.b32.xlu0 %v2172, 64
  %v4361 = vpop.permute.xlu0 %4360
  %4362 = vrot.lane.b32.xlu0 %v2173, 64
  %v4363 = vpop.permute.xlu0 %4362
  %4364 = vrot.lane.b32.xlu0 %v2174, 64
  %v4365 = vpop.permute.xlu0 %4364
  %4366 = vrot.lane.b32.xlu0 %v2159, 64
  %v4367 = vpop.permute.xlu0 %4366
  %4368 = vrot.lane.b32.xlu0 %v2175, 64
  %v4369 = vpop.permute.xlu0 %4368
  %4370 = vrot.lane.b32.xlu0 %v2176, 64
  %v4371 = vpop.permute.xlu0 %4370
  %4372 = vrot.lane.b32.xlu0 %v2177, 64
  %v4373 = vpop.permute.xlu0 %4372
  %4374 = vrot.lane.b32.xlu0 %v2178, 64
  %v4375 = vpop.permute.xlu0 %4374
  %4376 = vrot.lane.b32.xlu0 %v2179, 64
  %v4377 = vpop.permute.xlu0 %4376
  %4378 = vrot.lane.b32.xlu0 %v2180, 64
  %v4379 = vpop.permute.xlu0 %4378
  %4380 = vrot.lane.b32.xlu0 %v2181, 64
  %v4381 = vpop.permute.xlu0 %4380
  %4382 = vrot.lane.b32.xlu0 %v2162, 64
  %v4383 = vpop.permute.xlu0 %4382
  %4384 = vrot.lane.b32.xlu0 %v2182, 64
  %v4385 = vpop.permute.xlu0 %4384
  %4386 = vrot.lane.b32.xlu0 %v2183, 64
  %v4387 = vpop.permute.xlu0 %4386
  %4388 = vrot.lane.b32.xlu0 %v2184, 64
  %v4389 = vpop.permute.xlu0 %4388
  %4390 = vrot.lane.b32.xlu0 %v2185, 64
  %v4391 = vpop.permute.xlu0 %4390
  %4392 = vrot.lane.b32.xlu0 %v2186, 64
  %v4393 = vpop.permute.xlu0 %4392
  %4394 = vrot.lane.b32.xlu0 %v2187, 64
  %v4395 = vpop.permute.xlu0 %4394
  %4396 = vrot.lane.b32.xlu0 %v2188, 64
  %v4397 = vpop.permute.xlu0 %4396
  %v4422 = vmul.f32 %v4192, %v4351
  %v4423 = vmul.f32 %v4224, %v4353
  %v4424 = vmul.f32 %v4225, %v4355
  %v4425 = vmul.f32 %v4226, %v4351
  %v4426 = vmul.f32 %v4227, %v4353
  %v4427 = vmul.f32 %v4228, %v4355
  %v4428 = vmul.f32 %v4229, %v4351
  %v4429 = vmul.f32 %v4230, %v4353
  %v4430 = vmul.f32 %v4194, %v4355
  %v4431 = vmul.f32 %v4231, %v4357
  %v4432 = vmul.f32 %v4232, %v4359
  %v4433 = vmul.f32 %v4233, %v4361
  %v4434 = vmul.f32 %v4234, %v4357
  %v4435 = vmul.f32 %v4235, %v4359
  %v4436 = vmul.f32 %v4236, %v4361
  %v4437 = vmul.f32 %v4237, %v4357
  %v4438 = vmul.f32 %v4197, %v4359
  %v4439 = vmul.f32 %v4238, %v4361
  %v4440 = vmul.f32 %v4239, %v4363
  %v4441 = vmul.f32 %v4240, %v4365
  %v4442 = vmul.f32 %v4241, %v4367
  %v4443 = vmul.f32 %v4242, %v4363
  %v4444 = vmul.f32 %v4243, %v4365
  %v4445 = vmul.f32 %v4244, %v4367
  %v4446 = vmul.f32 %v4199, %v4363
  %v4447 = vmul.f32 %v4245, %v4365
  %v4448 = vmul.f32 %v4246, %v4367
  %v4449 = vmul.f32 %v4247, %v4369
  %v4450 = vmul.f32 %v4248, %v4371
  %v4451 = vmul.f32 %v4249, %v4373
  %v4452 = vmul.f32 %v4250, %v4369
  %v4453 = vmul.f32 %v4251, %v4371
  %v4454 = vmul.f32 %v4202, %v4373
  %v4455 = vmul.f32 %v4252, %v4369
  %v4456 = vmul.f32 %v4253, %v4371
  %v4457 = vmul.f32 %v4254, %v4373
  %v4458 = vmul.f32 %v4255, %v4375
  %v4459 = vmul.f32 %v4256, %v4377
  %v4460 = vmul.f32 %v4257, %v4379
  %v4461 = vmul.f32 %v4258, %v4375
  %v4462 = vmul.f32 %v4204, %v4377
  %v4463 = vmul.f32 %v4259, %v4379
  %v4464 = vmul.f32 %v4260, %v4375
  %v4465 = vmul.f32 %v4261, %v4377
  %v4466 = vmul.f32 %v4262, %v4379
  %v4467 = vmul.f32 %v4263, %v4381
  %v4468 = vmul.f32 %v4264, %v4383
  %v4469 = vmul.f32 %v4265, %v4385
  %v4470 = vmul.f32 %v4207, %v4381
  %v4471 = vmul.f32 %v4266, %v4383
  %v4472 = vmul.f32 %v4267, %v4385
  %v4473 = vmul.f32 %v4268, %v4381
  %v4474 = vmul.f32 %v4269, %v4383
  %v4475 = vmul.f32 %v4270, %v4385
  %v4476 = vmul.f32 %v4271, %v4387
  %v4477 = vmul.f32 %v4272, %v4389
  %v4478 = vmul.f32 %v4209, %v4391
  %v4479 = vmul.f32 %v4273, %v4387
  %v4480 = vmul.f32 %v4274, %v4389
  %v4481 = vmul.f32 %v4275, %v4391
  %v4482 = vmul.f32 %v4276, %v4387
  %v4483 = vmul.f32 %v4277, %v4389
  %v4484 = vmul.f32 %v4278, %v4391
  %v4485 = vmul.f32 %v4279, %v4393
  %v4486 = vmul.f32 %v4212, %v4395
  %v4487 = vmul.f32 %v4280, %v4397
  %v4488 = vmul.f32 %v4281, %v4393
  %v4489 = vmul.f32 %v4282, %v4395
  %v4490 = vmul.f32 %v4283, %v4397
  %v4491 = vmul.f32 %v4284, %v4393
  %v4492 = vmul.f32 %v4285, %v4395
  %v4493 = vmul.f32 %v4286, %v4397
  %4566 = vst [vmem:[#allocation1] ss:$9 sm:$0xff] %v4422
  %s4567 = scalar_lea.vmem [#allocation1], 1
  %4568 = vst [vmem:[%s4567] ss:$9 sm:$0xff] %v4423
  %s4569 = scalar_lea.vmem [#allocation1], 2
  %4570 = vst [vmem:[%s4569] ss:$9 sm:$0xff] %v4424
  %v4571 = vld [vmem:[#allocation1] sm:$0xff]
  %4572 = vst [vmem:[#allocation1] ss:$9 sm:$0xff] %v4425
  %4573 = vst [vmem:[%s4567] ss:$9 sm:$0xff] %v4426
  %4574 = vst [vmem:[%s4569] ss:$9 sm:$0xff] %v4427
  %v4575 = vld [vmem:[#allocation1] sm:$0xff]
  %4576 = vst [vmem:[#allocation1] ss:$9 sm:$0xff] %v4428
  %4577 = vst [vmem:[%s4567] ss:$9 sm:$0xff] %v4429
  %4578 = vst [vmem:[%s4569] ss:$9 sm:$0xff] %v4430
  %v4579 = vld [vmem:[#allocation1] sm:$0xff]
  %4580 = vst [vmem:[#allocation1] ss:$9 sm:$0xff] %v4431
  %4581 = vst [vmem:[%s4567] ss:$9 sm:$0xff] %v4432
  %4582 = vst [vmem:[%s4569] ss:$9 sm:$0xff] %v4433
  %v4583 = vld [vmem:[#allocation1] sm:$0xff]
  %4584 = vst [vmem:[#allocation1] ss:$9 sm:$0xff] %v4434
  %4585 = vst [vmem:[%s4567] ss:$9 sm:$0xff] %v4435
  %4586 = vst [vmem:[%s4569] ss:$9 sm:$0xff] %v4436
  %v4587 = vld [vmem:[#allocation1] sm:$0xff]
  %4588 = vst [vmem:[#allocation1] ss:$9 sm:$0xff] %v4437
  %4589 = vst [vmem:[%s4567] ss:$9 sm:$0xff] %v4438
  %4590 = vst [vmem:[%s4569] ss:$9 sm:$0xff] %v4439
  %v4591 = vld [vmem:[#allocation1] sm:$0xff]
  %4592 = vst [vmem:[#allocation1] ss:$9 sm:$0xff] %v4440
  %4593 = vst [vmem:[%s4567] ss:$9 sm:$0xff] %v4441
  %4594 = vst [vmem:[%s4569] ss:$9 sm:$0xff] %v4442
  %v4595 = vld [vmem:[#allocation1] sm:$0xff]
  %4596 = vst [vmem:[#allocation1] ss:$9 sm:$0xff] %v4443
  %4597 = vst [vmem:[%s4567] ss:$9 sm:$0xff] %v4444
  %4598 = vst [vmem:[%s4569] ss:$9 sm:$0xff] %v4445
  %v4599 = vld [vmem:[#allocation1] sm:$0xff]
  %4600 = vst [vmem:[#allocation1] ss:$9 sm:$0xff] %v4446
  %4601 = vst [vmem:[%s4567] ss:$9 sm:$0xff] %v4447
  %4602 = vst [vmem:[%s4569] ss:$9 sm:$0xff] %v4448
  %v4603 = vld [vmem:[#allocation1] sm:$0xff]
  %4604 = vst [vmem:[#allocation1] ss:$9 sm:$0xff] %v4449
  %4605 = vst [vmem:[%s4567] ss:$9 sm:$0xff] %v4450
  %4606 = vst [vmem:[%s4569] ss:$9 sm:$0xff] %v4451
  %v4607 = vld [vmem:[#allocation1] sm:$0xff]
  %4608 = vst [vmem:[#allocation1] ss:$9 sm:$0xff] %v4452
  %4609 = vst [vmem:[%s4567] ss:$9 sm:$0xff] %v4453
  %4610 = vst [vmem:[%s4569] ss:$9 sm:$0xff] %v4454
  %v4611 = vld [vmem:[#allocation1] sm:$0xff]
  %4612 = vst [vmem:[#allocation1] ss:$9 sm:$0xff] %v4455
  %4613 = vst [vmem:[%s4567] ss:$9 sm:$0xff] %v4456
  %4614 = vst [vmem:[%s4569] ss:$9 sm:$0xff] %v4457
  %v4615 = vld [vmem:[#allocation1] sm:$0xff]
  %4616 = vst [vmem:[#allocation1] ss:$9 sm:$0xff] %v4458
  %4617 = vst [vmem:[%s4567] ss:$9 sm:$0xff] %v4459
  %4618 = vst [vmem:[%s4569] ss:$9 sm:$0xff] %v4460
  %v4619 = vld [vmem:[#allocation1] sm:$0xff]
  %4620 = vst [vmem:[#allocation1] ss:$9 sm:$0xff] %v4461
  %4621 = vst [vmem:[%s4567] ss:$9 sm:$0xff] %v4462
  %4622 = vst [vmem:[%s4569] ss:$9 sm:$0xff] %v4463
  %v4623 = vld [vmem:[#allocation1] sm:$0xff]
  %4624 = vst [vmem:[#allocation1] ss:$9 sm:$0xff] %v4464
  %4625 = vst [vmem:[%s4567] ss:$9 sm:$0xff] %v4465
  %4626 = vst [vmem:[%s4569] ss:$9 sm:$0xff] %v4466
  %v4627 = vld [vmem:[#allocation1] sm:$0xff]
  %4628 = vst [vmem:[#allocation1] ss:$9 sm:$0xff] %v4467
  %4629 = vst [vmem:[%s4567] ss:$9 sm:$0xff] %v4468
  %4630 = vst [vmem:[%s4569] ss:$9 sm:$0xff] %v4469
  %v4631 = vld [vmem:[#allocation1] sm:$0xff]
  %4632 = vst [vmem:[#allocation1] ss:$9 sm:$0xff] %v4470
  %4633 = vst [vmem:[%s4567] ss:$9 sm:$0xff] %v4471
  %4634 = vst [vmem:[%s4569] ss:$9 sm:$0xff] %v4472
  %v4635 = vld [vmem:[#allocation1] sm:$0xff]
  %4636 = vst [vmem:[#allocation1] ss:$9 sm:$0xff] %v4473
  %4637 = vst [vmem:[%s4567] ss:$9 sm:$0xff] %v4474
  %4638 = vst [vmem:[%s4569] ss:$9 sm:$0xff] %v4475
  %v4639 = vld [vmem:[#allocation1] sm:$0xff]
  %4640 = vst [vmem:[#allocation1] ss:$9 sm:$0xff] %v4476
  %4641 = vst [vmem:[%s4567] ss:$9 sm:$0xff] %v4477
  %4642 = vst [vmem:[%s4569] ss:$9 sm:$0xff] %v4478
  %v4643 = vld [vmem:[#allocation1] sm:$0xff]
  %4644 = vst [vmem:[#allocation1] ss:$9 sm:$0xff] %v4479
  %4645 = vst [vmem:[%s4567] ss:$9 sm:$0xff] %v4480
  %4646 = vst [vmem:[%s4569] ss:$9 sm:$0xff] %v4481
  %v4647 = vld [vmem:[#allocation1] sm:$0xff]
  %4648 = vst [vmem:[#allocation1] ss:$9 sm:$0xff] %v4482
  %4649 = vst [vmem:[%s4567] ss:$9 sm:$0xff] %v4483
  %4650 = vst [vmem:[%s4569] ss:$9 sm:$0xff] %v4484
  %v4651 = vld [vmem:[#allocation1] sm:$0xff]
  %4652 = vst [vmem:[#allocation1] ss:$9 sm:$0xff] %v4485
  %4653 = vst [vmem:[%s4567] ss:$9 sm:$0xff] %v4486
  %4654 = vst [vmem:[%s4569] ss:$9 sm:$0xff] %v4487
  %v4655 = vld [vmem:[#allocation1] sm:$0xff]
  %4656 = vst [vmem:[#allocation1] ss:$9 sm:$0xff] %v4488
  %4657 = vst [vmem:[%s4567] ss:$9 sm:$0xff] %v4489
  %4658 = vst [vmem:[%s4569] ss:$9 sm:$0xff] %v4490
  %v4659 = vld [vmem:[#allocation1] sm:$0xff]
  %4660 = vst [vmem:[#allocation1] ss:$9 sm:$0xff] %v4491
  %4661 = vst [vmem:[%s4567] ss:$9 sm:$0xff] %v4492
  %4662 = vst [vmem:[%s4569] ss:$9 sm:$0xff] %v4493
  %v4663 = vld [vmem:[#allocation1] sm:$0xff]
  %vm4688 = vcmask 256000
  %v4689 = vsel %vm4688, %v4571, 0.0
  %v4690 = vrot.slane %v4689, 4
  %v4691 = vadd.f32 %v4689, %v4690
  %v4692 = vrot.slane %v4691, 2
  %v4693 = vadd.f32 %v4691, %v4692
  %v4694 = vrot.slane %v4693, 1
  %v4695 = vadd.f32 %v4693, %v4694
  %v4696 = vsel %vm4688, %v4575, 0.0
  %v4697 = vrot.slane %v4696, 4
  %v4698 = vadd.f32 %v4696, %v4697
  %v4699 = vrot.slane %v4698, 2
  %v4700 = vadd.f32 %v4698, %v4699
  %v4701 = vrot.slane %v4700, 1
  %v4702 = vadd.f32 %v4700, %v4701
  %v4703 = vsel %vm4688, %v4579, 0.0
  %v4704 = vrot.slane %v4703, 4
  %v4705 = vadd.f32 %v4703, %v4704
  %v4706 = vrot.slane %v4705, 2
  %v4707 = vadd.f32 %v4705, %v4706
  %v4708 = vrot.slane %v4707, 1
  %v4709 = vadd.f32 %v4707, %v4708
  %v4710 = vsel %vm4688, %v4583, 0.0
  %v4711 = vrot.slane %v4710, 4
  %v4712 = vadd.f32 %v4710, %v4711
  %v4713 = vrot.slane %v4712, 2
  %v4714 = vadd.f32 %v4712, %v4713
  %v4715 = vrot.slane %v4714, 1
  %v4716 = vadd.f32 %v4714, %v4715
  %v4717 = vsel %vm4688, %v4587, 0.0
  %v4718 = vrot.slane %v4717, 4
  %v4719 = vadd.f32 %v4717, %v4718
  %v4720 = vrot.slane %v4719, 2
  %v4721 = vadd.f32 %v4719, %v4720
  %v4722 = vrot.slane %v4721, 1
  %v4723 = vadd.f32 %v4721, %v4722
  %v4724 = vsel %vm4688, %v4591, 0.0
  %v4725 = vrot.slane %v4724, 4
  %v4726 = vadd.f32 %v4724, %v4725
  %v4727 = vrot.slane %v4726, 2
  %v4728 = vadd.f32 %v4726, %v4727
  %v4729 = vrot.slane %v4728, 1
  %v4730 = vadd.f32 %v4728, %v4729
  %v4731 = vsel %vm4688, %v4595, 0.0
  %v4732 = vrot.slane %v4731, 4
  %v4733 = vadd.f32 %v4731, %v4732
  %v4734 = vrot.slane %v4733, 2
  %v4735 = vadd.f32 %v4733, %v4734
  %v4736 = vrot.slane %v4735, 1
  %v4737 = vadd.f32 %v4735, %v4736
  %v4738 = vsel %vm4688, %v4599, 0.0
  %v4739 = vrot.slane %v4738, 4
  %v4740 = vadd.f32 %v4738, %v4739
  %v4741 = vrot.slane %v4740, 2
  %v4742 = vadd.f32 %v4740, %v4741
  %v4743 = vrot.slane %v4742, 1
  %v4744 = vadd.f32 %v4742, %v4743
  %v4745 = vsel %vm4688, %v4603, 0.0
  %v4746 = vrot.slane %v4745, 4
  %v4747 = vadd.f32 %v4745, %v4746
  %v4748 = vrot.slane %v4747, 2
  %v4749 = vadd.f32 %v4747, %v4748
  %v4750 = vrot.slane %v4749, 1
  %v4751 = vadd.f32 %v4749, %v4750
  %v4752 = vsel %vm4688, %v4607, 0.0
  %v4753 = vrot.slane %v4752, 4
  %v4754 = vadd.f32 %v4752, %v4753
  %v4755 = vrot.slane %v4754, 2
  %v4756 = vadd.f32 %v4754, %v4755
  %v4757 = vrot.slane %v4756, 1
  %v4758 = vadd.f32 %v4756, %v4757
  %v4759 = vsel %vm4688, %v4611, 0.0
  %v4760 = vrot.slane %v4759, 4
  %v4761 = vadd.f32 %v4759, %v4760
  %v4762 = vrot.slane %v4761, 2
  %v4763 = vadd.f32 %v4761, %v4762
  %v4764 = vrot.slane %v4763, 1
  %v4765 = vadd.f32 %v4763, %v4764
  %v4766 = vsel %vm4688, %v4615, 0.0
  %v4767 = vrot.slane %v4766, 4
  %v4768 = vadd.f32 %v4766, %v4767
  %v4769 = vrot.slane %v4768, 2
  %v4770 = vadd.f32 %v4768, %v4769
  %v4771 = vrot.slane %v4770, 1
  %v4772 = vadd.f32 %v4770, %v4771
  %v4773 = vsel %vm4688, %v4619, 0.0
  %v4774 = vrot.slane %v4773, 4
  %v4775 = vadd.f32 %v4773, %v4774
  %v4776 = vrot.slane %v4775, 2
  %v4777 = vadd.f32 %v4775, %v4776
  %v4778 = vrot.slane %v4777, 1
  %v4779 = vadd.f32 %v4777, %v4778
  %v4780 = vsel %vm4688, %v4623, 0.0
  %v4781 = vrot.slane %v4780, 4
  %v4782 = vadd.f32 %v4780, %v4781
  %v4783 = vrot.slane %v4782, 2
  %v4784 = vadd.f32 %v4782, %v4783
  %v4785 = vrot.slane %v4784, 1
  %v4786 = vadd.f32 %v4784, %v4785
  %v4787 = vsel %vm4688, %v4627, 0.0
  %v4788 = vrot.slane %v4787, 4
  %v4789 = vadd.f32 %v4787, %v4788
  %v4790 = vrot.slane %v4789, 2
  %v4791 = vadd.f32 %v4789, %v4790
  %v4792 = vrot.slane %v4791, 1
  %v4793 = vadd.f32 %v4791, %v4792
  %v4794 = vsel %vm4688, %v4631, 0.0
  %v4795 = vrot.slane %v4794, 4
  %v4796 = vadd.f32 %v4794, %v4795
  %v4797 = vrot.slane %v4796, 2
  %v4798 = vadd.f32 %v4796, %v4797
  %v4799 = vrot.slane %v4798, 1
  %v4800 = vadd.f32 %v4798, %v4799
  %v4801 = vsel %vm4688, %v4635, 0.0
  %v4802 = vrot.slane %v4801, 4
  %v4803 = vadd.f32 %v4801, %v4802
  %v4804 = vrot.slane %v4803, 2
  %v4805 = vadd.f32 %v4803, %v4804
  %v4806 = vrot.slane %v4805, 1
  %v4807 = vadd.f32 %v4805, %v4806
  %v4808 = vsel %vm4688, %v4639, 0.0
  %v4809 = vrot.slane %v4808, 4
  %v4810 = vadd.f32 %v4808, %v4809
  %v4811 = vrot.slane %v4810, 2
  %v4812 = vadd.f32 %v4810, %v4811
  %v4813 = vrot.slane %v4812, 1
  %v4814 = vadd.f32 %v4812, %v4813
  %v4815 = vsel %vm4688, %v4643, 0.0
  %v4816 = vrot.slane %v4815, 4
  %v4817 = vadd.f32 %v4815, %v4816
  %v4818 = vrot.slane %v4817, 2
  %v4819 = vadd.f32 %v4817, %v4818
  %v4820 = vrot.slane %v4819, 1
  %v4821 = vadd.f32 %v4819, %v4820
  %v4822 = vsel %vm4688, %v4647, 0.0
  %v4823 = vrot.slane %v4822, 4
  %v4824 = vadd.f32 %v4822, %v4823
  %v4825 = vrot.slane %v4824, 2
  %v4826 = vadd.f32 %v4824, %v4825
  %v4827 = vrot.slane %v4826, 1
  %v4828 = vadd.f32 %v4826, %v4827
  %v4829 = vsel %vm4688, %v4651, 0.0
  %v4830 = vrot.slane %v4829, 4
  %v4831 = vadd.f32 %v4829, %v4830
  %v4832 = vrot.slane %v4831, 2
  %v4833 = vadd.f32 %v4831, %v4832
  %v4834 = vrot.slane %v4833, 1
  %v4835 = vadd.f32 %v4833, %v4834
  %v4836 = vsel %vm4688, %v4655, 0.0
  %v4837 = vrot.slane %v4836, 4
  %v4838 = vadd.f32 %v4836, %v4837
  %v4839 = vrot.slane %v4838, 2
  %v4840 = vadd.f32 %v4838, %v4839
  %v4841 = vrot.slane %v4840, 1
  %v4842 = vadd.f32 %v4840, %v4841
  %v4843 = vsel %vm4688, %v4659, 0.0
  %v4844 = vrot.slane %v4843, 4
  %v4845 = vadd.f32 %v4843, %v4844
  %v4846 = vrot.slane %v4845, 2
  %v4847 = vadd.f32 %v4845, %v4846
  %v4848 = vrot.slane %v4847, 1
  %v4849 = vadd.f32 %v4847, %v4848
  %v4850 = vsel %vm4688, %v4663, 0.0
  %v4851 = vrot.slane %v4850, 4
  %v4852 = vadd.f32 %v4850, %v4851
  %v4853 = vrot.slane %v4852, 2
  %v4854 = vadd.f32 %v4852, %v4853
  %v4855 = vrot.slane %v4854, 1
  %v4856 = vadd.f32 %v4854, %v4855
  %v4857 = vpack.c.bf16 %v4695, %v4695
  %v4858 = vpack.c.bf16 %v4702, %v4702
  %v4859 = vpack.c.bf16 %v4709, %v4709
  %v4860 = vpack.c.bf16 %v4716, %v4716
  %v4861 = vpack.c.bf16 %v4723, %v4723
  %v4862 = vpack.c.bf16 %v4730, %v4730
  %v4863 = vpack.c.bf16 %v4737, %v4737
  %v4864 = vpack.c.bf16 %v4744, %v4744
  %v4865 = vpack.c.bf16 %v4751, %v4751
  %v4866 = vpack.c.bf16 %v4758, %v4758
  %v4867 = vpack.c.bf16 %v4765, %v4765
  %v4868 = vpack.c.bf16 %v4772, %v4772
  %v4869 = vpack.c.bf16 %v4779, %v4779
  %v4870 = vpack.c.bf16 %v4786, %v4786
  %v4871 = vpack.c.bf16 %v4793, %v4793
  %v4872 = vpack.c.bf16 %v4800, %v4800
  %v4873 = vpack.c.bf16 %v4807, %v4807
  %v4874 = vpack.c.bf16 %v4814, %v4814
  %v4875 = vpack.c.bf16 %v4821, %v4821
  %v4876 = vpack.c.bf16 %v4828, %v4828
  %v4877 = vpack.c.bf16 %v4835, %v4835
  %v4878 = vpack.c.bf16 %v4842, %v4842
  %v4879 = vpack.c.bf16 %v4849, %v4849
  %v4880 = vpack.c.bf16 %v4856, %v4856
  %v4881 = vld [vmem:[%s43] sm:$0xf]
  %v4882 = vld [vmem:[%s43 + $0x4] sm:$0xf]
  %v4883 = vld [vmem:[%s43 + $0x8] sm:$0xf]
  %v4884 = vld [vmem:[%s43 + $0xc] sm:$0xf]
  %v4885 = vld [vmem:[%s45] sm:$0x1]
  %v4887 = vperm.slane %v4885, 0
  %v4913 = vunpack.c.l.b16 %v4857
  %v4914 = vunpack.c.l.b16 %v4858
  %v4915 = vunpack.c.l.b16 %v4859
  %v4916 = vunpack.c.l.b16 %v4860
  %v4917 = vunpack.c.l.b16 %v4861
  %v4918 = vunpack.c.l.b16 %v4862
  %v4919 = vunpack.c.l.b16 %v4863
  %v4920 = vunpack.c.l.b16 %v4864
  %v4921 = vunpack.c.l.b16 %v4865
  %v4922 = vunpack.c.l.b16 %v4866
  %v4923 = vunpack.c.l.b16 %v4867
  %v4924 = vunpack.c.l.b16 %v4868
  %v4925 = vunpack.c.l.b16 %v4869
  %v4926 = vunpack.c.l.b16 %v4870
  %v4927 = vunpack.c.l.b16 %v4871
  %v4928 = vunpack.c.l.b16 %v4872
  %v4929 = vunpack.c.l.b16 %v4873
  %v4930 = vunpack.c.l.b16 %v4874
  %v4931 = vunpack.c.l.b16 %v4875
  %v4932 = vunpack.c.l.b16 %v4876
  %v4933 = vunpack.c.l.b16 %v4877
  %v4934 = vunpack.c.l.b16 %v4878
  %v4935 = vunpack.c.l.b16 %v4879
  %v4936 = vunpack.c.l.b16 %v4880
  %v4937 = vsel %vm1740, %v4914, %v4913
  %v4938 = vsel %vm1742, %v4915, %v4937
  %v4939 = vsel %vm1744, %v4916, %v4938
  %v4940 = vsel %vm1746, %v4917, %v4939
  %v4941 = vsel %vm1748, %v4918, %v4940
  %v4942 = vsel %vm1750, %v4919, %v4941
  %v4943 = vsel %vm1752, %v4920, %v4942
  %v4944 = vsel %vm1740, %v4922, %v4921
  %v4945 = vsel %vm1742, %v4923, %v4944
  %v4946 = vsel %vm1744, %v4924, %v4945
  %v4947 = vsel %vm1746, %v4925, %v4946
  %v4948 = vsel %vm1748, %v4926, %v4947
  %v4949 = vsel %vm1750, %v4927, %v4948
  %v4950 = vsel %vm1752, %v4928, %v4949
  %v4951 = vsel %vm1740, %v4930, %v4929
  %v4952 = vsel %vm1742, %v4931, %v4951
  %v4953 = vsel %vm1744, %v4932, %v4952
  %v4954 = vsel %vm1746, %v4933, %v4953
  %v4955 = vsel %vm1748, %v4934, %v4954
  %v4956 = vsel %vm1750, %v4935, %v4955
  %v4957 = vsel %vm1752, %v4936, %v4956
  %v4958 = vpack.c.b16 %v4950, %v4943
  %v4959 = vpack.c.b16 %v4957, %v4957
  %v4964 = vunpack.c.l.b16 %v4881
  %v4965 = vunpack.c.l.b16 %v4882
  %v4966 = vunpack.c.l.b16 %v4883
  %v4967 = vunpack.c.l.b16 %v4884
  %v4968 = vpack.c.b16 %v4965, %v4964
  %v4969 = vpack.c.b16 %v4967, %v4966
  %v4973 = vsel %vm235, %v4958, 0
  %v4976 = vsel %vm235, %v4959, 0
  %4978 = vmatpush.bf16.msra.mxu0 0
  %4979 = vmatpush.bf16.msra.mxu0 0
  %4980 = vmatpush.bf16.msra.mxu0 0
  %4981 = vmatpush.bf16.msra.mxu0 0
  %4982 = vmatpush.bf16.msra.mxu0 0
  %4983 = vmatpush.bf16.msra.mxu0 0
  %4984 = vmatpush.bf16.msra.mxu0 %v4969
  %4985 = vmatpush.bf16.msra.mxu0 %v4968
  %4986 = vmatmul.bf16.gmra.mxu0 %v4973
  %v4987 = vpop.f32.mrf.mxu0
  %v4988 = vadd.f32 %v4887, %v4987
  %v4989 = vpop.f32.mrf.mxu0
  %v4990 = vadd.f32 %v4887, %v4989
  %4991 = vmatmul.bf16.gmra.mxu0 %v4976
  %v4992 = vpop.f32.mrf.mxu0
  %v4993 = vadd.f32 %v4887, %v4992
  %v4994 = vpop.f32.mrf.mxu0
  %4995 = vdwg.mxu0
  %v4996 = vadd.f32 %v2116, %v4988
  %v4997 = vadd.f32 %v2117, %v4990
  %v4998 = vadd.f32 %v2118, %v4993
  %v4999 = vld [vmem:[%s47] sm:$0x1]
  %v5000 = vld [vmem:[%s49] sm:$0x1]
  %v5001 = vsel %vm235, %v4996, 0.0
  %5002 = vadd.xlane.f32.xlu0 %v5001
  %v5003 = vpop.xlane.xlu0 %5002
  %v5004 = vsel %vm235, %v4997, 0.0
  %5005 = vadd.xlane.f32.xlu0 %v5004
  %v5006 = vpop.xlane.xlu0 %5005
  %v5007 = vsel %vm235, %v4998, 0.0
  %5008 = vadd.xlane.f32.xlu0 %v5007
  %v5009 = vpop.xlane.xlu0 %5008
  %v5010 = vmul.f32 %v5003, %v1829
  %v5011 = vmul.f32 %v5006, %v1829
  %v5012 = vmul.f32 %v5009, %v1829
  %v5013 = vsub.f32 %v4996, %v5010
  %v5014 = vsub.f32 %v4997, %v5011
  %v5015 = vsub.f32 %v4998, %v5012
  %v5016 = vmul.f32 %v5013, %v5013
  %v5017 = vmul.f32 %v5014, %v5014
  %v5018 = vmul.f32 %v5015, %v5015
  %v5019 = vsel %vm235, %v5016, 0.0
  %5020 = vadd.xlane.f32.xlu0 %v5019
  %v5021 = vpop.xlane.xlu0 %5020
  %v5022 = vsel %vm235, %v5017, 0.0
  %5023 = vadd.xlane.f32.xlu0 %v5022
  %v5024 = vpop.xlane.xlu0 %5023
  %v5025 = vsel %vm235, %v5018, 0.0
  %5026 = vadd.xlane.f32.xlu0 %v5025
  %v5027 = vpop.xlane.xlu0 %5026
  %v5028 = vmul.f32 %v5021, %v1829
  %v5029 = vmul.f32 %v5024, %v1829
  %v5030 = vmul.f32 %v5027, %v1829
  %v5031 = vadd.f32 %v5028, 1e-05
  %v5032 = vadd.f32 %v5029, 1e-05
  %v5033 = vadd.f32 %v5030, 1e-05
  %v5034 = vrsqrt.pop %v5031
  %v5035 = vmul.f32 %v5034, %v5031
  %v5036 = vmul.f32 %v5035, %v5034
  %v5037 = vmul.f32 0.5, %v5036
  %v5038 = vsub.f32 1.5, %v5037
  %v5039 = vmul.f32 %v5034, %v5038
  %vm5040 = vweird.f32 %v5031
  %vm5041 = vweird.f32 %v5034
  %vm5042 = vmor %vm5040, %vm5041
  %v5043 = vsel %vm5042, %v5034, %v5039
  %v5044 = vrsqrt.pop %v5032
  %v5045 = vmul.f32 %v5044, %v5032
  %v5046 = vmul.f32 %v5045, %v5044
  %v5047 = vmul.f32 0.5, %v5046
  %v5048 = vsub.f32 1.5, %v5047
  %v5049 = vmul.f32 %v5044, %v5048
  %vm5050 = vweird.f32 %v5032
  %vm5051 = vweird.f32 %v5044
  %vm5052 = vmor %vm5050, %vm5051
  %v5053 = vsel %vm5052, %v5044, %v5049
  %v5054 = vrsqrt.pop %v5033
  %v5055 = vmul.f32 %v5054, %v5033
  %v5056 = vmul.f32 %v5055, %v5054
  %v5057 = vmul.f32 0.5, %v5056
  %v5058 = vsub.f32 1.5, %v5057
  %v5059 = vmul.f32 %v5054, %v5058
  %vm5060 = vweird.f32 %v5033
  %vm5061 = vweird.f32 %v5054
  %vm5062 = vmor %vm5060, %vm5061
  %v5063 = vsel %vm5062, %v5054, %v5059
  %v5064 = vmul.f32 %v5013, %v5043
  %v5065 = vmul.f32 %v5014, %v5053
  %v5066 = vmul.f32 %v5015, %v5063
  %v5068 = vperm.slane %v4999, 0
  %v5070 = vmul.f32 %v5064, %v5068
  %v5071 = vmul.f32 %v5065, %v5068
  %v5072 = vmul.f32 %v5066, %v5068
  %v5074 = vperm.slane %v5000, 0
  %v5076 = vadd.f32 %v5070, %v5074
  %v5077 = vadd.f32 %v5071, %v5074
  %v5078 = vadd.f32 %v5072, %v5074
  %v5079 = vpack.c.bf16 %v5077, %v5076
  %v5080 = vpack.c.bf16 %v5078, %v5078
  %v5081 = vld [vmem:[%s51] sm:$0xf]
  %v5082 = vld [vmem:[%s51 + $0x4] sm:$0xf]
  %v5083 = vld [vmem:[%s51 + $0x8] sm:$0xf]
  %v5084 = vld [vmem:[%s51 + $0xc] sm:$0xf]
  %v5085 = vld [vmem:[%s53] sm:$0x1]
  %v5087 = vperm.slane %v5085, 0
  %v5093 = vunpack.c.l.b16 %v5081
  %v5094 = vunpack.c.l.b16 %v5082
  %v5095 = vunpack.c.l.b16 %v5083
  %v5096 = vunpack.c.l.b16 %v5084
  %v5097 = vpack.c.b16 %v5094, %v5093
  %v5098 = vpack.c.b16 %v5096, %v5095
  %v5102 = vsel %vm235, %v5079, 0
  %v5105 = vsel %vm235, %v5080, 0
  %5107 = vmatpush.bf16.msra.mxu0 0
  %5108 = vmatpush.bf16.msra.mxu0 0
  %5109 = vmatpush.bf16.msra.mxu0 0
  %5110 = vmatpush.bf16.msra.mxu0 0
  %5111 = vmatpush.bf16.msra.mxu0 0
  %5112 = vmatpush.bf16.msra.mxu0 0
  %5113 = vmatpush.bf16.msra.mxu0 %v5098
  %5114 = vmatpush.bf16.msra.mxu0 %v5097
  %5115 = vmatmul.bf16.gmra.mxu0 %v5102
  %v5116 = vpop.f32.mrf.mxu0
  %v5117 = vadd.f32 %v5087, %v5116
  %v5118 = vpop.f32.mrf.mxu0
  %v5119 = vadd.f32 %v5087, %v5118
  %5120 = vmatmul.bf16.gmra.mxu0 %v5105
  %v5121 = vpop.f32.mrf.mxu0
  %v5122 = vadd.f32 %v5087, %v5121
  %v5123 = vpop.f32.mrf.mxu0
  %5124 = vdwg.mxu0
  %v5125 = vmax.f32 %v5117, 0.0
  %v5126 = vmax.f32 %v5119, 0.0
  %v5127 = vmax.f32 %v5122, 0.0
  %v5128 = vpack.c.bf16 %v5126, %v5125
  %v5129 = vpack.c.bf16 %v5127, %v5127
  %v5130 = vld [vmem:[%s55] sm:$0xf]
  %v5131 = vld [vmem:[%s55 + $0x4] sm:$0xf]
  %v5132 = vld [vmem:[%s55 + $0x8] sm:$0xf]
  %v5133 = vld [vmem:[%s55 + $0xc] sm:$0xf]
  %v5134 = vld [vmem:[%s55 + $0x10] sm:$0xf]
  %v5135 = vld [vmem:[%s55 + $0x14] sm:$0xf]
  %v5136 = vld [vmem:[%s55 + $0x18] sm:$0xf]
  %v5137 = vld [vmem:[%s55 + $0x1c] sm:$0xf]
  %v5138 = vld [vmem:[%s55 + $0x20] sm:$0xf]
  %v5139 = vld [vmem:[%s55 + $0x24] sm:$0xf]
  %v5140 = vld [vmem:[%s55 + $0x28] sm:$0xf]
  %v5141 = vld [vmem:[%s55 + $0x2c] sm:$0xf]
  %v5142 = vld [vmem:[%s55 + $0x30] sm:$0xf]
  %v5143 = vld [vmem:[%s55 + $0x34] sm:$0xf]
  %v5144 = vld [vmem:[%s55 + $0x38] sm:$0xf]
  %v5145 = vld [vmem:[%s55 + $0x3c] sm:$0xf]
  %v5146 = vld [vmem:[%s57] sm:$0x1]
  %v5148 = vperm.slane %v5146, 0
  %v5166 = vunpack.c.l.b16 %v5130
  %v5167 = vunpack.c.l.b16 %v5131
  %v5168 = vunpack.c.l.b16 %v5132
  %v5169 = vunpack.c.l.b16 %v5133
  %v5170 = vunpack.c.l.b16 %v5134
  %v5171 = vunpack.c.l.b16 %v5135
  %v5172 = vunpack.c.l.b16 %v5136
  %v5173 = vunpack.c.l.b16 %v5137
  %v5174 = vunpack.c.l.b16 %v5138
  %v5175 = vunpack.c.l.b16 %v5139
  %v5176 = vunpack.c.l.b16 %v5140
  %v5177 = vunpack.c.l.b16 %v5141
  %v5178 = vunpack.c.l.b16 %v5142
  %v5179 = vunpack.c.l.b16 %v5143
  %v5180 = vunpack.c.l.b16 %v5144
  %v5181 = vunpack.c.l.b16 %v5145
  %v5182 = vpack.c.b16 %v5167, %v5166
  %v5183 = vpack.c.b16 %v5169, %v5168
  %v5184 = vpack.c.b16 %v5171, %v5170
  %v5185 = vpack.c.b16 %v5173, %v5172
  %v5186 = vpack.c.b16 %v5175, %v5174
  %v5187 = vpack.c.b16 %v5177, %v5176
  %v5188 = vpack.c.b16 %v5179, %v5178
  %v5189 = vpack.c.b16 %v5181, %v5180
  %5198 = vmatpush.bf16.msra.mxu0 %v5189
  %5199 = vmatpush.bf16.msra.mxu0 %v5188
  %5200 = vmatpush.bf16.msra.mxu0 %v5187
  %5201 = vmatpush.bf16.msra.mxu0 %v5186
  %5202 = vmatpush.bf16.msra.mxu0 %v5185
  %5203 = vmatpush.bf16.msra.mxu0 %v5184
  %5204 = vmatpush.bf16.msra.mxu0 %v5183
  %5205 = vmatpush.bf16.msra.mxu0 %v5182
  %5206 = vmatmul.bf16.gmra.mxu0 %v5128
  %v5207 = vpop.f32.mrf.mxu0
  %v5208 = vadd.f32 %v5148, %v5207
  %v5209 = vpop.f32.mrf.mxu0
  %v5210 = vadd.f32 %v5148, %v5209
  %5211 = vmatmul.bf16.gmra.mxu0 %v5129
  %v5212 = vpop.f32.mrf.mxu0
  %v5213 = vadd.f32 %v5148, %v5212
  %v5214 = vpop.f32.mrf.mxu0
  %5215 = vdwg.mxu0
  %v5216 = vadd.f32 %v5076, %v5208
  %v5217 = vadd.f32 %v5077, %v5210
  %v5218 = vadd.f32 %v5078, %v5213
  %v5219 = vld [vmem:[%s59] sm:$0x1]
  %v5220 = vld [vmem:[%s61] sm:$0x1]
  %v5221 = vsel %vm235, %v5216, 0.0
  %5222 = vadd.xlane.f32.xlu0 %v5221
  %v5223 = vpop.xlane.xlu0 %5222
  %v5224 = vsel %vm235, %v5217, 0.0
  %5225 = vadd.xlane.f32.xlu0 %v5224
  %v5226 = vpop.xlane.xlu0 %5225
  %v5227 = vsel %vm235, %v5218, 0.0
  %5228 = vadd.xlane.f32.xlu0 %v5227
  %v5229 = vpop.xlane.xlu0 %5228
  %v5230 = vmul.f32 %v5223, %v1829
  %v5231 = vmul.f32 %v5226, %v1829
  %v5232 = vmul.f32 %v5229, %v1829
  %v5233 = vsub.f32 %v5216, %v5230
  %v5234 = vsub.f32 %v5217, %v5231
  %v5235 = vsub.f32 %v5218, %v5232
  %v5236 = vmul.f32 %v5233, %v5233
  %v5237 = vmul.f32 %v5234, %v5234
  %v5238 = vmul.f32 %v5235, %v5235
  %v5239 = vsel %vm235, %v5236, 0.0
  %5240 = vadd.xlane.f32.xlu0 %v5239
  %v5241 = vpop.xlane.xlu0 %5240
  %v5242 = vsel %vm235, %v5237, 0.0
  %5243 = vadd.xlane.f32.xlu0 %v5242
  %v5244 = vpop.xlane.xlu0 %5243
  %v5245 = vsel %vm235, %v5238, 0.0
  %5246 = vadd.xlane.f32.xlu0 %v5245
  %v5247 = vpop.xlane.xlu0 %5246
  %v5248 = vmul.f32 %v5241, %v1829
  %v5249 = vmul.f32 %v5244, %v1829
  %v5250 = vmul.f32 %v5247, %v1829
  %v5251 = vadd.f32 %v5248, 1e-05
  %v5252 = vadd.f32 %v5249, 1e-05
  %v5253 = vadd.f32 %v5250, 1e-05
  %v5254 = vrsqrt.pop %v5251
  %v5255 = vmul.f32 %v5254, %v5251
  %v5256 = vmul.f32 %v5255, %v5254
  %v5257 = vmul.f32 0.5, %v5256
  %v5258 = vsub.f32 1.5, %v5257
  %v5259 = vmul.f32 %v5254, %v5258
  %vm5260 = vweird.f32 %v5251
  %vm5261 = vweird.f32 %v5254
  %vm5262 = vmor %vm5260, %vm5261
  %v5263 = vsel %vm5262, %v5254, %v5259
  %v5264 = vrsqrt.pop %v5252
  %v5265 = vmul.f32 %v5264, %v5252
  %v5266 = vmul.f32 %v5265, %v5264
  %v5267 = vmul.f32 0.5, %v5266
  %v5268 = vsub.f32 1.5, %v5267
  %v5269 = vmul.f32 %v5264, %v5268
  %vm5270 = vweird.f32 %v5252
  %vm5271 = vweird.f32 %v5264
  %vm5272 = vmor %vm5270, %vm5271
  %v5273 = vsel %vm5272, %v5264, %v5269
  %v5274 = vrsqrt.pop %v5253
  %v5275 = vmul.f32 %v5274, %v5253
  %v5276 = vmul.f32 %v5275, %v5274
  %v5277 = vmul.f32 0.5, %v5276
  %v5278 = vsub.f32 1.5, %v5277
  %v5279 = vmul.f32 %v5274, %v5278
  %vm5280 = vweird.f32 %v5253
  %vm5281 = vweird.f32 %v5274
  %vm5282 = vmor %vm5280, %vm5281
  %v5283 = vsel %vm5282, %v5274, %v5279
  %v5284 = vmul.f32 %v5233, %v5263
  %v5285 = vmul.f32 %v5234, %v5273
  %v5286 = vmul.f32 %v5235, %v5283
  %v5288 = vperm.slane %v5219, 0
  %v5290 = vmul.f32 %v5284, %v5288
  %v5291 = vmul.f32 %v5285, %v5288
  %v5292 = vmul.f32 %v5286, %v5288
  %v5294 = vperm.slane %v5220, 0
  %v5296 = vadd.f32 %v5290, %v5294
  %v5297 = vadd.f32 %v5291, %v5294
  %v5298 = vadd.f32 %v5292, %v5294
  %v5302 = vrot.slane %v5296, 1
  %v5303 = vrot.slane %v5296, 2
  %v5304 = vrot.slane %v5296, 3
  %v5305 = vrot.slane %v5296, 4
  %v5306 = vrot.slane %v5296, 5
  %v5307 = vrot.slane %v5296, 6
  %v5308 = vrot.slane %v5296, 7
  %v5309 = vrot.slane %v5297, 1
  %v5310 = vrot.slane %v5297, 2
  %v5311 = vrot.slane %v5297, 3
  %v5312 = vrot.slane %v5297, 4
  %v5313 = vrot.slane %v5297, 5
  %v5314 = vrot.slane %v5297, 6
  %v5315 = vrot.slane %v5297, 7
  %v5316 = vrot.slane %v5298, 1
  %v5317 = vrot.slane %v5298, 2
  %v5318 = vrot.slane %v5298, 3
  %v5319 = vrot.slane %v5298, 4
  %v5320 = vrot.slane %v5298, 5
  %v5321 = vrot.slane %v5298, 6
  %v5322 = vrot.slane %v5298, 7
  %5323 = vst [vmem:[#allocation1] ss:$9 sm:$0xff] %v5296
  %s5324 = scalar_lea.vmem [#allocation1], 1
  %5325 = vst [vmem:[%s5324] ss:$9 sm:$0xff] %v5302
  %s5326 = scalar_lea.vmem [#allocation1], 2
  %5327 = vst [vmem:[%s5326] ss:$9 sm:$0xff] %v5303
  %v5328 = vld [vmem:[#allocation1] sm:$0xff]
  %5329 = vst [vmem:[#allocation1] ss:$9 sm:$0xff] %v5312
  %5330 = vst [vmem:[%s5324] ss:$9 sm:$0xff] %v5313
  %5331 = vst [vmem:[%s5326] ss:$9 sm:$0xff] %v5314
  %v5332 = vld [vmem:[#allocation1] sm:$0xff]
  %v5335 = vsel %vm4688, %v5328, 0.0
  %v5336 = vrot.slane %v5335, 4
  %v5337 = vadd.f32 %v5335, %v5336
  %v5338 = vrot.slane %v5337, 2
  %v5339 = vadd.f32 %v5337, %v5338
  %v5340 = vrot.slane %v5339, 1
  %v5341 = vadd.f32 %v5339, %v5340
  %v5342 = vsel %vm4688, %v5332, 0.0
  %v5343 = vrot.slane %v5342, 4
  %v5344 = vadd.f32 %v5342, %v5343
  %v5345 = vrot.slane %v5344, 2
  %v5346 = vadd.f32 %v5344, %v5345
  %v5347 = vrot.slane %v5346, 1
  %v5348 = vadd.f32 %v5346, %v5347
  %v5349 = vrcp.pop 3.0
  %v5350 = vmul.f32 3.0, %v5349
  %v5351 = vsub.f32 1.0, %v5350
  %v5352 = vmul.f32 %v5349, %v5351
  %v5353 = vadd.f32 %v5349, %v5352
  %vm5354 = vweird.f32 %v5349
  %v5355 = vsel %vm5354, %v5349, %v5353
  %v5356 = vmul.f32 %v5341, %v5355
  %v5357 = vmul.f32 %v5348, %v5355
  %v5360 = vsel %vm1740, %v5357, %v5356
  %vm5362 = vcmask 254976
  %5363 = vst.msk [vmem:[%s63] sm:$0x3] %vm5362, %v5360
  %5364 = vst [vmem:[#allocation1] ss:$9 sm:$0xff] %v5304
  %s5365 = scalar_lea.vmem [#allocation1], 1
  %5366 = vst [vmem:[%s5365] ss:$9 sm:$0xff] %v5305
  %s5367 = scalar_lea.vmem [#allocation1], 2
  %5368 = vst [vmem:[%s5367] ss:$9 sm:$0xff] %v5306
  %v5369 = vld [vmem:[#allocation1] sm:$0xff]
  %5370 = vst [vmem:[#allocation1] ss:$9 sm:$0xff] %v5315
  %5371 = vst [vmem:[%s5365] ss:$9 sm:$0xff] %v5298
  %5372 = vst [vmem:[%s5367] ss:$9 sm:$0xff] %v5316
  %v5373 = vld [vmem:[#allocation1] sm:$0xff]
  %v5376 = vsel %vm4688, %v5369, 0.0
  %v5377 = vrot.slane %v5376, 4
  %v5378 = vadd.f32 %v5376, %v5377
  %v5379 = vrot.slane %v5378, 2
  %v5380 = vadd.f32 %v5378, %v5379
  %v5381 = vrot.slane %v5380, 1
  %v5382 = vadd.f32 %v5380, %v5381
  %v5383 = vsel %vm4688, %v5373, 0.0
  %v5384 = vrot.slane %v5383, 4
  %v5385 = vadd.f32 %v5383, %v5384
  %v5386 = vrot.slane %v5385, 2
  %v5387 = vadd.f32 %v5385, %v5386
  %v5388 = vrot.slane %v5387, 1
  %v5389 = vadd.f32 %v5387, %v5388
  %v5390 = vmul.f32 %v5382, %v5355
  %v5391 = vmul.f32 %v5389, %v5355
  %v5394 = vsel %vm1740, %v5391, %v5390
  %5395 = vrot.lane.b32.xlu0 %v5394, 32
  %v5396 = vpop.permute.xlu0 %5395
  %vm5398 = vcmask 517376
  %5399 = vst.msk [vmem:[%s63] sm:$0x3] %vm5398, %v5396
  %5400 = vst [vmem:[#allocation1] ss:$9 sm:$0xff] %v5307
  %s5401 = scalar_lea.vmem [#allocation1], 1
  %5402 = vst [vmem:[%s5401] ss:$9 sm:$0xff] %v5308
  %s5403 = scalar_lea.vmem [#allocation1], 2
  %5404 = vst [vmem:[%s5403] ss:$9 sm:$0xff] %v5297
  %v5405 = vld [vmem:[#allocation1] sm:$0xff]
  %5406 = vst [vmem:[#allocation1] ss:$9 sm:$0xff] %v5317
  %5407 = vst [vmem:[%s5401] ss:$9 sm:$0xff] %v5318
  %5408 = vst [vmem:[%s5403] ss:$9 sm:$0xff] %v5319
  %v5409 = vld [vmem:[#allocation1] sm:$0xff]
  %v5412 = vsel %vm4688, %v5405, 0.0
  %v5413 = vrot.slane %v5412, 4
  %v5414 = vadd.f32 %v5412, %v5413
  %v5415 = vrot.slane %v5414, 2
  %v5416 = vadd.f32 %v5414, %v5415
  %v5417 = vrot.slane %v5416, 1
  %v5418 = vadd.f32 %v5416, %v5417
  %v5419 = vsel %vm4688, %v5409, 0.0
  %v5420 = vrot.slane %v5419, 4
  %v5421 = vadd.f32 %v5419, %v5420
  %v5422 = vrot.slane %v5421, 2
  %v5423 = vadd.f32 %v5421, %v5422
  %v5424 = vrot.slane %v5423, 1
  %v5425 = vadd.f32 %v5423, %v5424
  %v5426 = vmul.f32 %v5418, %v5355
  %v5427 = vmul.f32 %v5425, %v5355
  %v5430 = vsel %vm1740, %v5427, %v5426
  %5431 = vrot.lane.b32.xlu0 %v5430, 64
  %v5432 = vpop.permute.xlu0 %5431
  %vm5434 = vcmask 779776
  %5435 = vst.msk [vmem:[%s63] sm:$0x3] %vm5434, %v5432
  %5436 = vst [vmem:[#allocation1] ss:$9 sm:$0xff] %v5309
  %s5437 = scalar_lea.vmem [#allocation1], 1
  %5438 = vst [vmem:[%s5437] ss:$9 sm:$0xff] %v5310
  %s5439 = scalar_lea.vmem [#allocation1], 2
  %5440 = vst [vmem:[%s5439] ss:$9 sm:$0xff] %v5311
  %v5441 = vld [vmem:[#allocation1] sm:$0xff]
  %5442 = vst [vmem:[#allocation1] ss:$9 sm:$0xff] %v5320
  %5443 = vst [vmem:[%s5437] ss:$9 sm:$0xff] %v5321
  %5444 = vst [vmem:[%s5439] ss:$9 sm:$0xff] %v5322
  %v5445 = vld [vmem:[#allocation1] sm:$0xff]
  %v5448 = vsel %vm4688, %v5441, 0.0
  %v5449 = vrot.slane %v5448, 4
  %v5450 = vadd.f32 %v5448, %v5449
  %v5451 = vrot.slane %v5450, 2
  %v5452 = vadd.f32 %v5450, %v5451
  %v5453 = vrot.slane %v5452, 1
  %v5454 = vadd.f32 %v5452, %v5453
  %v5455 = vsel %vm4688, %v5445, 0.0
  %v5456 = vrot.slane %v5455, 4
  %v5457 = vadd.f32 %v5455, %v5456
  %v5458 = vrot.slane %v5457, 2
  %v5459 = vadd.f32 %v5457, %v5458
  %v5460 = vrot.slane %v5459, 1
  %v5461 = vadd.f32 %v5459, %v5460
  %v5462 = vmul.f32 %v5454, %v5355
  %v5463 = vmul.f32 %v5461, %v5355
  %v5466 = vsel %vm1740, %v5463, %v5462
  %5467 = vrot.lane.b32.xlu0 %v5466, 96
  %v5468 = vpop.permute.xlu0 %5467
  %vm5470 = vcmask 1042176
  %5471 = vst.msk [vmem:[%s63] sm:$0x3] %vm5470, %v5468
  // Predicated region
  $region126: #{token_sample_adapter_forward.1} parent=0 // pred_check
    _
  $region127: #{token_sample_adapter_forward.1} parent=0 // pred_check_branch
    %5473 = sbr.rel (0) target = $region129
  $region128: #{token_sample_adapter_forward.1} parent=0 // pred_region
    _
  $region129: #{token_sample_adapter_forward.1} parent=0 // pred_fallthru
    _
  // Predicated region
  $region130: #{token_sample_adapter_forward.1} parent=0 // pred_check
    _
  $region131: #{token_sample_adapter_forward.1} parent=0 // pred_check_branch
    %5475 = sbr.rel (0) target = $region133
  $region132: #{token_sample_adapter_forward.1} parent=0 // pred_region
    _
  $region133: #{token_sample_adapter_forward.1} parent=0 // pred_fallthru
    _

</llo_original>
